<compile_context>
chip_gen: v7x
topology: tpu7x:2x2x1
jax: 0.10.0
libtpu: 0.0.40
codegen_flags: <defaults>
</compile_context>

<pallas_src>
import jax
import jax.numpy as jnp
from jax import lax
from jax.experimental import pallas as pl
from jax.experimental.pallas import tpu as pltpu

BN_EPS = 1e-5


# ------------------------------ host helpers ------------------------------- #

def _fold_bn_into_conv(w, gamma, beta, mean, var):
    """Fold inference-mode BatchNorm3d into conv weights: returns (w*scale, bias)."""
    s = gamma / jnp.sqrt(var + BN_EPS)                       # (Cout,)
    return w * s[:, None, None, None, None], beta - mean * s


def _flatten_taps(w):
    """torch (Cout, Cin, 3, 3, 3) -> (Cout, 27*Cin); K index = tap*Cin + ci."""
    cout, cin = w.shape[:2]
    return jnp.transpose(w, (0, 2, 3, 4, 1)).reshape(cout, 27 * cin)


# ------------------------------ Pallas kernel ------------------------------ #

def _make_block_kernel(R, C, offsets, center):
    """Fused conv1+bn1+relu -> conv2+bn2+residual+relu on one padflat volume."""

    def kernel(x_ref, w1_ref, b1_ref, w2_ref, b2_ref, mask_ref, out_ref,
               col, h1pad):
        # Stage the zero-padded input as bf16.  Its padding ring (all rows outside
        # the [center, center+R) band) is already zero and doubles as conv2's halo
        # once the band is overwritten with h1 below -> no explicit zero-fill pass.
        h1pad[...] = x_ref[0].astype(jnp.bfloat16)

        # ---- conv1: im2col (27 static lane-offset bf16 windows stacked along K),
        #      then ONE (C, 27C) x (27C, R) MXU matmul, bf16 operands, f32 acc.
        for t, off in enumerate(offsets):
            col[t * C:(t + 1) * C, :] = h1pad[:, off:off + R]
        y1 = jnp.dot(w1_ref[...], col[...], preferred_element_type=jnp.float32)
        y1 = jnp.maximum(y1 + b1_ref[...], 0.0)              # folded-BN bias + ReLU

        # ---- h1 kept resident in VMEM (bf16): band overwritten, halos stay zero;
        #      the mask kills the wrap-around garbage rows inside the band.
        h1pad[:, center:center + R] = (y1 * mask_ref[...]).astype(jnp.bfloat16)

        # ---- conv2: same im2col trick, reusing the SAME col scratch.
        for t, off in enumerate(offsets):
            col[t * C:(t + 1) * C, :] = h1pad[:, off:off + R]
        y2 = jnp.dot(w2_ref[...], col[...], preferred_element_type=jnp.float32)
        # folded-BN bias + identity residual (f32, from the already-resident input).
        y2 = y2 + b2_ref[...] + x_ref[0, :, center:center + R]
        out_ref[0, :, center:center + R] = jnp.maximum(y2, 0.0).astype(out_ref.dtype)
        # Rows of out_ref outside [center, center+R) are never consumed (wrapper
        # slice discards every padding-ring position), so they are left unwritten.

    return kernel


# --------------------------------- wrapper ---------------------------------- #

def basic_block_forward(x_ncdhw, params):
    """BasicBlock(inplanes=planes, stride=1, dilation=1, downsample=None) forward."""
    N, C, D, H, W = x_ncdhw.shape
    assert params["w1"].shape[0] == params["w1"].shape[1] == C, \
        "identity-residual BasicBlock requires inplanes == planes"

    Dp, Hp, Wp = D + 2, H + 2, W + 2
    P = Dp * Hp * Wp
    offsets = tuple(kd * Hp * Wp + kh * Wp + kw
                    for kd in range(3) for kh in range(3) for kw in range(3))
    center = Hp * Wp + Wp + 1
    R = P - offsets[-1]          # computed padflat rows; covers every valid output

    # channels-first padflat input: lane axis = flattened padded spatial.
    xp = jnp.pad(x_ncdhw, ((0, 0), (0, 0), (1, 1), (1, 1), (1, 1)))
    x_flat = xp.reshape(N, C, P)

    # Fold inference-mode BN into the conv weights; bf16 weights for the MXU.
    w1s, b1 = _fold_bn_into_conv(params["w1"], params["g1"], params["b1"],
                                 params["m1"], params["v1"])
    w2s, b2 = _fold_bn_into_conv(params["w2"], params["g2"], params["b2"],
                                 params["m2"], params["v2"])
    w1_flat = _flatten_taps(w1s).astype(jnp.bfloat16)   # (C, 27*C)
    w2_flat = _flatten_taps(w2s).astype(jnp.bfloat16)
    b1 = b1.reshape(C, 1).astype(jnp.float32)
    b2 = b2.reshape(C, 1).astype(jnp.float32)

    # Mask over rows [center, center+R): 1.0 for real (interior) voxels, 0.0 for
    # padding-ring positions whose conv1 output is wrap-around garbage (they must
    # read back as zeros in conv2's halo).
    valid = jnp.zeros((Dp, Hp, Wp), jnp.float32)
    valid = valid.at[1:1 + D, 1:1 + H, 1:1 + W].set(1.0)
    mask = valid.reshape(1, P)[:, center:center + R]

    kernel = _make_block_kernel(R, C, offsets, center)

    out_flat = pl.pallas_call(
        kernel,
        out_shape=jax.ShapeDtypeStruct((N, C, P), x_ncdhw.dtype),
        grid=(N,),
        in_specs=[
            pl.BlockSpec((1, C, P), lambda n: (n, 0, 0)),     # padflat input (f32)
            pl.BlockSpec((C, 27 * C), lambda n: (0, 0)),      # conv1 taps (bf16, BN folded)
            pl.BlockSpec((C, 1), lambda n: (0, 0)),           # bn1 bias
            pl.BlockSpec((C, 27 * C), lambda n: (0, 0)),      # conv2 taps (bf16, BN folded)
            pl.BlockSpec((C, 1), lambda n: (0, 0)),           # bn2 bias
            pl.BlockSpec((1, R), lambda n: (0, 0)),           # valid-voxel mask
        ],
        out_specs=pl.BlockSpec((1, C, P), lambda n: (n, 0, 0)),
        scratch_shapes=[
            pltpu.VMEM((27 * C, R), jnp.bfloat16),  # shared bf16 im2col scratch (both convs)
            pltpu.VMEM((C, P), jnp.bfloat16),       # bf16 staged x / resident padded h1
        ],
        compiler_params=pltpu.CompilerParams(dimension_semantics=("parallel",)),
    )(x_flat, w1_flat, b1, w2_flat, b2, mask)

    # Output is already the padflat volume; just reshape and slice the interior
    # (no extra pad/HBM round trip).  Result is NCDHW.
    return out_flat.reshape(N, C, Dp, Hp, Wp)[:, :, 1:1 + D, 1:1 + H, 1:1 + W]


# ------------------------------ JAX references ------------------------------ #

def ref_forward(x, params):
    """Exact float32 reference with PyTorch BasicBlock semantics."""
    def conv(inp, w):
        return lax.conv_general_dilated(
            inp, w, window_strides=(1, 1, 1), padding=[(1, 1)] * 3,
            dimension_numbers=("NCDHW", "OIDHW", "NCDHW"))

    def bn(inp, g, b, m, v):
        sh = (1, -1, 1, 1, 1)
        return ((inp - m.reshape(sh)) / jnp.sqrt(v.reshape(sh) + BN_EPS)
                * g.reshape(sh) + b.reshape(sh))

    out = jnp.maximum(bn(conv(x, params["w1"]), params["g1"], params["b1"],
                         params["m1"], params["v1"]), 0.0)
    out = bn(conv(out, params["w2"]), params["g2"], params["b2"],
             params["m2"], params["v2"]) + x
    return jnp.maximum(out, 0.0)


def quantized_ref_forward(x, params):
    """Reference mirroring the kernel's numerics (BN folded into weights, bf16
    matmul operands, f32 accumulation) for a tight structural check."""
    def conv(inp, w):
        return lax.conv_general_dilated(
            inp.astype(jnp.bfloat16), w.astype(jnp.bfloat16),
            window_strides=(1, 1, 1), padding=[(1, 1)] * 3,
            dimension_numbers=("NCDHW", "OIDHW", "NCDHW"),
            preferred_element_type=jnp.float32)

    sh = (1, -1, 1, 1, 1)
    w1s, b1 = _fold_bn_into_conv(params["w1"], params["g1"], params["b1"],
                                 params["m1"], params["v1"])
    w2s, b2 = _fold_bn_into_conv(params["w2"], params["g2"], params["b2"],
                                 params["m2"], params["v2"])
    h1 = jnp.maximum(conv(x, w1s) + b1.reshape(sh), 0.0)
    out = conv(h1, w2s) + b2.reshape(sh) + x
    return jnp.maximum(out, 0.0)


# ---------------------------------- main ------------------------------------ #

if __name__ == "__main__":
    key = jax.random.PRNGKey(0)
    N, C, D, H, W = 2, 8, 8, 8, 8   # inplanes == planes, stride=1, downsample=None
    ks = jax.random.split(key, 12)

    x = jax.random.normal(ks[0], (N, C, D, H, W), dtype=jnp.float32)
    params = {
        "w1": 0.1 * jax.random.normal(ks[1], (C, C, 3, 3, 3), dtype=jnp.float32),
        "g1": 1.0 + 0.1 * jax.random.normal(ks[2], (C,), dtype=jnp.float32),
        "b1": 0.1 * jax.random.normal(ks[3], (C,), dtype=jnp.float32),
        "m1": 0.1 * jax.random.normal(ks[4], (C,), dtype=jnp.float32),
        "v1": jax.random.uniform(ks[5], (C,), minval=0.5, maxval=1.5, dtype=jnp.float32),
        "w2": 0.1 * jax.random.normal(ks[6], (C, C, 3, 3, 3), dtype=jnp.float32),
        "g2": 1.0 + 0.1 * jax.random.normal(ks[7], (C,), dtype=jnp.float32),
        "b2": 0.1 * jax.random.normal(ks[8], (C,), dtype=jnp.float32),
        "m2": 0.1 * jax.random.normal(ks[9], (C,), dtype=jnp.float32),
        "v2": jax.random.uniform(ks[10], (C,), minval=0.5, maxval=1.5, dtype=jnp.float32),
    }

    out = jax.block_until_ready(jax.jit(basic_block_forward)(x, params))

    ref_exact = ref_forward(x, params)            # true f32 PyTorch semantics
    ref_quant = quantized_ref_forward(x, params)  # same bf16-operand numerics as kernel
    assert out.shape == ref_exact.shape == (N, C, D, H, W)

    # Tight check against the numerics-matched reference (catches structural bugs).
    err_q = float(jnp.max(jnp.abs(out - ref_quant)))
    assert err_q < 1e-2, f"mismatch vs bf16-operand reference: {err_q}"
    # Loose check against the exact f32 reference (bounds bf16 quantization error).
    err_f = float(jnp.max(jnp.abs(out - ref_exact)))
    assert err_f < 1e-1, f"mismatch vs exact f32 reference: {err_f}"

    print("KERNEL_OK")
</pallas_src>

<mosaic_0001>
module attributes {stable_mosaic.version = 11 : i64} {
  func.func @kernel(%arg0: i32, %arg1: memref<1x8x1000xf32, #tpu.memory_space<vmem>>, %arg2: memref<8x216xbf16, #tpu.memory_space<vmem>>, %arg3: memref<8x1xf32, #tpu.memory_space<vmem>>, %arg4: memref<8x216xbf16, #tpu.memory_space<vmem>>, %arg5: memref<8x1xf32, #tpu.memory_space<vmem>>, %arg6: memref<1x778xf32, #tpu.memory_space<vmem>>, %arg7: memref<1x8x1000xf32, #tpu.memory_space<vmem>>, %arg8: memref<216x778xbf16, #tpu.memory_space<vmem>>, %arg9: memref<8x1000xbf16, #tpu.memory_space<vmem>>) attributes {dimension_semantics = [#tpu.dimension_semantics<parallel>], iteration_bounds = array<i64: 2>, scalar_prefetch = 0 : i64, scratch_operands = 2 : i64, tpu.core_type = #tpu.core_type<tc>, window_params = [{transform_indices = @transform_0, window_bounds = array<i64: 1, 8, 1000>}, {pipeline_mode = #tpu.pipeline_mode<synchronous>, transform_indices = @transform_1, window_bounds = array<i64: 8, 216>}, {pipeline_mode = #tpu.pipeline_mode<synchronous>, transform_indices = @transform_2, window_bounds = array<i64: 8, 1>}, {pipeline_mode = #tpu.pipeline_mode<synchronous>, transform_indices = @transform_3, window_bounds = array<i64: 8, 216>}, {pipeline_mode = #tpu.pipeline_mode<synchronous>, transform_indices = @transform_4, window_bounds = array<i64: 8, 1>}, {pipeline_mode = #tpu.pipeline_mode<synchronous>, transform_indices = @transform_5, window_bounds = array<i64: 1, 778>}, {transform_indices = @transform_6, window_bounds = array<i64: 1, 8, 1000>}]} {
    %c0 = arith.constant 0 : index
    %c0_0 = arith.constant 0 : index
    %c0_1 = arith.constant 0 : index
    %0 = vector.load %arg1[%c0, %c0_0, %c0_1] : memref<1x8x1000xf32, #tpu.memory_space<vmem>>, vector<1x8x1000xf32>
    %1 = vector.shape_cast %0 : vector<1x8x1000xf32> to vector<8x1000xf32>
    %2 = arith.truncf %1 : vector<8x1000xf32> to vector<8x1000xbf16>
    %c0_2 = arith.constant 0 : index
    %c0_3 = arith.constant 0 : index
    %3 = vector.load %arg9[%c0_2, %c0_3] : memref<8x1000xbf16, #tpu.memory_space<vmem>>, vector<8x1000xbf16>
    tpu.vector_store %arg9[%c0_2, %c0_3], %2 {strides = array<i32>} : memref<8x1000xbf16, #tpu.memory_space<vmem>>, vector<8x1000xbf16>,
    %c0_4 = arith.constant 0 : index
    %c0_5 = arith.constant 0 : index
    %4 = vector.load %arg9[%c0_4, %c0_5] : memref<8x1000xbf16, #tpu.memory_space<vmem>>, vector<8x778xbf16>
    %c0_6 = arith.constant 0 : index
    %c0_7 = arith.constant 0 : index
    %5 = vector.load %arg8[%c0_6, %c0_7] : memref<216x778xbf16, #tpu.memory_space<vmem>>, vector<8x778xbf16>
    tpu.vector_store %arg8[%c0_6, %c0_7], %4 {strides = array<i32>} : memref<216x778xbf16, #tpu.memory_space<vmem>>, vector<8x778xbf16>,
    %c0_8 = arith.constant 0 : index
    %c1 = arith.constant 1 : index
    %6 = vector.load %arg9[%c0_8, %c1] : memref<8x1000xbf16, #tpu.memory_space<vmem>>, vector<8x778xbf16>
    %c8 = arith.constant 8 : index
    %c0_9 = arith.constant 0 : index
    %7 = vector.load %arg8[%c8, %c0_9] : memref<216x778xbf16, #tpu.memory_space<vmem>>, vector<8x778xbf16>
    tpu.vector_store %arg8[%c8, %c0_9], %6 {strides = array<i32>} : memref<216x778xbf16, #tpu.memory_space<vmem>>, vector<8x778xbf16>,
    %c0_10 = arith.constant 0 : index
    %c2 = arith.constant 2 : index
    %8 = vector.load %arg9[%c0_10, %c2] : memref<8x1000xbf16, #tpu.memory_space<vmem>>, vector<8x778xbf16>
    %c16 = arith.constant 16 : index
    %c0_11 = arith.constant 0 : index
    %9 = vector.load %arg8[%c16, %c0_11] : memref<216x778xbf16, #tpu.memory_space<vmem>>, vector<8x778xbf16>
    tpu.vector_store %arg8[%c16, %c0_11], %8 {strides = array<i32>} : memref<216x778xbf16, #tpu.memory_space<vmem>>, vector<8x778xbf16>,
    %c0_12 = arith.constant 0 : index
    %c10 = arith.constant 10 : index
    %10 = vector.load %arg9[%c0_12, %c10] : memref<8x1000xbf16, #tpu.memory_space<vmem>>, vector<8x778xbf16>
    %c24 = arith.constant 24 : index
    %c0_13 = arith.constant 0 : index
    %11 = vector.load %arg8[%c24, %c0_13] : memref<216x778xbf16, #tpu.memory_space<vmem>>, vector<8x778xbf16>
    tpu.vector_store %arg8[%c24, %c0_13], %10 {strides = array<i32>} : memref<216x778xbf16, #tpu.memory_space<vmem>>, vector<8x778xbf16>,
    %c0_14 = arith.constant 0 : index
    %c11 = arith.constant 11 : index
    %12 = vector.load %arg9[%c0_14, %c11] : memref<8x1000xbf16, #tpu.memory_space<vmem>>, vector<8x778xbf16>
    %c32 = arith.constant 32 : index
    %c0_15 = arith.constant 0 : index
    %13 = vector.load %arg8[%c32, %c0_15] : memref<216x778xbf16, #tpu.memory_space<vmem>>, vector<8x778xbf16>
    tpu.vector_store %arg8[%c32, %c0_15], %12 {strides = array<i32>} : memref<216x778xbf16, #tpu.memory_space<vmem>>, vector<8x778xbf16>,
    %c0_16 = arith.constant 0 : index
    %c12 = arith.constant 12 : index
    %14 = vector.load %arg9[%c0_16, %c12] : memref<8x1000xbf16, #tpu.memory_space<vmem>>, vector<8x778xbf16>
    %c40 = arith.constant 40 : index
    %c0_17 = arith.constant 0 : index
    %15 = vector.load %arg8[%c40, %c0_17] : memref<216x778xbf16, #tpu.memory_space<vmem>>, vector<8x778xbf16>
    tpu.vector_store %arg8[%c40, %c0_17], %14 {strides = array<i32>} : memref<216x778xbf16, #tpu.memory_space<vmem>>, vector<8x778xbf16>,
    %c0_18 = arith.constant 0 : index
    %c20 = arith.constant 20 : index
    %16 = vector.load %arg9[%c0_18, %c20] : memref<8x1000xbf16, #tpu.memory_space<vmem>>, vector<8x778xbf16>
    %c48 = arith.constant 48 : index
    %c0_19 = arith.constant 0 : index
    %17 = vector.load %arg8[%c48, %c0_19] : memref<216x778xbf16, #tpu.memory_space<vmem>>, vector<8x778xbf16>
    tpu.vector_store %arg8[%c48, %c0_19], %16 {strides = array<i32>} : memref<216x778xbf16, #tpu.memory_space<vmem>>, vector<8x778xbf16>,
    %c0_20 = arith.constant 0 : index
    %c21 = arith.constant 21 : index
    %18 = vector.load %arg9[%c0_20, %c21] : memref<8x1000xbf16, #tpu.memory_space<vmem>>, vector<8x778xbf16>
    %c56 = arith.constant 56 : index
    %c0_21 = arith.constant 0 : index
    %19 = vector.load %arg8[%c56, %c0_21] : memref<216x778xbf16, #tpu.memory_space<vmem>>, vector<8x778xbf16>
    tpu.vector_store %arg8[%c56, %c0_21], %18 {strides = array<i32>} : memref<216x778xbf16, #tpu.memory_space<vmem>>, vector<8x778xbf16>,
    %c0_22 = arith.constant 0 : index
    %c22 = arith.constant 22 : index
    %20 = vector.load %arg9[%c0_22, %c22] : memref<8x1000xbf16, #tpu.memory_space<vmem>>, vector<8x778xbf16>
    %c64 = arith.constant 64 : index
    %c0_23 = arith.constant 0 : index
    %21 = vector.load %arg8[%c64, %c0_23] : memref<216x778xbf16, #tpu.memory_space<vmem>>, vector<8x778xbf16>
    tpu.vector_store %arg8[%c64, %c0_23], %20 {strides = array<i32>} : memref<216x778xbf16, #tpu.memory_space<vmem>>, vector<8x778xbf16>,
    %c0_24 = arith.constant 0 : index
    %c100 = arith.constant 100 : index
    %22 = vector.load %arg9[%c0_24, %c100] : memref<8x1000xbf16, #tpu.memory_space<vmem>>, vector<8x778xbf16>
    %c72 = arith.constant 72 : index
    %c0_25 = arith.constant 0 : index
    %23 = vector.load %arg8[%c72, %c0_25] : memref<216x778xbf16, #tpu.memory_space<vmem>>, vector<8x778xbf16>
    tpu.vector_store %arg8[%c72, %c0_25], %22 {strides = array<i32>} : memref<216x778xbf16, #tpu.memory_space<vmem>>, vector<8x778xbf16>,
    %c0_26 = arith.constant 0 : index
    %c101 = arith.constant 101 : index
    %24 = vector.load %arg9[%c0_26, %c101] : memref<8x1000xbf16, #tpu.memory_space<vmem>>, vector<8x778xbf16>
    %c80 = arith.constant 80 : index
    %c0_27 = arith.constant 0 : index
    %25 = vector.load %arg8[%c80, %c0_27] : memref<216x778xbf16, #tpu.memory_space<vmem>>, vector<8x778xbf16>
    tpu.vector_store %arg8[%c80, %c0_27], %24 {strides = array<i32>} : memref<216x778xbf16, #tpu.memory_space<vmem>>, vector<8x778xbf16>,
    %c0_28 = arith.constant 0 : index
    %c102 = arith.constant 102 : index
    %26 = vector.load %arg9[%c0_28, %c102] : memref<8x1000xbf16, #tpu.memory_space<vmem>>, vector<8x778xbf16>
    %c88 = arith.constant 88 : index
    %c0_29 = arith.constant 0 : index
    %27 = vector.load %arg8[%c88, %c0_29] : memref<216x778xbf16, #tpu.memory_space<vmem>>, vector<8x778xbf16>
    tpu.vector_store %arg8[%c88, %c0_29], %26 {strides = array<i32>} : memref<216x778xbf16, #tpu.memory_space<vmem>>, vector<8x778xbf16>,
    %c0_30 = arith.constant 0 : index
    %c110 = arith.constant 110 : index
    %28 = vector.load %arg9[%c0_30, %c110] : memref<8x1000xbf16, #tpu.memory_space<vmem>>, vector<8x778xbf16>
    %c96 = arith.constant 96 : index
    %c0_31 = arith.constant 0 : index
    %29 = vector.load %arg8[%c96, %c0_31] : memref<216x778xbf16, #tpu.memory_space<vmem>>, vector<8x778xbf16>
    tpu.vector_store %arg8[%c96, %c0_31], %28 {strides = array<i32>} : memref<216x778xbf16, #tpu.memory_space<vmem>>, vector<8x778xbf16>,
    %c0_32 = arith.constant 0 : index
    %c111 = arith.constant 111 : index
    %30 = vector.load %arg9[%c0_32, %c111] : memref<8x1000xbf16, #tpu.memory_space<vmem>>, vector<8x778xbf16>
    %c104 = arith.constant 104 : index
    %c0_33 = arith.constant 0 : index
    %31 = vector.load %arg8[%c104, %c0_33] : memref<216x778xbf16, #tpu.memory_space<vmem>>, vector<8x778xbf16>
    tpu.vector_store %arg8[%c104, %c0_33], %30 {strides = array<i32>} : memref<216x778xbf16, #tpu.memory_space<vmem>>, vector<8x778xbf16>,
    %c0_34 = arith.constant 0 : index
    %c112 = arith.constant 112 : index
    %32 = vector.load %arg9[%c0_34, %c112] : memref<8x1000xbf16, #tpu.memory_space<vmem>>, vector<8x778xbf16>
    %c112_35 = arith.constant 112 : index
    %c0_36 = arith.constant 0 : index
    %33 = vector.load %arg8[%c112_35, %c0_36] : memref<216x778xbf16, #tpu.memory_space<vmem>>, vector<8x778xbf16>
    tpu.vector_store %arg8[%c112_35, %c0_36], %32 {strides = array<i32>} : memref<216x778xbf16, #tpu.memory_space<vmem>>, vector<8x778xbf16>,
    %c0_37 = arith.constant 0 : index
    %c120 = arith.constant 120 : index
    %34 = vector.load %arg9[%c0_37, %c120] : memref<8x1000xbf16, #tpu.memory_space<vmem>>, vector<8x778xbf16>
    %c120_38 = arith.constant 120 : index
    %c0_39 = arith.constant 0 : index
    %35 = vector.load %arg8[%c120_38, %c0_39] : memref<216x778xbf16, #tpu.memory_space<vmem>>, vector<8x778xbf16>
    tpu.vector_store %arg8[%c120_38, %c0_39], %34 {strides = array<i32>} : memref<216x778xbf16, #tpu.memory_space<vmem>>, vector<8x778xbf16>,
    %c0_40 = arith.constant 0 : index
    %c121 = arith.constant 121 : index
    %36 = vector.load %arg9[%c0_40, %c121] : memref<8x1000xbf16, #tpu.memory_space<vmem>>, vector<8x778xbf16>
    %c128 = arith.constant 128 : index
    %c0_41 = arith.constant 0 : index
    %37 = vector.load %arg8[%c128, %c0_41] : memref<216x778xbf16, #tpu.memory_space<vmem>>, vector<8x778xbf16>
    tpu.vector_store %arg8[%c128, %c0_41], %36 {strides = array<i32>} : memref<216x778xbf16, #tpu.memory_space<vmem>>, vector<8x778xbf16>,
    %c0_42 = arith.constant 0 : index
    %c122 = arith.constant 122 : index
    %38 = vector.load %arg9[%c0_42, %c122] : memref<8x1000xbf16, #tpu.memory_space<vmem>>, vector<8x778xbf16>
    %c136 = arith.constant 136 : index
    %c0_43 = arith.constant 0 : index
    %39 = vector.load %arg8[%c136, %c0_43] : memref<216x778xbf16, #tpu.memory_space<vmem>>, vector<8x778xbf16>
    tpu.vector_store %arg8[%c136, %c0_43], %38 {strides = array<i32>} : memref<216x778xbf16, #tpu.memory_space<vmem>>, vector<8x778xbf16>,
    %c0_44 = arith.constant 0 : index
    %c200 = arith.constant 200 : index
    %40 = vector.load %arg9[%c0_44, %c200] : memref<8x1000xbf16, #tpu.memory_space<vmem>>, vector<8x778xbf16>
    %c144 = arith.constant 144 : index
    %c0_45 = arith.constant 0 : index
    %41 = vector.load %arg8[%c144, %c0_45] : memref<216x778xbf16, #tpu.memory_space<vmem>>, vector<8x778xbf16>
    tpu.vector_store %arg8[%c144, %c0_45], %40 {strides = array<i32>} : memref<216x778xbf16, #tpu.memory_space<vmem>>, vector<8x778xbf16>,
    %c0_46 = arith.constant 0 : index
    %c201 = arith.constant 201 : index
    %42 = vector.load %arg9[%c0_46, %c201] : memref<8x1000xbf16, #tpu.memory_space<vmem>>, vector<8x778xbf16>
    %c152 = arith.constant 152 : index
    %c0_47 = arith.constant 0 : index
    %43 = vector.load %arg8[%c152, %c0_47] : memref<216x778xbf16, #tpu.memory_space<vmem>>, vector<8x778xbf16>
    tpu.vector_store %arg8[%c152, %c0_47], %42 {strides = array<i32>} : memref<216x778xbf16, #tpu.memory_space<vmem>>, vector<8x778xbf16>,
    %c0_48 = arith.constant 0 : index
    %c202 = arith.constant 202 : index
    %44 = vector.load %arg9[%c0_48, %c202] : memref<8x1000xbf16, #tpu.memory_space<vmem>>, vector<8x778xbf16>
    %c160 = arith.constant 160 : index
    %c0_49 = arith.constant 0 : index
    %45 = vector.load %arg8[%c160, %c0_49] : memref<216x778xbf16, #tpu.memory_space<vmem>>, vector<8x778xbf16>
    tpu.vector_store %arg8[%c160, %c0_49], %44 {strides = array<i32>} : memref<216x778xbf16, #tpu.memory_space<vmem>>, vector<8x778xbf16>,
    %c0_50 = arith.constant 0 : index
    %c210 = arith.constant 210 : index
    %46 = vector.load %arg9[%c0_50, %c210] : memref<8x1000xbf16, #tpu.memory_space<vmem>>, vector<8x778xbf16>
    %c168 = arith.constant 168 : index
    %c0_51 = arith.constant 0 : index
    %47 = vector.load %arg8[%c168, %c0_51] : memref<216x778xbf16, #tpu.memory_space<vmem>>, vector<8x778xbf16>
    tpu.vector_store %arg8[%c168, %c0_51], %46 {strides = array<i32>} : memref<216x778xbf16, #tpu.memory_space<vmem>>, vector<8x778xbf16>,
    %c0_52 = arith.constant 0 : index
    %c211 = arith.constant 211 : index
    %48 = vector.load %arg9[%c0_52, %c211] : memref<8x1000xbf16, #tpu.memory_space<vmem>>, vector<8x778xbf16>
    %c176 = arith.constant 176 : index
    %c0_53 = arith.constant 0 : index
    %49 = vector.load %arg8[%c176, %c0_53] : memref<216x778xbf16, #tpu.memory_space<vmem>>, vector<8x778xbf16>
    tpu.vector_store %arg8[%c176, %c0_53], %48 {strides = array<i32>} : memref<216x778xbf16, #tpu.memory_space<vmem>>, vector<8x778xbf16>,
    %c0_54 = arith.constant 0 : index
    %c212 = arith.constant 212 : index
    %50 = vector.load %arg9[%c0_54, %c212] : memref<8x1000xbf16, #tpu.memory_space<vmem>>, vector<8x778xbf16>
    %c184 = arith.constant 184 : index
    %c0_55 = arith.constant 0 : index
    %51 = vector.load %arg8[%c184, %c0_55] : memref<216x778xbf16, #tpu.memory_space<vmem>>, vector<8x778xbf16>
    tpu.vector_store %arg8[%c184, %c0_55], %50 {strides = array<i32>} : memref<216x778xbf16, #tpu.memory_space<vmem>>, vector<8x778xbf16>,
    %c0_56 = arith.constant 0 : index
    %c220 = arith.constant 220 : index
    %52 = vector.load %arg9[%c0_56, %c220] : memref<8x1000xbf16, #tpu.memory_space<vmem>>, vector<8x778xbf16>
    %c192 = arith.constant 192 : index
    %c0_57 = arith.constant 0 : index
    %53 = vector.load %arg8[%c192, %c0_57] : memref<216x778xbf16, #tpu.memory_space<vmem>>, vector<8x778xbf16>
    tpu.vector_store %arg8[%c192, %c0_57], %52 {strides = array<i32>} : memref<216x778xbf16, #tpu.memory_space<vmem>>, vector<8x778xbf16>,
    %c0_58 = arith.constant 0 : index
    %c221 = arith.constant 221 : index
    %54 = vector.load %arg9[%c0_58, %c221] : memref<8x1000xbf16, #tpu.memory_space<vmem>>, vector<8x778xbf16>
    %c200_59 = arith.constant 200 : index
    %c0_60 = arith.constant 0 : index
    %55 = vector.load %arg8[%c200_59, %c0_60] : memref<216x778xbf16, #tpu.memory_space<vmem>>, vector<8x778xbf16>
    tpu.vector_store %arg8[%c200_59, %c0_60], %54 {strides = array<i32>} : memref<216x778xbf16, #tpu.memory_space<vmem>>, vector<8x778xbf16>,
    %c0_61 = arith.constant 0 : index
    %c222 = arith.constant 222 : index
    %56 = vector.load %arg9[%c0_61, %c222] : memref<8x1000xbf16, #tpu.memory_space<vmem>>, vector<8x778xbf16>
    %c208 = arith.constant 208 : index
    %c0_62 = arith.constant 0 : index
    %57 = vector.load %arg8[%c208, %c0_62] : memref<216x778xbf16, #tpu.memory_space<vmem>>, vector<8x778xbf16>
    tpu.vector_store %arg8[%c208, %c0_62], %56 {strides = array<i32>} : memref<216x778xbf16, #tpu.memory_space<vmem>>, vector<8x778xbf16>,
    %c0_63 = arith.constant 0 : index
    %c0_64 = arith.constant 0 : index
    %58 = vector.load %arg2[%c0_63, %c0_64] : memref<8x216xbf16, #tpu.memory_space<vmem>>, vector<8x216xbf16>
    %c0_65 = arith.constant 0 : index
    %c0_66 = arith.constant 0 : index
    %59 = vector.load %arg8[%c0_65, %c0_66] : memref<216x778xbf16, #tpu.memory_space<vmem>>, vector<216x778xbf16>
    %cst = arith.constant dense<0.000000e+00> : vector<8x778xf32>
    %60 = tpu.matmul %58, %59, %cst {dimension_numbers = #tpu.dot_dimension_numbers<[1], [0], [0], [1], [0, 0, 1, 1], [], []>} : vector<8x216xbf16>, vector<216x778xbf16>, vector<8x778xf32> -> vector<8x778xf32>
    %c0_67 = arith.constant 0 : index
    %c0_68 = arith.constant 0 : index
    %61 = vector.load %arg3[%c0_67, %c0_68] : memref<8x1xf32, #tpu.memory_space<vmem>>, vector<8x1xf32>
    %62 = vector.broadcast %61 : vector<8x1xf32> to vector<8x778xf32>
    %63 = arith.addf %60, %62 : vector<8x778xf32>
    %cst_69 = arith.constant 0.000000e+00 : f32
    %64 = vector.broadcast %cst_69 : f32 to vector<8x778xf32>
    %65 = arith.maximumf %63, %64 : vector<8x778xf32>
    %c0_70 = arith.constant 0 : index
    %c0_71 = arith.constant 0 : index
    %66 = vector.load %arg6[%c0_70, %c0_71] : memref<1x778xf32, #tpu.memory_space<vmem>>, vector<1x778xf32>
    %67 = vector.broadcast %66 : vector<1x778xf32> to vector<8x778xf32>
    %68 = arith.mulf %65, %67 : vector<8x778xf32>
    %69 = arith.truncf %68 : vector<8x778xf32> to vector<8x778xbf16>
    %c0_72 = arith.constant 0 : index
    %c111_73 = arith.constant 111 : index
    %70 = vector.load %arg9[%c0_72, %c111_73] : memref<8x1000xbf16, #tpu.memory_space<vmem>>, vector<8x778xbf16>
    tpu.vector_store %arg9[%c0_72, %c111_73], %69 {strides = array<i32>} : memref<8x1000xbf16, #tpu.memory_space<vmem>>, vector<8x778xbf16>,
    %c0_74 = arith.constant 0 : index
    %c0_75 = arith.constant 0 : index
    %71 = vector.load %arg9[%c0_74, %c0_75] : memref<8x1000xbf16, #tpu.memory_space<vmem>>, vector<8x778xbf16>
    %c0_76 = arith.constant 0 : index
    %c0_77 = arith.constant 0 : index
    %72 = vector.load %arg8[%c0_76, %c0_77] : memref<216x778xbf16, #tpu.memory_space<vmem>>, vector<8x778xbf16>
    tpu.vector_store %arg8[%c0_76, %c0_77], %71 {strides = array<i32>} : memref<216x778xbf16, #tpu.memory_space<vmem>>, vector<8x778xbf16>,
    %c0_78 = arith.constant 0 : index
    %c1_79 = arith.constant 1 : index
    %73 = vector.load %arg9[%c0_78, %c1_79] : memref<8x1000xbf16, #tpu.memory_space<vmem>>, vector<8x778xbf16>
    %c8_80 = arith.constant 8 : index
    %c0_81 = arith.constant 0 : index
    %74 = vector.load %arg8[%c8_80, %c0_81] : memref<216x778xbf16, #tpu.memory_space<vmem>>, vector<8x778xbf16>
    tpu.vector_store %arg8[%c8_80, %c0_81], %73 {strides = array<i32>} : memref<216x778xbf16, #tpu.memory_space<vmem>>, vector<8x778xbf16>,
    %c0_82 = arith.constant 0 : index
    %c2_83 = arith.constant 2 : index
    %75 = vector.load %arg9[%c0_82, %c2_83] : memref<8x1000xbf16, #tpu.memory_space<vmem>>, vector<8x778xbf16>
    %c16_84 = arith.constant 16 : index
    %c0_85 = arith.constant 0 : index
    %76 = vector.load %arg8[%c16_84, %c0_85] : memref<216x778xbf16, #tpu.memory_space<vmem>>, vector<8x778xbf16>
    tpu.vector_store %arg8[%c16_84, %c0_85], %75 {strides = array<i32>} : memref<216x778xbf16, #tpu.memory_space<vmem>>, vector<8x778xbf16>,
    %c0_86 = arith.constant 0 : index
    %c10_87 = arith.constant 10 : index
    %77 = vector.load %arg9[%c0_86, %c10_87] : memref<8x1000xbf16, #tpu.memory_space<vmem>>, vector<8x778xbf16>
    %c24_88 = arith.constant 24 : index
    %c0_89 = arith.constant 0 : index
    %78 = vector.load %arg8[%c24_88, %c0_89] : memref<216x778xbf16, #tpu.memory_space<vmem>>, vector<8x778xbf16>
    tpu.vector_store %arg8[%c24_88, %c0_89], %77 {strides = array<i32>} : memref<216x778xbf16, #tpu.memory_space<vmem>>, vector<8x778xbf16>,
    %c0_90 = arith.constant 0 : index
    %c11_91 = arith.constant 11 : index
    %79 = vector.load %arg9[%c0_90, %c11_91] : memref<8x1000xbf16, #tpu.memory_space<vmem>>, vector<8x778xbf16>
    %c32_92 = arith.constant 32 : index
    %c0_93 = arith.constant 0 : index
    %80 = vector.load %arg8[%c32_92, %c0_93] : memref<216x778xbf16, #tpu.memory_space<vmem>>, vector<8x778xbf16>
    tpu.vector_store %arg8[%c32_92, %c0_93], %79 {strides = array<i32>} : memref<216x778xbf16, #tpu.memory_space<vmem>>, vector<8x778xbf16>,
    %c0_94 = arith.constant 0 : index
    %c12_95 = arith.constant 12 : index
    %81 = vector.load %arg9[%c0_94, %c12_95] : memref<8x1000xbf16, #tpu.memory_space<vmem>>, vector<8x778xbf16>
    %c40_96 = arith.constant 40 : index
    %c0_97 = arith.constant 0 : index
    %82 = vector.load %arg8[%c40_96, %c0_97] : memref<216x778xbf16, #tpu.memory_space<vmem>>, vector<8x778xbf16>
    tpu.vector_store %arg8[%c40_96, %c0_97], %81 {strides = array<i32>} : memref<216x778xbf16, #tpu.memory_space<vmem>>, vector<8x778xbf16>,
    %c0_98 = arith.constant 0 : index
    %c20_99 = arith.constant 20 : index
    %83 = vector.load %arg9[%c0_98, %c20_99] : memref<8x1000xbf16, #tpu.memory_space<vmem>>, vector<8x778xbf16>
    %c48_100 = arith.constant 48 : index
    %c0_101 = arith.constant 0 : index
    %84 = vector.load %arg8[%c48_100, %c0_101] : memref<216x778xbf16, #tpu.memory_space<vmem>>, vector<8x778xbf16>
    tpu.vector_store %arg8[%c48_100, %c0_101], %83 {strides = array<i32>} : memref<216x778xbf16, #tpu.memory_space<vmem>>, vector<8x778xbf16>,
    %c0_102 = arith.constant 0 : index
    %c21_103 = arith.constant 21 : index
    %85 = vector.load %arg9[%c0_102, %c21_103] : memref<8x1000xbf16, #tpu.memory_space<vmem>>, vector<8x778xbf16>
    %c56_104 = arith.constant 56 : index
    %c0_105 = arith.constant 0 : index
    %86 = vector.load %arg8[%c56_104, %c0_105] : memref<216x778xbf16, #tpu.memory_space<vmem>>, vector<8x778xbf16>
    tpu.vector_store %arg8[%c56_104, %c0_105], %85 {strides = array<i32>} : memref<216x778xbf16, #tpu.memory_space<vmem>>, vector<8x778xbf16>,
    %c0_106 = arith.constant 0 : index
    %c22_107 = arith.constant 22 : index
    %87 = vector.load %arg9[%c0_106, %c22_107] : memref<8x1000xbf16, #tpu.memory_space<vmem>>, vector<8x778xbf16>
    %c64_108 = arith.constant 64 : index
    %c0_109 = arith.constant 0 : index
    %88 = vector.load %arg8[%c64_108, %c0_109] : memref<216x778xbf16, #tpu.memory_space<vmem>>, vector<8x778xbf16>
    tpu.vector_store %arg8[%c64_108, %c0_109], %87 {strides = array<i32>} : memref<216x778xbf16, #tpu.memory_space<vmem>>, vector<8x778xbf16>,
    %c0_110 = arith.constant 0 : index
    %c100_111 = arith.constant 100 : index
    %89 = vector.load %arg9[%c0_110, %c100_111] : memref<8x1000xbf16, #tpu.memory_space<vmem>>, vector<8x778xbf16>
    %c72_112 = arith.constant 72 : index
    %c0_113 = arith.constant 0 : index
    %90 = vector.load %arg8[%c72_112, %c0_113] : memref<216x778xbf16, #tpu.memory_space<vmem>>, vector<8x778xbf16>
    tpu.vector_store %arg8[%c72_112, %c0_113], %89 {strides = array<i32>} : memref<216x778xbf16, #tpu.memory_space<vmem>>, vector<8x778xbf16>,
    %c0_114 = arith.constant 0 : index
    %c101_115 = arith.constant 101 : index
    %91 = vector.load %arg9[%c0_114, %c101_115] : memref<8x1000xbf16, #tpu.memory_space<vmem>>, vector<8x778xbf16>
    %c80_116 = arith.constant 80 : index
    %c0_117 = arith.constant 0 : index
    %92 = vector.load %arg8[%c80_116, %c0_117] : memref<216x778xbf16, #tpu.memory_space<vmem>>, vector<8x778xbf16>
    tpu.vector_store %arg8[%c80_116, %c0_117], %91 {strides = array<i32>} : memref<216x778xbf16, #tpu.memory_space<vmem>>, vector<8x778xbf16>,
    %c0_118 = arith.constant 0 : index
    %c102_119 = arith.constant 102 : index
    %93 = vector.load %arg9[%c0_118, %c102_119] : memref<8x1000xbf16, #tpu.memory_space<vmem>>, vector<8x778xbf16>
    %c88_120 = arith.constant 88 : index
    %c0_121 = arith.constant 0 : index
    %94 = vector.load %arg8[%c88_120, %c0_121] : memref<216x778xbf16, #tpu.memory_space<vmem>>, vector<8x778xbf16>
    tpu.vector_store %arg8[%c88_120, %c0_121], %93 {strides = array<i32>} : memref<216x778xbf16, #tpu.memory_space<vmem>>, vector<8x778xbf16>,
    %c0_122 = arith.constant 0 : index
    %c110_123 = arith.constant 110 : index
    %95 = vector.load %arg9[%c0_122, %c110_123] : memref<8x1000xbf16, #tpu.memory_space<vmem>>, vector<8x778xbf16>
    %c96_124 = arith.constant 96 : index
    %c0_125 = arith.constant 0 : index
    %96 = vector.load %arg8[%c96_124, %c0_125] : memref<216x778xbf16, #tpu.memory_space<vmem>>, vector<8x778xbf16>
    tpu.vector_store %arg8[%c96_124, %c0_125], %95 {strides = array<i32>} : memref<216x778xbf16, #tpu.memory_space<vmem>>, vector<8x778xbf16>,
    %c0_126 = arith.constant 0 : index
    %c111_127 = arith.constant 111 : index
    %97 = vector.load %arg9[%c0_126, %c111_127] : memref<8x1000xbf16, #tpu.memory_space<vmem>>, vector<8x778xbf16>
    %c104_128 = arith.constant 104 : index
    %c0_129 = arith.constant 0 : index
    %98 = vector.load %arg8[%c104_128, %c0_129] : memref<216x778xbf16, #tpu.memory_space<vmem>>, vector<8x778xbf16>
    tpu.vector_store %arg8[%c104_128, %c0_129], %97 {strides = array<i32>} : memref<216x778xbf16, #tpu.memory_space<vmem>>, vector<8x778xbf16>,
    %c0_130 = arith.constant 0 : index
    %c112_131 = arith.constant 112 : index
    %99 = vector.load %arg9[%c0_130, %c112_131] : memref<8x1000xbf16, #tpu.memory_space<vmem>>, vector<8x778xbf16>
    %c112_132 = arith.constant 112 : index
    %c0_133 = arith.constant 0 : index
    %100 = vector.load %arg8[%c112_132, %c0_133] : memref<216x778xbf16, #tpu.memory_space<vmem>>, vector<8x778xbf16>
    tpu.vector_store %arg8[%c112_132, %c0_133], %99 {strides = array<i32>} : memref<216x778xbf16, #tpu.memory_space<vmem>>, vector<8x778xbf16>,
    %c0_134 = arith.constant 0 : index
    %c120_135 = arith.constant 120 : index
    %101 = vector.load %arg9[%c0_134, %c120_135] : memref<8x1000xbf16, #tpu.memory_space<vmem>>, vector<8x778xbf16>
    %c120_136 = arith.constant 120 : index
    %c0_137 = arith.constant 0 : index
    %102 = vector.load %arg8[%c120_136, %c0_137] : memref<216x778xbf16, #tpu.memory_space<vmem>>, vector<8x778xbf16>
    tpu.vector_store %arg8[%c120_136, %c0_137], %101 {strides = array<i32>} : memref<216x778xbf16, #tpu.memory_space<vmem>>, vector<8x778xbf16>,
    %c0_138 = arith.constant 0 : index
    %c121_139 = arith.constant 121 : index
    %103 = vector.load %arg9[%c0_138, %c121_139] : memref<8x1000xbf16, #tpu.memory_space<vmem>>, vector<8x778xbf16>
    %c128_140 = arith.constant 128 : index
    %c0_141 = arith.constant 0 : index
    %104 = vector.load %arg8[%c128_140, %c0_141] : memref<216x778xbf16, #tpu.memory_space<vmem>>, vector<8x778xbf16>
    tpu.vector_store %arg8[%c128_140, %c0_141], %103 {strides = array<i32>} : memref<216x778xbf16, #tpu.memory_space<vmem>>, vector<8x778xbf16>,
    %c0_142 = arith.constant 0 : index
    %c122_143 = arith.constant 122 : index
    %105 = vector.load %arg9[%c0_142, %c122_143] : memref<8x1000xbf16, #tpu.memory_space<vmem>>, vector<8x778xbf16>
    %c136_144 = arith.constant 136 : index
    %c0_145 = arith.constant 0 : index
    %106 = vector.load %arg8[%c136_144, %c0_145] : memref<216x778xbf16, #tpu.memory_space<vmem>>, vector<8x778xbf16>
    tpu.vector_store %arg8[%c136_144, %c0_145], %105 {strides = array<i32>} : memref<216x778xbf16, #tpu.memory_space<vmem>>, vector<8x778xbf16>,
    %c0_146 = arith.constant 0 : index
    %c200_147 = arith.constant 200 : index
    %107 = vector.load %arg9[%c0_146, %c200_147] : memref<8x1000xbf16, #tpu.memory_space<vmem>>, vector<8x778xbf16>
    %c144_148 = arith.constant 144 : index
    %c0_149 = arith.constant 0 : index
    %108 = vector.load %arg8[%c144_148, %c0_149] : memref<216x778xbf16, #tpu.memory_space<vmem>>, vector<8x778xbf16>
    tpu.vector_store %arg8[%c144_148, %c0_149], %107 {strides = array<i32>} : memref<216x778xbf16, #tpu.memory_space<vmem>>, vector<8x778xbf16>,
    %c0_150 = arith.constant 0 : index
    %c201_151 = arith.constant 201 : index
    %109 = vector.load %arg9[%c0_150, %c201_151] : memref<8x1000xbf16, #tpu.memory_space<vmem>>, vector<8x778xbf16>
    %c152_152 = arith.constant 152 : index
    %c0_153 = arith.constant 0 : index
    %110 = vector.load %arg8[%c152_152, %c0_153] : memref<216x778xbf16, #tpu.memory_space<vmem>>, vector<8x778xbf16>
    tpu.vector_store %arg8[%c152_152, %c0_153], %109 {strides = array<i32>} : memref<216x778xbf16, #tpu.memory_space<vmem>>, vector<8x778xbf16>,
    %c0_154 = arith.constant 0 : index
    %c202_155 = arith.constant 202 : index
    %111 = vector.load %arg9[%c0_154, %c202_155] : memref<8x1000xbf16, #tpu.memory_space<vmem>>, vector<8x778xbf16>
    %c160_156 = arith.constant 160 : index
    %c0_157 = arith.constant 0 : index
    %112 = vector.load %arg8[%c160_156, %c0_157] : memref<216x778xbf16, #tpu.memory_space<vmem>>, vector<8x778xbf16>
    tpu.vector_store %arg8[%c160_156, %c0_157], %111 {strides = array<i32>} : memref<216x778xbf16, #tpu.memory_space<vmem>>, vector<8x778xbf16>,
    %c0_158 = arith.constant 0 : index
    %c210_159 = arith.constant 210 : index
    %113 = vector.load %arg9[%c0_158, %c210_159] : memref<8x1000xbf16, #tpu.memory_space<vmem>>, vector<8x778xbf16>
    %c168_160 = arith.constant 168 : index
    %c0_161 = arith.constant 0 : index
    %114 = vector.load %arg8[%c168_160, %c0_161] : memref<216x778xbf16, #tpu.memory_space<vmem>>, vector<8x778xbf16>
    tpu.vector_store %arg8[%c168_160, %c0_161], %113 {strides = array<i32>} : memref<216x778xbf16, #tpu.memory_space<vmem>>, vector<8x778xbf16>,
    %c0_162 = arith.constant 0 : index
    %c211_163 = arith.constant 211 : index
    %115 = vector.load %arg9[%c0_162, %c211_163] : memref<8x1000xbf16, #tpu.memory_space<vmem>>, vector<8x778xbf16>
    %c176_164 = arith.constant 176 : index
    %c0_165 = arith.constant 0 : index
    %116 = vector.load %arg8[%c176_164, %c0_165] : memref<216x778xbf16, #tpu.memory_space<vmem>>, vector<8x778xbf16>
    tpu.vector_store %arg8[%c176_164, %c0_165], %115 {strides = array<i32>} : memref<216x778xbf16, #tpu.memory_space<vmem>>, vector<8x778xbf16>,
    %c0_166 = arith.constant 0 : index
    %c212_167 = arith.constant 212 : index
    %117 = vector.load %arg9[%c0_166, %c212_167] : memref<8x1000xbf16, #tpu.memory_space<vmem>>, vector<8x778xbf16>
    %c184_168 = arith.constant 184 : index
    %c0_169 = arith.constant 0 : index
    %118 = vector.load %arg8[%c184_168, %c0_169] : memref<216x778xbf16, #tpu.memory_space<vmem>>, vector<8x778xbf16>
    tpu.vector_store %arg8[%c184_168, %c0_169], %117 {strides = array<i32>} : memref<216x778xbf16, #tpu.memory_space<vmem>>, vector<8x778xbf16>,
    %c0_170 = arith.constant 0 : index
    %c220_171 = arith.constant 220 : index
    %119 = vector.load %arg9[%c0_170, %c220_171] : memref<8x1000xbf16, #tpu.memory_space<vmem>>, vector<8x778xbf16>
    %c192_172 = arith.constant 192 : index
    %c0_173 = arith.constant 0 : index
    %120 = vector.load %arg8[%c192_172, %c0_173] : memref<216x778xbf16, #tpu.memory_space<vmem>>, vector<8x778xbf16>
    tpu.vector_store %arg8[%c192_172, %c0_173], %119 {strides = array<i32>} : memref<216x778xbf16, #tpu.memory_space<vmem>>, vector<8x778xbf16>,
    %c0_174 = arith.constant 0 : index
    %c221_175 = arith.constant 221 : index
    %121 = vector.load %arg9[%c0_174, %c221_175] : memref<8x1000xbf16, #tpu.memory_space<vmem>>, vector<8x778xbf16>
    %c200_176 = arith.constant 200 : index
    %c0_177 = arith.constant 0 : index
    %122 = vector.load %arg8[%c200_176, %c0_177] : memref<216x778xbf16, #tpu.memory_space<vmem>>, vector<8x778xbf16>
    tpu.vector_store %arg8[%c200_176, %c0_177], %121 {strides = array<i32>} : memref<216x778xbf16, #tpu.memory_space<vmem>>, vector<8x778xbf16>,
    %c0_178 = arith.constant 0 : index
    %c222_179 = arith.constant 222 : index
    %123 = vector.load %arg9[%c0_178, %c222_179] : memref<8x1000xbf16, #tpu.memory_space<vmem>>, vector<8x778xbf16>
    %c208_180 = arith.constant 208 : index
    %c0_181 = arith.constant 0 : index
    %124 = vector.load %arg8[%c208_180, %c0_181] : memref<216x778xbf16, #tpu.memory_space<vmem>>, vector<8x778xbf16>
    tpu.vector_store %arg8[%c208_180, %c0_181], %123 {strides = array<i32>} : memref<216x778xbf16, #tpu.memory_space<vmem>>, vector<8x778xbf16>,
    %c0_182 = arith.constant 0 : index
    %c0_183 = arith.constant 0 : index
    %125 = vector.load %arg4[%c0_182, %c0_183] : memref<8x216xbf16, #tpu.memory_space<vmem>>, vector<8x216xbf16>
    %c0_184 = arith.constant 0 : index
    %c0_185 = arith.constant 0 : index
    %126 = vector.load %arg8[%c0_184, %c0_185] : memref<216x778xbf16, #tpu.memory_space<vmem>>, vector<216x778xbf16>
    %cst_186 = arith.constant dense<0.000000e+00> : vector<8x778xf32>
    %127 = tpu.matmul %125, %126, %cst_186 {dimension_numbers = #tpu.dot_dimension_numbers<[1], [0], [0], [1], [0, 0, 1, 1], [], []>} : vector<8x216xbf16>, vector<216x778xbf16>, vector<8x778xf32> -> vector<8x778xf32>
    %c0_187 = arith.constant 0 : index
    %c0_188 = arith.constant 0 : index
    %128 = vector.load %arg5[%c0_187, %c0_188] : memref<8x1xf32, #tpu.memory_space<vmem>>, vector<8x1xf32>
    %129 = vector.broadcast %128 : vector<8x1xf32> to vector<8x778xf32>
    %130 = arith.addf %127, %129 : vector<8x778xf32>
    %c0_189 = arith.constant 0 : index
    %c0_190 = arith.constant 0 : index
    %c111_191 = arith.constant 111 : index
    %131 = vector.load %arg1[%c0_189, %c0_190, %c111_191] : memref<1x8x1000xf32, #tpu.memory_space<vmem>>, vector<1x8x778xf32>
    %132 = vector.shape_cast %131 : vector<1x8x778xf32> to vector<8x778xf32>
    %133 = arith.addf %130, %132 : vector<8x778xf32>
    %cst_192 = arith.constant 0.000000e+00 : f32
    %134 = vector.broadcast %cst_192 : f32 to vector<8x778xf32>
    %135 = arith.maximumf %133, %134 : vector<8x778xf32>
    %c0_193 = arith.constant 0 : index
    %c0_194 = arith.constant 0 : index
    %c111_195 = arith.constant 111 : index
    %136 = vector.load %arg7[%c0_193, %c0_194, %c111_195] : memref<1x8x1000xf32, #tpu.memory_space<vmem>>, vector<1x8x778xf32>
    %137 = vector.shape_cast %136 : vector<1x8x778xf32> to vector<8x778xf32>
    %138 = vector.shape_cast %135 : vector<8x778xf32> to vector<1x8x778xf32>
    tpu.vector_store %arg7[%c0_193, %c0_194, %c111_195], %138 {strides = array<i32>} : memref<1x8x1000xf32, #tpu.memory_space<vmem>>, vector<1x8x778xf32>,
    return
  }
  func.func @transform_0(%arg0: i32) -> (i32, i32, i32) {
    %c0_i32 = arith.constant 0 : i32
    %c0_i32_0 = arith.constant 0 : i32
    %c0_i32_1 = arith.constant 0 : i32
    return %arg0, %c0_i32, %c0_i32_0 : i32, i32, i32
  }
  func.func @transform_1(%arg0: i32) -> (i32, i32) {
    %c0_i32 = arith.constant 0 : i32
    %c0_i32_0 = arith.constant 0 : i32
    %c0_i32_1 = arith.constant 0 : i32
    return %c0_i32, %c0_i32_0 : i32, i32
  }
  func.func @transform_2(%arg0: i32) -> (i32, i32) {
    %c0_i32 = arith.constant 0 : i32
    %c0_i32_0 = arith.constant 0 : i32
    %c0_i32_1 = arith.constant 0 : i32
    return %c0_i32, %c0_i32_0 : i32, i32
  }
  func.func @transform_3(%arg0: i32) -> (i32, i32) {
    %c0_i32 = arith.constant 0 : i32
    %c0_i32_0 = arith.constant 0 : i32
    %c0_i32_1 = arith.constant 0 : i32
    return %c0_i32, %c0_i32_0 : i32, i32
  }
  func.func @transform_4(%arg0: i32) -> (i32, i32) {
    %c0_i32 = arith.constant 0 : i32
    %c0_i32_0 = arith.constant 0 : i32
    %c0_i32_1 = arith.constant 0 : i32
    return %c0_i32, %c0_i32_0 : i32, i32
  }
  func.func @transform_5(%arg0: i32) -> (i32, i32) {
    %c0_i32 = arith.constant 0 : i32
    %c0_i32_0 = arith.constant 0 : i32
    %c0_i32_1 = arith.constant 0 : i32
    return %c0_i32, %c0_i32_0 : i32, i32
  }
  func.func @transform_6(%arg0: i32) -> (i32, i32, i32) {
    %c0_i32 = arith.constant 0 : i32
    %c0_i32_0 = arith.constant 0 : i32
    %c0_i32_1 = arith.constant 0 : i32
    return %arg0, %c0_i32, %c0_i32_0 : i32, i32, i32
  }
}

</mosaic_0001>

<llo_original>
// kernel: basic_block_forward.1
$region0: #{basic_block_forward.1}
  #allocation0 [shape = 'u32[]', space=smem, size = 0x4, offset = 0x4, fixed_abs, tag = 'smem constant byte address 0x4 - core index']
  #allocation1 [shape = 'u32[144,128]{1,0:T(1,128)}', space=vmem, size = 0x12000, scoped, tag = 'internal scratch']
  #allocation2 [shape = 'bf16[216,778]{1,0:T(8,128)(2,1)}', space=vmem, size = 0x5e800, scoped, tag = 'scratch operand']
  #allocation3 [shape = 'bf16[8,1000]{1,0:T(8,128)(2,1)}', space=vmem, size = 0x4000, scoped, tag = 'scratch operand']
  %s0 = inlined_call_operand.vmem [shape: f32[2,8,1000], index: 0, kind: input, shape index: {}]
  %s1 = inlined_call_operand.vmem [shape: bf16[8,216], index: 1, kind: input, shape index: {}]
  %s2 = inlined_call_operand.vmem [shape: f32[8,1], index: 2, kind: input, shape index: {}]
  %s3 = inlined_call_operand.vmem [shape: bf16[8,216], index: 3, kind: input, shape index: {}]
  %s4 = inlined_call_operand.vmem [shape: f32[8,1], index: 4, kind: input, shape index: {}]
  %s5 = inlined_call_operand.vmem [shape: f32[1,778], index: 5, kind: input, shape index: {}]
  %s6 = inlined_call_operand.vmem [shape: f32[2,8,1000], index: 6, kind: output, shape index: {}]
  %s7 = sld [smem:[#allocation0]]
  $region57: #{basic_block_forward.1} parent=0
    _
  %s9 = ssub.s32 1, %s7
  %s10 = scalar_select 0, %s9, %s7
  loop: start=0, step=1, limit=4
  $region2: #{basic_block_forward.1} parent=0 // loop_pre_header
    _
  $region3: #{basic_block_forward.1} parent=0 // loop_header
    %s12 = sphi 0, %s16
    %p13 = scmp.ge.s32.totalorder %s12, 4
    %s22 = sphi 0, %s24
    %s25 = sphi 0, %s22
    %s26 = sphi 0, %s25
    %s42 = sphi 0, %s26
    %s46 = sphi 0, %s46
    %s48 = sphi 0, %s46
    %s49 = sphi 0, %s48
    %s63 = sphi 0, %s49
    %s67 = sphi 0, %s67
    %s69 = sphi 0, %s67
    %s70 = sphi 0, %s69
    %s84 = sphi 0, %s70
    %s88 = sphi 0, %s88
    %s90 = sphi 0, %s88
    %s91 = sphi 0, %s90
    %s105 = sphi 0, %s91
    %s109 = sphi 0, %s109
    %s111 = sphi 0, %s109
    %s112 = sphi 0, %s111
    %s126 = sphi 0, %s112
    %s130 = sphi 0, %s130
    %s132 = sphi 0, %s130
    %s133 = sphi 0, %s132
    %s147 = sphi 0, %s133
    %s153 = sphi 0, %s155
    %s156 = sphi 0, %s153
    %s157 = sphi 0, %s156
    %s173 = sphi 0, %s157
  $region4: #{basic_block_forward.1} parent=0 // loop_header_branch
    %15 = sbr.rel (%p13) target = $region8
  $region5: #{basic_block_forward.1} parent=0 // loop_body
    %s17 = ssub.s32 %s12, 1
    %s18 = ssub.s32 %s12, 2
    %s19 = sadd.s32 %s12, 1
    %s20 = ssub.s32 %s12, %s19
    %p21 = scmp.eq.s32.totalorder %s20, 0
    %s23 = sadd.s32 %s22, 1
    %s24 = scalar_select %p21, %s22, %s23
    %p27 = pneg %p21
    %p28 = scmp.eq.s32.totalorder %s12, 1
    %p29 = por %p27, %p28
    %p30 = scmp.ne.s32.totalorder %s22, %s25
    %p31 = scmp.eq.s32.totalorder %s12, 0
    %p32 = por %p30, %p31
    %p33 = scmp.ne.s32.totalorder %s22, %s25
    %p34 = scmp.eq.s32.totalorder %s17, 1
    %p35 = por %p33, %p34
    %p36 = scmp.ne.s32.totalorder %s25, %s26
    %p37 = scmp.eq.s32.totalorder %s17, 0
    %p38 = por %p36, %p37
    %p39 = scmp.ne.s32.totalorder %s25, %s26
    %p40 = scmp.eq.s32.totalorder %s18, 1
    %p41 = por %p39, %p40
    %p43 = scmp.ne.s32.totalorder %s26, %s42
    %p44 = scmp.eq.s32.totalorder %s18, 0
    %p45 = por %p43, %p44
    %s47 = sadd.s32 %s46, 1
    %p50 = scmp.eq.s32.totalorder %s12, 1
    %p51 = scmp.ne.s32.totalorder %s46, %s48
    %p52 = scmp.eq.s32.totalorder %s12, 0
    %p53 = por %p51, %p52
    %p54 = scmp.ne.s32.totalorder %s46, %s48
    %p55 = scmp.eq.s32.totalorder %s17, 1
    %p56 = por %p54, %p55
    %p57 = scmp.ne.s32.totalorder %s48, %s49
    %p58 = scmp.eq.s32.totalorder %s17, 0
    %p59 = por %p57, %p58
    %p60 = scmp.ne.s32.totalorder %s48, %s49
    %p61 = scmp.eq.s32.totalorder %s18, 1
    %p62 = por %p60, %p61
    %p64 = scmp.ne.s32.totalorder %s49, %s63
    %p65 = scmp.eq.s32.totalorder %s18, 0
    %p66 = por %p64, %p65
    %s68 = sadd.s32 %s67, 1
    %p71 = scmp.eq.s32.totalorder %s12, 1
    %p72 = scmp.ne.s32.totalorder %s67, %s69
    %p73 = scmp.eq.s32.totalorder %s12, 0
    %p74 = por %p72, %p73
    %p75 = scmp.ne.s32.totalorder %s67, %s69
    %p76 = scmp.eq.s32.totalorder %s17, 1
    %p77 = por %p75, %p76
    %p78 = scmp.ne.s32.totalorder %s69, %s70
    %p79 = scmp.eq.s32.totalorder %s17, 0
    %p80 = por %p78, %p79
    %p81 = scmp.ne.s32.totalorder %s69, %s70
    %p82 = scmp.eq.s32.totalorder %s18, 1
    %p83 = por %p81, %p82
    %p85 = scmp.ne.s32.totalorder %s70, %s84
    %p86 = scmp.eq.s32.totalorder %s18, 0
    %p87 = por %p85, %p86
    %s89 = sadd.s32 %s88, 1
    %p92 = scmp.eq.s32.totalorder %s12, 1
    %p93 = scmp.ne.s32.totalorder %s88, %s90
    %p94 = scmp.eq.s32.totalorder %s12, 0
    %p95 = por %p93, %p94
    %p96 = scmp.ne.s32.totalorder %s88, %s90
    %p97 = scmp.eq.s32.totalorder %s17, 1
    %p98 = por %p96, %p97
    %p99 = scmp.ne.s32.totalorder %s90, %s91
    %p100 = scmp.eq.s32.totalorder %s17, 0
    %p101 = por %p99, %p100
    %p102 = scmp.ne.s32.totalorder %s90, %s91
    %p103 = scmp.eq.s32.totalorder %s18, 1
    %p104 = por %p102, %p103
    %p106 = scmp.ne.s32.totalorder %s91, %s105
    %p107 = scmp.eq.s32.totalorder %s18, 0
    %p108 = por %p106, %p107
    %s110 = sadd.s32 %s109, 1
    %p113 = scmp.eq.s32.totalorder %s12, 1
    %p114 = scmp.ne.s32.totalorder %s109, %s111
    %p115 = scmp.eq.s32.totalorder %s12, 0
    %p116 = por %p114, %p115
    %p117 = scmp.ne.s32.totalorder %s109, %s111
    %p118 = scmp.eq.s32.totalorder %s17, 1
    %p119 = por %p117, %p118
    %p120 = scmp.ne.s32.totalorder %s111, %s112
    %p121 = scmp.eq.s32.totalorder %s17, 0
    %p122 = por %p120, %p121
    %p123 = scmp.ne.s32.totalorder %s111, %s112
    %p124 = scmp.eq.s32.totalorder %s18, 1
    %p125 = por %p123, %p124
    %p127 = scmp.ne.s32.totalorder %s112, %s126
    %p128 = scmp.eq.s32.totalorder %s18, 0
    %p129 = por %p127, %p128
    %s131 = sadd.s32 %s130, 1
    %p134 = scmp.eq.s32.totalorder %s12, 1
    %p135 = scmp.ne.s32.totalorder %s130, %s132
    %p136 = scmp.eq.s32.totalorder %s12, 0
    %p137 = por %p135, %p136
    %p138 = scmp.ne.s32.totalorder %s130, %s132
    %p139 = scmp.eq.s32.totalorder %s17, 1
    %p140 = por %p138, %p139
    %p141 = scmp.ne.s32.totalorder %s132, %s133
    %p142 = scmp.eq.s32.totalorder %s17, 0
    %p143 = por %p141, %p142
    %p144 = scmp.ne.s32.totalorder %s132, %s133
    %p145 = scmp.eq.s32.totalorder %s18, 1
    %p146 = por %p144, %p145
    %p148 = scmp.ne.s32.totalorder %s133, %s147
    %p149 = scmp.eq.s32.totalorder %s18, 0
    %p150 = por %p148, %p149
    %s151 = ssub.s32 %s12, %s19
    %p152 = scmp.eq.s32.totalorder %s151, 0
    %s154 = sadd.s32 %s153, 1
    %s155 = scalar_select %p152, %s153, %s154
    %p158 = pneg %p152
    %p159 = scmp.eq.s32.totalorder %s12, 1
    %p160 = por %p158, %p159
    %p161 = scmp.ne.s32.totalorder %s153, %s156
    %p162 = scmp.eq.s32.totalorder %s12, 0
    %p163 = por %p161, %p162
    %p164 = scmp.ne.s32.totalorder %s153, %s156
    %p165 = scmp.eq.s32.totalorder %s17, 1
    %p166 = por %p164, %p165
    %p167 = scmp.ne.s32.totalorder %s156, %s157
    %p168 = scmp.eq.s32.totalorder %s17, 0
    %p169 = por %p167, %p168
    %p170 = scmp.ne.s32.totalorder %s156, %s157
    %p171 = scmp.eq.s32.totalorder %s18, 1
    %p172 = por %p170, %p171
    %p174 = scmp.ne.s32.totalorder %s157, %s173
    %p175 = scmp.eq.s32.totalorder %s18, 0
    %p176 = por %p174, %p175
    %p177 = scmp.le.s32.totalorder 1, %s12
    %p178 = scmp.lt.s32.totalorder %s12, 3
    %p179 = pnand %p177, %p178
    %p180 = pneg %p179
    // Predicated region
    $region9: #{basic_block_forward.1} parent=5 // pred_check
      _
    $region10: #{basic_block_forward.1} parent=5 // pred_check_branch
      %182 = sbr.rel (%p179) target = $region12
    $region11: #{basic_block_forward.1} parent=5 // pred_region
      %s183 = ssub.s32 %s12, 1
      // Predicated region
      $region13: #{basic_block_forward.1} parent=11 // pred_check
        %p184 = pneg %p59
      $region14: #{basic_block_forward.1} parent=11 // pred_check_branch
        %186 = sbr.rel (%p184) target = $region16
      $region15: #{basic_block_forward.1} parent=11 // pred_region
        _
      $region16: #{basic_block_forward.1} parent=11 // pred_fallthru
        _
      // Predicated region
      $region17: #{basic_block_forward.1} parent=11 // pred_check
        %p187 = pneg %p80
      $region18: #{basic_block_forward.1} parent=11 // pred_check_branch
        %189 = sbr.rel (%p187) target = $region20
      $region19: #{basic_block_forward.1} parent=11 // pred_region
        _
      $region20: #{basic_block_forward.1} parent=11 // pred_fallthru
        _
      // Predicated region
      $region21: #{basic_block_forward.1} parent=11 // pred_check
        %p190 = pneg %p101
      $region22: #{basic_block_forward.1} parent=11 // pred_check_branch
        %192 = sbr.rel (%p190) target = $region24
      $region23: #{basic_block_forward.1} parent=11 // pred_region
        _
      $region24: #{basic_block_forward.1} parent=11 // pred_fallthru
        _
      // Predicated region
      $region25: #{basic_block_forward.1} parent=11 // pred_check
        %p193 = pneg %p122
      $region26: #{basic_block_forward.1} parent=11 // pred_check_branch
        %195 = sbr.rel (%p193) target = $region28
      $region27: #{basic_block_forward.1} parent=11 // pred_region
        _
      $region28: #{basic_block_forward.1} parent=11 // pred_fallthru
        _
      // Predicated region
      $region29: #{basic_block_forward.1} parent=11 // pred_check
        %p196 = pneg %p143
      $region30: #{basic_block_forward.1} parent=11 // pred_check_branch
        %198 = sbr.rel (%p196) target = $region32
      $region31: #{basic_block_forward.1} parent=11 // pred_region
        _
      $region32: #{basic_block_forward.1} parent=11 // pred_fallthru
        _
    $region12: #{basic_block_forward.1} parent=5 // pred_fallthru
      _
    %p199 = scmp.lt.s32.totalorder %s12, 2
    // Predicated region
    $region33: #{basic_block_forward.1} parent=5 // pred_check
      %p200 = pneg %p199
    $region34: #{basic_block_forward.1} parent=5 // pred_check_branch
      %202 = sbr.rel (%p200) target = $region36
    $region35: #{basic_block_forward.1} parent=5 // pred_region
      // Predicated region
      $region37: #{basic_block_forward.1} parent=35 // pred_check
        %p203 = pneg %p32
      $region38: #{basic_block_forward.1} parent=35 // pred_check_branch
        %205 = sbr.rel (%p203) target = $region40
      $region39: #{basic_block_forward.1} parent=35 // pred_region
        %p206 = scmp.lt.s32.totalorder %s12, 1
        %s207 = scalar_select %p206, %s12, 1
        %s208 = smul.addr %s207, 8
        %s209 = smul.addr %s208, 8
        %s210 = scalar_lea.vmem %s0, %s209
      $region40: #{basic_block_forward.1} parent=35 // pred_fallthru
        _
    $region36: #{basic_block_forward.1} parent=5 // pred_fallthru
      _
    %p211 = scmp.le.s32.totalorder 1, %s12
    %p212 = scmp.lt.s32.totalorder %s12, 3
    %p213 = pnand %p211, %p212
    %p214 = pneg %p213
    // Predicated region
    $region41: #{basic_block_forward.1} parent=5 // pred_check
      _
    $region42: #{basic_block_forward.1} parent=5 // pred_check_branch
      %216 = sbr.rel (%p213) target = $region44
    $region43: #{basic_block_forward.1} parent=5 // pred_region
      %s217 = ssub.s32 %s12, 1
      %p218 = scmp.lt.s32.totalorder %s17, 1
      %s219 = scalar_select %p218, %s17, 1
      %s220 = smul.addr %s219, 8
      %s221 = smul.addr %s220, 8
      %s222 = scalar_lea.vmem %s0, %s221
      %p223 = pneg %p38
      %p224 = pneg %p35
      %p225 = pneg %p59
      %p226 = pneg %p56
      %p227 = pneg %p80
      %p228 = pneg %p77
      %p229 = pneg %p101
      %p230 = pneg %p98
      %p231 = pneg %p122
      %p232 = pneg %p119
      %p233 = pneg %p143
      %p234 = pneg %p140
      %p235 = pneg %p169
      %p236 = pneg %p166
      %p237 = scmp.lt.s32.totalorder %s17, 1
      %s238 = scalar_select %p237, %s17, 1
      %s239 = smul.addr %s238, 8
      %s240 = smul.addr %s239, 8
      %s241 = scalar_lea.vmem %s6, %s240
      %p242 = scmp.lt.s32.totalorder %s17, 1
      %s243 = scalar_select %p242, %s17, 1
      %s244 = smul.addr %s243, 8
      %s245 = smul.addr %s244, 8
      %s246 = scalar_lea.vmem %s0, %s245
      %p247 = scmp.lt.s32.totalorder %s17, 1
      %s248 = scalar_select %p247, %s17, 1
      %s249 = smul.addr %s248, 8
      %s250 = smul.addr %s249, 8
      %s251 = scalar_lea.vmem %s6, %s250
      %v253 = vld [vmem:[%s246] sm:$0xff]
      %v254 = vld [vmem:[%s246 + $0x8] sm:$0xff]
      %v255 = vld [vmem:[%s246 + $0x10] sm:$0xff]
      %v256 = vld [vmem:[%s246 + $0x18] sm:$0xff]
      %v257 = vld [vmem:[%s246 + $0x20] sm:$0xff]
      %v258 = vld [vmem:[%s246 + $0x28] sm:$0xff]
      %v259 = vld [vmem:[%s246 + $0x30] sm:$0xff]
      %v260 = vld [vmem:[%s246 + $0x38] sm:$0xff]
      %v261 = vpack.c.bf16 %v253, %v253
      %v262 = vpack.c.bf16 %v254, %v254
      %v263 = vpack.c.bf16 %v255, %v255
      %v264 = vpack.c.bf16 %v256, %v256
      %v265 = vpack.c.bf16 %v257, %v257
      %v266 = vpack.c.bf16 %v258, %v258
      %v267 = vpack.c.bf16 %v259, %v259
      %v268 = vpack.c.bf16 %v260, %v260
      %v277 = vunpack.c.l.b16 %v261
      %v278 = vunpack.c.l.b16 %v262
      %v279 = vunpack.c.l.b16 %v263
      %v280 = vunpack.c.l.b16 %v264
      %v281 = vunpack.c.l.b16 %v265
      %v282 = vunpack.c.l.b16 %v266
      %v283 = vunpack.c.l.b16 %v267
      %v284 = vunpack.c.l.b16 %v268
      %v285 = vpack.c.b16 %v278, %v277
      %v286 = vpack.c.b16 %v280, %v279
      %v287 = vpack.c.b16 %v282, %v281
      %v288 = vpack.c.b16 %v284, %v283
      %293 = vst [vmem:[#allocation3] sm:$0xff] %v285
      %294 = vst [vmem:[#allocation3 + $0x8] sm:$0xff] %v286
      %295 = vst [vmem:[#allocation3 + $0x10] sm:$0xff] %v287
      %vm296 = vcmask 1043456
      %vm297 = vcmask 850948
      %vm298 = vmor %vm297, %vm296
      %299 = vst.msk [vmem:[#allocation3 + $0x18] sm:$0xff] %vm298, %v288
      %v300 = vld [vmem:[#allocation3] sm:$0xff]
      %v301 = vld [vmem:[#allocation3 + $0x8] sm:$0xff]
      %v302 = vld [vmem:[#allocation3 + $0x10] sm:$0xff]
      %v303 = vld [vmem:[#allocation3 + $0x18] sm:$0xf]
      %304 = vst [vmem:[#allocation2] sm:$0xff] %v300
      %305 = vst [vmem:[#allocation2 + $0x8] sm:$0xff] %v301
      %306 = vst [vmem:[#allocation2 + $0x10] sm:$0xff] %v302
      %vm307 = vcmask 76800
      %308 = vst.msk [vmem:[#allocation2 + $0x18] sm:$0xf] %vm307, %v303
      %v309 = vld [vmem:[#allocation3] sm:$0xff]
      %v310 = vld [vmem:[#allocation3 + $0x8] sm:$0xff]
      %v311 = vld [vmem:[#allocation3 + $0x10] sm:$0xff]
      %v312 = vld [vmem:[#allocation3 + $0x18] sm:$0xf]
      %317 = vrot.lane.b32.xlu0 %v309, 127
      %v318 = vpop.permute.xlu0 %317
      %319 = vrot.lane.b32.xlu0 %v310, 127
      %v320 = vpop.permute.xlu0 %319
      %321 = vrot.lane.b32.xlu0 %v311, 127
      %v322 = vpop.permute.xlu0 %321
      %323 = vrot.lane.b32.xlu0 %v312, 127
      %v324 = vpop.permute.xlu0 %323
      %v325 = vrot.slane %v318, 4
      %v326 = vrot.slane %v320, 4
      %v327 = vrot.slane %v322, 4
      %v328 = vrot.slane %v324, 4
      %vm329 = vcmask 1043456
      %v330 = vsel %vm329, %v325, %v326
      %vm331 = vcmask 1039360
      %v332 = vsel %vm331, %v318, %v330
      %v333 = vsel %vm329, %v326, %v327
      %v334 = vsel %vm331, %v320, %v333
      %v335 = vsel %vm329, %v327, %v328
      %v336 = vsel %vm331, %v322, %v335
      %341 = vst [vmem:[#allocation2 + $0x1c] sm:$0xff] %v332
      %342 = vst [vmem:[#allocation2 + $0x24] sm:$0xff] %v334
      %343 = vst [vmem:[#allocation2 + $0x2c] sm:$0xff] %v336
      %344 = vst.msk [vmem:[#allocation2 + $0x34] sm:$0xf] %vm307, %v324
      %v345 = vld [vmem:[#allocation3] sm:$0xff]
      %v346 = vld [vmem:[#allocation3 + $0x8] sm:$0xff]
      %v347 = vld [vmem:[#allocation3 + $0x10] sm:$0xff]
      %v348 = vld [vmem:[#allocation3 + $0x18] sm:$0xf]
      %353 = vrot.lane.b32.xlu0 %v345, 126
      %v354 = vpop.permute.xlu0 %353
      %355 = vrot.lane.b32.xlu0 %v346, 126
      %v356 = vpop.permute.xlu0 %355
      %357 = vrot.lane.b32.xlu0 %v347, 126
      %v358 = vpop.permute.xlu0 %357
      %359 = vrot.lane.b32.xlu0 %v348, 126
      %v360 = vpop.permute.xlu0 %359
      %v361 = vrot.slane %v354, 4
      %v362 = vrot.slane %v356, 4
      %v363 = vrot.slane %v358, 4
      %v364 = vrot.slane %v360, 4
      %v365 = vsel %vm329, %v361, %v362
      %vm366 = vcmask 1031168
      %v367 = vsel %vm366, %v354, %v365
      %v368 = vsel %vm329, %v362, %v363
      %v369 = vsel %vm366, %v356, %v368
      %v370 = vsel %vm329, %v363, %v364
      %v371 = vsel %vm366, %v358, %v370
      %376 = vst [vmem:[#allocation2 + $0x38] sm:$0xff] %v367
      %377 = vst [vmem:[#allocation2 + $0x40] sm:$0xff] %v369
      %378 = vst [vmem:[#allocation2 + $0x48] sm:$0xff] %v371
      %379 = vst.msk [vmem:[#allocation2 + $0x50] sm:$0xf] %vm307, %v360
      %v380 = vld [vmem:[#allocation3] sm:$0xff]
      %v381 = vld [vmem:[#allocation3 + $0x8] sm:$0xff]
      %v382 = vld [vmem:[#allocation3 + $0x10] sm:$0xff]
      %v383 = vld [vmem:[#allocation3 + $0x18] sm:$0xf]
      %388 = vrot.lane.b32.xlu0 %v380, 118
      %v389 = vpop.permute.xlu0 %388
      %390 = vrot.lane.b32.xlu0 %v381, 118
      %v391 = vpop.permute.xlu0 %390
      %392 = vrot.lane.b32.xlu0 %v382, 118
      %v393 = vpop.permute.xlu0 %392
      %394 = vrot.lane.b32.xlu0 %v383, 118
      %v395 = vpop.permute.xlu0 %394
      %v396 = vrot.slane %v389, 4
      %v397 = vrot.slane %v391, 4
      %v398 = vrot.slane %v393, 4
      %v399 = vrot.slane %v395, 4
      %v400 = vsel %vm329, %v396, %v397
      %vm401 = vcmask 965632
      %v402 = vsel %vm401, %v389, %v400
      %v403 = vsel %vm329, %v397, %v398
      %v404 = vsel %vm401, %v391, %v403
      %v405 = vsel %vm329, %v398, %v399
      %v406 = vsel %vm401, %v393, %v405
      %411 = vst [vmem:[#allocation2 + $0x54] sm:$0xff] %v402
      %412 = vst [vmem:[#allocation2 + $0x5c] sm:$0xff] %v404
      %413 = vst [vmem:[#allocation2 + $0x64] sm:$0xff] %v406
      %414 = vst.msk [vmem:[#allocation2 + $0x6c] sm:$0xf] %vm307, %v395
      %v415 = vld [vmem:[#allocation3] sm:$0xff]
      %v416 = vld [vmem:[#allocation3 + $0x8] sm:$0xff]
      %v417 = vld [vmem:[#allocation3 + $0x10] sm:$0xff]
      %v418 = vld [vmem:[#allocation3 + $0x18] sm:$0xf]
      %423 = vrot.lane.b32.xlu0 %v415, 117
      %v424 = vpop.permute.xlu0 %423
      %425 = vrot.lane.b32.xlu0 %v416, 117
      %v426 = vpop.permute.xlu0 %425
      %427 = vrot.lane.b32.xlu0 %v417, 117
      %v428 = vpop.permute.xlu0 %427
      %429 = vrot.lane.b32.xlu0 %v418, 117
      %v430 = vpop.permute.xlu0 %429
      %v431 = vrot.slane %v424, 4
      %v432 = vrot.slane %v426, 4
      %v433 = vrot.slane %v428, 4
      %v434 = vrot.slane %v430, 4
      %v435 = vsel %vm329, %v431, %v432
      %vm436 = vcmask 957440
      %v437 = vsel %vm436, %v424, %v435
      %v438 = vsel %vm329, %v432, %v433
      %v439 = vsel %vm436, %v426, %v438
      %v440 = vsel %vm329, %v433, %v434
      %v441 = vsel %vm436, %v428, %v440
      %446 = vst [vmem:[#allocation2 + $0x70] sm:$0xff] %v437
      %447 = vst [vmem:[#allocation2 + $0x78] sm:$0xff] %v439
      %448 = vst [vmem:[#allocation2 + $0x80] sm:$0xff] %v441
      %449 = vst.msk [vmem:[#allocation2 + $0x88] sm:$0xf] %vm307, %v430
      %v450 = vld [vmem:[#allocation3] sm:$0xff]
      %v451 = vld [vmem:[#allocation3 + $0x8] sm:$0xff]
      %v452 = vld [vmem:[#allocation3 + $0x10] sm:$0xff]
      %v453 = vld [vmem:[#allocation3 + $0x18] sm:$0xf]
      %458 = vrot.lane.b32.xlu0 %v450, 116
      %v459 = vpop.permute.xlu0 %458
      %460 = vrot.lane.b32.xlu0 %v451, 116
      %v461 = vpop.permute.xlu0 %460
      %462 = vrot.lane.b32.xlu0 %v452, 116
      %v463 = vpop.permute.xlu0 %462
      %464 = vrot.lane.b32.xlu0 %v453, 116
      %v465 = vpop.permute.xlu0 %464
      %v466 = vrot.slane %v459, 4
      %v467 = vrot.slane %v461, 4
      %v468 = vrot.slane %v463, 4
      %v469 = vrot.slane %v465, 4
      %v470 = vsel %vm329, %v466, %v467
      %vm471 = vcmask 949248
      %v472 = vsel %vm471, %v459, %v470
      %v473 = vsel %vm329, %v467, %v468
      %v474 = vsel %vm471, %v461, %v473
      %v475 = vsel %vm329, %v468, %v469
      %v476 = vsel %vm471, %v463, %v475
      %481 = vst [vmem:[#allocation2 + $0x8c] sm:$0xff] %v472
      %482 = vst [vmem:[#allocation2 + $0x94] sm:$0xff] %v474
      %483 = vst [vmem:[#allocation2 + $0x9c] sm:$0xff] %v476
      %484 = vst.msk [vmem:[#allocation2 + $0xa4] sm:$0xf] %vm307, %v465
      %v485 = vld [vmem:[#allocation3] sm:$0xff]
      %v486 = vld [vmem:[#allocation3 + $0x8] sm:$0xff]
      %v487 = vld [vmem:[#allocation3 + $0x10] sm:$0xff]
      %v488 = vld [vmem:[#allocation3 + $0x18] sm:$0xf]
      %493 = vrot.lane.b32.xlu0 %v485, 108
      %v494 = vpop.permute.xlu0 %493
      %495 = vrot.lane.b32.xlu0 %v486, 108
      %v496 = vpop.permute.xlu0 %495
      %497 = vrot.lane.b32.xlu0 %v487, 108
      %v498 = vpop.permute.xlu0 %497
      %499 = vrot.lane.b32.xlu0 %v488, 108
      %v500 = vpop.permute.xlu0 %499
      %v501 = vrot.slane %v494, 4
      %v502 = vrot.slane %v496, 4
      %v503 = vrot.slane %v498, 4
      %v504 = vrot.slane %v500, 4
      %v505 = vsel %vm329, %v501, %v502
      %vm506 = vcmask 883712
      %v507 = vsel %vm506, %v494, %v505
      %v508 = vsel %vm329, %v502, %v503
      %v509 = vsel %vm506, %v496, %v508
      %v510 = vsel %vm329, %v503, %v504
      %v511 = vsel %vm506, %v498, %v510
      %516 = vst [vmem:[#allocation2 + $0xa8] sm:$0xff] %v507
      %517 = vst [vmem:[#allocation2 + $0xb0] sm:$0xff] %v509
      %518 = vst [vmem:[#allocation2 + $0xb8] sm:$0xff] %v511
      %519 = vst.msk [vmem:[#allocation2 + $0xc0] sm:$0xf] %vm307, %v500
      %v520 = vld [vmem:[#allocation3] sm:$0xff]
      %v521 = vld [vmem:[#allocation3 + $0x8] sm:$0xff]
      %v522 = vld [vmem:[#allocation3 + $0x10] sm:$0xff]
      %v523 = vld [vmem:[#allocation3 + $0x18] sm:$0xf]
      %528 = vrot.lane.b32.xlu0 %v520, 107
      %v529 = vpop.permute.xlu0 %528
      %530 = vrot.lane.b32.xlu0 %v521, 107
      %v531 = vpop.permute.xlu0 %530
      %532 = vrot.lane.b32.xlu0 %v522, 107
      %v533 = vpop.permute.xlu0 %532
      %534 = vrot.lane.b32.xlu0 %v523, 107
      %v535 = vpop.permute.xlu0 %534
      %v536 = vrot.slane %v529, 4
      %v537 = vrot.slane %v531, 4
      %v538 = vrot.slane %v533, 4
      %v539 = vrot.slane %v535, 4
      %v540 = vsel %vm329, %v536, %v537
      %vm541 = vcmask 875520
      %v542 = vsel %vm541, %v529, %v540
      %v543 = vsel %vm329, %v537, %v538
      %v544 = vsel %vm541, %v531, %v543
      %v545 = vsel %vm329, %v538, %v539
      %v546 = vsel %vm541, %v533, %v545
      %551 = vst [vmem:[#allocation2 + $0xc4] sm:$0xff] %v542
      %552 = vst [vmem:[#allocation2 + $0xcc] sm:$0xff] %v544
      %553 = vst [vmem:[#allocation2 + $0xd4] sm:$0xff] %v546
      %554 = vst.msk [vmem:[#allocation2 + $0xdc] sm:$0xf] %vm307, %v535
      %v555 = vld [vmem:[#allocation3] sm:$0xff]
      %v556 = vld [vmem:[#allocation3 + $0x8] sm:$0xff]
      %v557 = vld [vmem:[#allocation3 + $0x10] sm:$0xff]
      %v558 = vld [vmem:[#allocation3 + $0x18] sm:$0xf]
      %563 = vrot.lane.b32.xlu0 %v555, 106
      %v564 = vpop.permute.xlu0 %563
      %565 = vrot.lane.b32.xlu0 %v556, 106
      %v566 = vpop.permute.xlu0 %565
      %567 = vrot.lane.b32.xlu0 %v557, 106
      %v568 = vpop.permute.xlu0 %567
      %569 = vrot.lane.b32.xlu0 %v558, 106
      %v570 = vpop.permute.xlu0 %569
      %v571 = vrot.slane %v564, 4
      %v572 = vrot.slane %v566, 4
      %v573 = vrot.slane %v568, 4
      %v574 = vrot.slane %v570, 4
      %v575 = vsel %vm329, %v571, %v572
      %vm576 = vcmask 867328
      %v577 = vsel %vm576, %v564, %v575
      %v578 = vsel %vm329, %v572, %v573
      %v579 = vsel %vm576, %v566, %v578
      %v580 = vsel %vm329, %v573, %v574
      %v581 = vsel %vm576, %v568, %v580
      %586 = vst [vmem:[#allocation2 + $0xe0] sm:$0xff] %v577
      %587 = vst [vmem:[#allocation2 + $0xe8] sm:$0xff] %v579
      %588 = vst [vmem:[#allocation2 + $0xf0] sm:$0xff] %v581
      %589 = vst.msk [vmem:[#allocation2 + $0xf8] sm:$0xf] %vm307, %v570
      %v590 = vld [vmem:[#allocation3] sm:$0xff]
      %v591 = vld [vmem:[#allocation3 + $0x8] sm:$0xff]
      %v592 = vld [vmem:[#allocation3 + $0x10] sm:$0xff]
      %v593 = vld [vmem:[#allocation3 + $0x18] sm:$0xf]
      %598 = vrot.lane.b32.xlu0 %v590, 28
      %v599 = vpop.permute.xlu0 %598
      %600 = vrot.lane.b32.xlu0 %v591, 28
      %v601 = vpop.permute.xlu0 %600
      %602 = vrot.lane.b32.xlu0 %v592, 28
      %v603 = vpop.permute.xlu0 %602
      %604 = vrot.lane.b32.xlu0 %v593, 28
      %v605 = vpop.permute.xlu0 %604
      %v606 = vrot.slane %v599, 4
      %v607 = vrot.slane %v601, 4
      %v608 = vrot.slane %v603, 4
      %v609 = vrot.slane %v605, 4
      %v610 = vsel %vm329, %v606, %v607
      %vm611 = vcmask 228352
      %v612 = vsel %vm611, %v599, %v610
      %v613 = vsel %vm329, %v607, %v608
      %v614 = vsel %vm611, %v601, %v613
      %v615 = vsel %vm329, %v608, %v609
      %v616 = vsel %vm611, %v603, %v615
      %621 = vst [vmem:[#allocation2 + $0xfc] sm:$0xff] %v612
      %622 = vst [vmem:[#allocation2 + $0x104] sm:$0xff] %v614
      %623 = vst [vmem:[#allocation2 + $0x10c] sm:$0xff] %v616
      %624 = vst.msk [vmem:[#allocation2 + $0x114] sm:$0xf] %vm307, %v605
      %v625 = vld [vmem:[#allocation3] sm:$0xff]
      %v626 = vld [vmem:[#allocation3 + $0x8] sm:$0xff]
      %v627 = vld [vmem:[#allocation3 + $0x10] sm:$0xff]
      %v628 = vld [vmem:[#allocation3 + $0x18] sm:$0xf]
      %633 = vrot.lane.b32.xlu0 %v625, 27
      %v634 = vpop.permute.xlu0 %633
      %635 = vrot.lane.b32.xlu0 %v626, 27
      %v636 = vpop.permute.xlu0 %635
      %637 = vrot.lane.b32.xlu0 %v627, 27
      %v638 = vpop.permute.xlu0 %637
      %639 = vrot.lane.b32.xlu0 %v628, 27
      %v640 = vpop.permute.xlu0 %639
      %v641 = vrot.slane %v634, 4
      %v642 = vrot.slane %v636, 4
      %v643 = vrot.slane %v638, 4
      %v644 = vrot.slane %v640, 4
      %v645 = vsel %vm329, %v641, %v642
      %vm646 = vcmask 220160
      %v647 = vsel %vm646, %v634, %v645
      %v648 = vsel %vm329, %v642, %v643
      %v649 = vsel %vm646, %v636, %v648
      %v650 = vsel %vm329, %v643, %v644
      %v651 = vsel %vm646, %v638, %v650
      %656 = vst [vmem:[#allocation2 + $0x118] sm:$0xff] %v647
      %657 = vst [vmem:[#allocation2 + $0x120] sm:$0xff] %v649
      %658 = vst [vmem:[#allocation2 + $0x128] sm:$0xff] %v651
      %659 = vst.msk [vmem:[#allocation2 + $0x130] sm:$0xf] %vm307, %v640
      %v660 = vld [vmem:[#allocation3] sm:$0xff]
      %v661 = vld [vmem:[#allocation3 + $0x8] sm:$0xff]
      %v662 = vld [vmem:[#allocation3 + $0x10] sm:$0xff]
      %v663 = vld [vmem:[#allocation3 + $0x18] sm:$0xf]
      %668 = vrot.lane.b32.xlu0 %v660, 26
      %v669 = vpop.permute.xlu0 %668
      %670 = vrot.lane.b32.xlu0 %v661, 26
      %v671 = vpop.permute.xlu0 %670
      %672 = vrot.lane.b32.xlu0 %v662, 26
      %v673 = vpop.permute.xlu0 %672
      %674 = vrot.lane.b32.xlu0 %v663, 26
      %v675 = vpop.permute.xlu0 %674
      %v676 = vrot.slane %v669, 4
      %v677 = vrot.slane %v671, 4
      %v678 = vrot.slane %v673, 4
      %v679 = vrot.slane %v675, 4
      %v680 = vsel %vm329, %v676, %v677
      %vm681 = vcmask 211968
      %v682 = vsel %vm681, %v669, %v680
      %v683 = vsel %vm329, %v677, %v678
      %v684 = vsel %vm681, %v671, %v683
      %v685 = vsel %vm329, %v678, %v679
      %v686 = vsel %vm681, %v673, %v685
      %691 = vst [vmem:[#allocation2 + $0x134] sm:$0xff] %v682
      %692 = vst [vmem:[#allocation2 + $0x13c] sm:$0xff] %v684
      %693 = vst [vmem:[#allocation2 + $0x144] sm:$0xff] %v686
      %694 = vst.msk [vmem:[#allocation2 + $0x14c] sm:$0xf] %vm307, %v675
      %v695 = vld [vmem:[#allocation3] sm:$0xff]
      %v696 = vld [vmem:[#allocation3 + $0x8] sm:$0xff]
      %v697 = vld [vmem:[#allocation3 + $0x10] sm:$0xff]
      %v698 = vld [vmem:[#allocation3 + $0x18] sm:$0xf]
      %703 = vrot.lane.b32.xlu0 %v695, 18
      %v704 = vpop.permute.xlu0 %703
      %705 = vrot.lane.b32.xlu0 %v696, 18
      %v706 = vpop.permute.xlu0 %705
      %707 = vrot.lane.b32.xlu0 %v697, 18
      %v708 = vpop.permute.xlu0 %707
      %709 = vrot.lane.b32.xlu0 %v698, 18
      %v710 = vpop.permute.xlu0 %709
      %v711 = vrot.slane %v704, 4
      %v712 = vrot.slane %v706, 4
      %v713 = vrot.slane %v708, 4
      %v714 = vrot.slane %v710, 4
      %v715 = vsel %vm329, %v711, %v712
      %vm716 = vcmask 146432
      %v717 = vsel %vm716, %v704, %v715
      %v718 = vsel %vm329, %v712, %v713
      %v719 = vsel %vm716, %v706, %v718
      %v720 = vsel %vm329, %v713, %v714
      %v721 = vsel %vm716, %v708, %v720
      %726 = vst [vmem:[#allocation2 + $0x150] sm:$0xff] %v717
      %727 = vst [vmem:[#allocation2 + $0x158] sm:$0xff] %v719
      %728 = vst [vmem:[#allocation2 + $0x160] sm:$0xff] %v721
      %729 = vst.msk [vmem:[#allocation2 + $0x168] sm:$0xf] %vm307, %v710
      %v730 = vld [vmem:[#allocation3] sm:$0xff]
      %v731 = vld [vmem:[#allocation3 + $0x8] sm:$0xff]
      %v732 = vld [vmem:[#allocation3 + $0x10] sm:$0xff]
      %v733 = vld [vmem:[#allocation3 + $0x18] sm:$0xf]
      %738 = vrot.lane.b32.xlu0 %v730, 17
      %v739 = vpop.permute.xlu0 %738
      %740 = vrot.lane.b32.xlu0 %v731, 17
      %v741 = vpop.permute.xlu0 %740
      %742 = vrot.lane.b32.xlu0 %v732, 17
      %v743 = vpop.permute.xlu0 %742
      %744 = vrot.lane.b32.xlu0 %v733, 17
      %v745 = vpop.permute.xlu0 %744
      %v746 = vrot.slane %v739, 4
      %v747 = vrot.slane %v741, 4
      %v748 = vrot.slane %v743, 4
      %v749 = vrot.slane %v745, 4
      %v750 = vsel %vm329, %v746, %v747
      %vm751 = vcmask 138240
      %v752 = vsel %vm751, %v739, %v750
      %v753 = vsel %vm329, %v747, %v748
      %v754 = vsel %vm751, %v741, %v753
      %v755 = vsel %vm329, %v748, %v749
      %v756 = vsel %vm751, %v743, %v755
      %761 = vst [vmem:[#allocation2 + $0x16c] sm:$0xff] %v752
      %762 = vst [vmem:[#allocation2 + $0x174] sm:$0xff] %v754
      %763 = vst [vmem:[#allocation2 + $0x17c] sm:$0xff] %v756
      %764 = vst.msk [vmem:[#allocation2 + $0x184] sm:$0xf] %vm307, %v745
      %v765 = vld [vmem:[#allocation3] sm:$0xff]
      %v766 = vld [vmem:[#allocation3 + $0x8] sm:$0xff]
      %v767 = vld [vmem:[#allocation3 + $0x10] sm:$0xff]
      %v768 = vld [vmem:[#allocation3 + $0x18] sm:$0xf]
      %773 = vrot.lane.b32.xlu0 %v765, 16
      %v774 = vpop.permute.xlu0 %773
      %775 = vrot.lane.b32.xlu0 %v766, 16
      %v776 = vpop.permute.xlu0 %775
      %777 = vrot.lane.b32.xlu0 %v767, 16
      %v778 = vpop.permute.xlu0 %777
      %779 = vrot.lane.b32.xlu0 %v768, 16
      %v780 = vpop.permute.xlu0 %779
      %v781 = vrot.slane %v774, 4
      %v782 = vrot.slane %v776, 4
      %v783 = vrot.slane %v778, 4
      %v784 = vrot.slane %v780, 4
      %v785 = vsel %vm329, %v781, %v782
      %vm786 = vcmask 130048
      %v787 = vsel %vm786, %v774, %v785
      %v788 = vsel %vm329, %v782, %v783
      %v789 = vsel %vm786, %v776, %v788
      %v790 = vsel %vm329, %v783, %v784
      %v791 = vsel %vm786, %v778, %v790
      %796 = vst [vmem:[#allocation2 + $0x188] sm:$0xff] %v787
      %797 = vst [vmem:[#allocation2 + $0x190] sm:$0xff] %v789
      %798 = vst [vmem:[#allocation2 + $0x198] sm:$0xff] %v791
      %799 = vst.msk [vmem:[#allocation2 + $0x1a0] sm:$0xf] %vm307, %v780
      %v800 = vld [vmem:[#allocation3] sm:$0xff]
      %v801 = vld [vmem:[#allocation3 + $0x8] sm:$0xff]
      %v802 = vld [vmem:[#allocation3 + $0x10] sm:$0xff]
      %v803 = vld [vmem:[#allocation3 + $0x18] sm:$0xff]
      %808 = vrot.lane.b32.xlu0 %v800, 8
      %v809 = vpop.permute.xlu0 %808
      %810 = vrot.lane.b32.xlu0 %v801, 8
      %v811 = vpop.permute.xlu0 %810
      %812 = vrot.lane.b32.xlu0 %v802, 8
      %v813 = vpop.permute.xlu0 %812
      %814 = vrot.lane.b32.xlu0 %v803, 8
      %v815 = vpop.permute.xlu0 %814
      %v816 = vrot.slane %v809, 4
      %v817 = vrot.slane %v811, 4
      %v818 = vrot.slane %v813, 4
      %v819 = vrot.slane %v815, 4
      %v820 = vsel %vm329, %v816, %v817
      %vm821 = vcmask 64512
      %v822 = vsel %vm821, %v809, %v820
      %v823 = vsel %vm329, %v817, %v818
      %v824 = vsel %vm821, %v811, %v823
      %v825 = vsel %vm329, %v818, %v819
      %v826 = vsel %vm821, %v813, %v825
      %v827 = vsel %vm821, %v815, %v819
      %832 = vst [vmem:[#allocation2 + $0x1a4] sm:$0xff] %v822
      %833 = vst [vmem:[#allocation2 + $0x1ac] sm:$0xff] %v824
      %834 = vst [vmem:[#allocation2 + $0x1b4] sm:$0xff] %v826
      %835 = vst.msk [vmem:[#allocation2 + $0x1bc] sm:$0xf] %vm307, %v827
      %v836 = vld [vmem:[#allocation3] sm:$0xff]
      %v837 = vld [vmem:[#allocation3 + $0x8] sm:$0xff]
      %v838 = vld [vmem:[#allocation3 + $0x10] sm:$0xff]
      %v839 = vld [vmem:[#allocation3 + $0x18] sm:$0xff]
      %844 = vrot.lane.b32.xlu0 %v836, 7
      %v845 = vpop.permute.xlu0 %844
      %846 = vrot.lane.b32.xlu0 %v837, 7
      %v847 = vpop.permute.xlu0 %846
      %848 = vrot.lane.b32.xlu0 %v838, 7
      %v849 = vpop.permute.xlu0 %848
      %850 = vrot.lane.b32.xlu0 %v839, 7
      %v851 = vpop.permute.xlu0 %850
      %v852 = vrot.slane %v845, 4
      %v853 = vrot.slane %v847, 4
      %v854 = vrot.slane %v849, 4
      %v855 = vrot.slane %v851, 4
      %v856 = vsel %vm329, %v852, %v853
      %vm857 = vcmask 56320
      %v858 = vsel %vm857, %v845, %v856
      %v859 = vsel %vm329, %v853, %v854
      %v860 = vsel %vm857, %v847, %v859
      %v861 = vsel %vm329, %v854, %v855
      %v862 = vsel %vm857, %v849, %v861
      %v863 = vsel %vm857, %v851, %v855
      %868 = vst [vmem:[#allocation2 + $0x1c0] sm:$0xff] %v858
      %869 = vst [vmem:[#allocation2 + $0x1c8] sm:$0xff] %v860
      %870 = vst [vmem:[#allocation2 + $0x1d0] sm:$0xff] %v862
      %871 = vst.msk [vmem:[#allocation2 + $0x1d8] sm:$0xf] %vm307, %v863
      %v872 = vld [vmem:[#allocation3] sm:$0xff]
      %v873 = vld [vmem:[#allocation3 + $0x8] sm:$0xff]
      %v874 = vld [vmem:[#allocation3 + $0x10] sm:$0xff]
      %v875 = vld [vmem:[#allocation3 + $0x18] sm:$0xff]
      %880 = vrot.lane.b32.xlu0 %v872, 6
      %v881 = vpop.permute.xlu0 %880
      %882 = vrot.lane.b32.xlu0 %v873, 6
      %v883 = vpop.permute.xlu0 %882
      %884 = vrot.lane.b32.xlu0 %v874, 6
      %v885 = vpop.permute.xlu0 %884
      %886 = vrot.lane.b32.xlu0 %v875, 6
      %v887 = vpop.permute.xlu0 %886
      %v888 = vrot.slane %v881, 4
      %v889 = vrot.slane %v883, 4
      %v890 = vrot.slane %v885, 4
      %v891 = vrot.slane %v887, 4
      %v892 = vsel %vm329, %v888, %v889
      %vm893 = vcmask 48128
      %v894 = vsel %vm893, %v881, %v892
      %v895 = vsel %vm329, %v889, %v890
      %v896 = vsel %vm893, %v883, %v895
      %v897 = vsel %vm329, %v890, %v891
      %v898 = vsel %vm893, %v885, %v897
      %v899 = vsel %vm893, %v887, %v891
      %904 = vst [vmem:[#allocation2 + $0x1dc] sm:$0xff] %v894
      %905 = vst [vmem:[#allocation2 + $0x1e4] sm:$0xff] %v896
      %906 = vst [vmem:[#allocation2 + $0x1ec] sm:$0xff] %v898
      %907 = vst.msk [vmem:[#allocation2 + $0x1f4] sm:$0xf] %vm307, %v899
      %v908 = vld [vmem:[#allocation3 + $0x4] sm:$0xff]
      %v909 = vld [vmem:[#allocation3 + $0xc] sm:$0xff]
      %v910 = vld [vmem:[#allocation3 + $0x14] sm:$0xff]
      %v911 = vld [vmem:[#allocation3 + $0x1c] sm:$0xf]
      %916 = vrot.lane.b32.xlu0 %v908, 56
      %v917 = vpop.permute.xlu0 %916
      %918 = vrot.lane.b32.xlu0 %v909, 56
      %v919 = vpop.permute.xlu0 %918
      %920 = vrot.lane.b32.xlu0 %v910, 56
      %v921 = vpop.permute.xlu0 %920
      %922 = vrot.lane.b32.xlu0 %v911, 56
      %v923 = vpop.permute.xlu0 %922
      %v924 = vrot.slane %v917, 4
      %v925 = vrot.slane %v919, 4
      %v926 = vrot.slane %v921, 4
      %v927 = vrot.slane %v923, 4
      %v928 = vsel %vm329, %v924, %v925
      %vm929 = vcmask 457728
      %v930 = vsel %vm929, %v917, %v928
      %v931 = vsel %vm329, %v925, %v926
      %v932 = vsel %vm929, %v919, %v931
      %v933 = vsel %vm329, %v926, %v927
      %v934 = vsel %vm929, %v921, %v933
      %939 = vst [vmem:[#allocation2 + $0x1f8] sm:$0xff] %v930
      %940 = vst [vmem:[#allocation2 + $0x200] sm:$0xff] %v932
      %941 = vst [vmem:[#allocation2 + $0x208] sm:$0xff] %v934
      %942 = vst.msk [vmem:[#allocation2 + $0x210] sm:$0xf] %vm307, %v923
      %v943 = vld [vmem:[#allocation3 + $0x4] sm:$0xff]
      %v944 = vld [vmem:[#allocation3 + $0xc] sm:$0xff]
      %v945 = vld [vmem:[#allocation3 + $0x14] sm:$0xff]
      %v946 = vld [vmem:[#allocation3 + $0x1c] sm:$0xf]
      %951 = vrot.lane.b32.xlu0 %v943, 55
      %v952 = vpop.permute.xlu0 %951
      %953 = vrot.lane.b32.xlu0 %v944, 55
      %v954 = vpop.permute.xlu0 %953
      %955 = vrot.lane.b32.xlu0 %v945, 55
      %v956 = vpop.permute.xlu0 %955
      %957 = vrot.lane.b32.xlu0 %v946, 55
      %v958 = vpop.permute.xlu0 %957
      %v959 = vrot.slane %v952, 4
      %v960 = vrot.slane %v954, 4
      %v961 = vrot.slane %v956, 4
      %v962 = vrot.slane %v958, 4
      %v963 = vsel %vm329, %v959, %v960
      %vm964 = vcmask 449536
      %v965 = vsel %vm964, %v952, %v963
      %v966 = vsel %vm329, %v960, %v961
      %v967 = vsel %vm964, %v954, %v966
      %v968 = vsel %vm329, %v961, %v962
      %v969 = vsel %vm964, %v956, %v968
      %974 = vst [vmem:[#allocation2 + $0x214] sm:$0xff] %v965
      %975 = vst [vmem:[#allocation2 + $0x21c] sm:$0xff] %v967
      %976 = vst [vmem:[#allocation2 + $0x224] sm:$0xff] %v969
      %977 = vst.msk [vmem:[#allocation2 + $0x22c] sm:$0xf] %vm307, %v958
      %v978 = vld [vmem:[#allocation3 + $0x4] sm:$0xff]
      %v979 = vld [vmem:[#allocation3 + $0xc] sm:$0xff]
      %v980 = vld [vmem:[#allocation3 + $0x14] sm:$0xff]
      %v981 = vld [vmem:[#allocation3 + $0x1c] sm:$0xf]
      %986 = vrot.lane.b32.xlu0 %v978, 54
      %v987 = vpop.permute.xlu0 %986
      %988 = vrot.lane.b32.xlu0 %v979, 54
      %v989 = vpop.permute.xlu0 %988
      %990 = vrot.lane.b32.xlu0 %v980, 54
      %v991 = vpop.permute.xlu0 %990
      %992 = vrot.lane.b32.xlu0 %v981, 54
      %v993 = vpop.permute.xlu0 %992
      %v994 = vrot.slane %v987, 4
      %v995 = vrot.slane %v989, 4
      %v996 = vrot.slane %v991, 4
      %v997 = vrot.slane %v993, 4
      %v998 = vsel %vm329, %v994, %v995
      %vm999 = vcmask 441344
      %v1000 = vsel %vm999, %v987, %v998
      %v1001 = vsel %vm329, %v995, %v996
      %v1002 = vsel %vm999, %v989, %v1001
      %v1003 = vsel %vm329, %v996, %v997
      %v1004 = vsel %vm999, %v991, %v1003
      %1009 = vst [vmem:[#allocation2 + $0x230] sm:$0xff] %v1000
      %1010 = vst [vmem:[#allocation2 + $0x238] sm:$0xff] %v1002
      %1011 = vst [vmem:[#allocation2 + $0x240] sm:$0xff] %v1004
      %1012 = vst.msk [vmem:[#allocation2 + $0x248] sm:$0xf] %vm307, %v993
      %v1013 = vld [vmem:[#allocation3 + $0x4] sm:$0xff]
      %v1014 = vld [vmem:[#allocation3 + $0xc] sm:$0xff]
      %v1015 = vld [vmem:[#allocation3 + $0x14] sm:$0xff]
      %v1016 = vld [vmem:[#allocation3 + $0x1c] sm:$0xf]
      %1021 = vrot.lane.b32.xlu0 %v1013, 46
      %v1022 = vpop.permute.xlu0 %1021
      %1023 = vrot.lane.b32.xlu0 %v1014, 46
      %v1024 = vpop.permute.xlu0 %1023
      %1025 = vrot.lane.b32.xlu0 %v1015, 46
      %v1026 = vpop.permute.xlu0 %1025
      %1027 = vrot.lane.b32.xlu0 %v1016, 46
      %v1028 = vpop.permute.xlu0 %1027
      %v1029 = vrot.slane %v1022, 4
      %v1030 = vrot.slane %v1024, 4
      %v1031 = vrot.slane %v1026, 4
      %v1032 = vrot.slane %v1028, 4
      %v1033 = vsel %vm329, %v1029, %v1030
      %vm1034 = vcmask 375808
      %v1035 = vsel %vm1034, %v1022, %v1033
      %v1036 = vsel %vm329, %v1030, %v1031
      %v1037 = vsel %vm1034, %v1024, %v1036
      %v1038 = vsel %vm329, %v1031, %v1032
      %v1039 = vsel %vm1034, %v1026, %v1038
      %1044 = vst [vmem:[#allocation2 + $0x24c] sm:$0xff] %v1035
      %1045 = vst [vmem:[#allocation2 + $0x254] sm:$0xff] %v1037
      %1046 = vst [vmem:[#allocation2 + $0x25c] sm:$0xff] %v1039
      %1047 = vst.msk [vmem:[#allocation2 + $0x264] sm:$0xf] %vm307, %v1028
      %v1048 = vld [vmem:[#allocation3 + $0x4] sm:$0xff]
      %v1049 = vld [vmem:[#allocation3 + $0xc] sm:$0xff]
      %v1050 = vld [vmem:[#allocation3 + $0x14] sm:$0xff]
      %v1051 = vld [vmem:[#allocation3 + $0x1c] sm:$0xf]
      %1056 = vrot.lane.b32.xlu0 %v1048, 45
      %v1057 = vpop.permute.xlu0 %1056
      %1058 = vrot.lane.b32.xlu0 %v1049, 45
      %v1059 = vpop.permute.xlu0 %1058
      %1060 = vrot.lane.b32.xlu0 %v1050, 45
      %v1061 = vpop.permute.xlu0 %1060
      %1062 = vrot.lane.b32.xlu0 %v1051, 45
      %v1063 = vpop.permute.xlu0 %1062
      %v1064 = vrot.slane %v1057, 4
      %v1065 = vrot.slane %v1059, 4
      %v1066 = vrot.slane %v1061, 4
      %v1067 = vrot.slane %v1063, 4
      %v1068 = vsel %vm329, %v1064, %v1065
      %vm1069 = vcmask 367616
      %v1070 = vsel %vm1069, %v1057, %v1068
      %v1071 = vsel %vm329, %v1065, %v1066
      %v1072 = vsel %vm1069, %v1059, %v1071
      %v1073 = vsel %vm329, %v1066, %v1067
      %v1074 = vsel %vm1069, %v1061, %v1073
      %1079 = vst [vmem:[#allocation2 + $0x268] sm:$0xff] %v1070
      %1080 = vst [vmem:[#allocation2 + $0x270] sm:$0xff] %v1072
      %1081 = vst [vmem:[#allocation2 + $0x278] sm:$0xff] %v1074
      %1082 = vst.msk [vmem:[#allocation2 + $0x280] sm:$0xf] %vm307, %v1063
      %v1083 = vld [vmem:[#allocation3 + $0x4] sm:$0xff]
      %v1084 = vld [vmem:[#allocation3 + $0xc] sm:$0xff]
      %v1085 = vld [vmem:[#allocation3 + $0x14] sm:$0xff]
      %v1086 = vld [vmem:[#allocation3 + $0x1c] sm:$0xf]
      %1091 = vrot.lane.b32.xlu0 %v1083, 44
      %v1092 = vpop.permute.xlu0 %1091
      %1093 = vrot.lane.b32.xlu0 %v1084, 44
      %v1094 = vpop.permute.xlu0 %1093
      %1095 = vrot.lane.b32.xlu0 %v1085, 44
      %v1096 = vpop.permute.xlu0 %1095
      %1097 = vrot.lane.b32.xlu0 %v1086, 44
      %v1098 = vpop.permute.xlu0 %1097
      %v1099 = vrot.slane %v1092, 4
      %v1100 = vrot.slane %v1094, 4
      %v1101 = vrot.slane %v1096, 4
      %v1102 = vrot.slane %v1098, 4
      %v1103 = vsel %vm329, %v1099, %v1100
      %vm1104 = vcmask 359424
      %v1105 = vsel %vm1104, %v1092, %v1103
      %v1106 = vsel %vm329, %v1100, %v1101
      %v1107 = vsel %vm1104, %v1094, %v1106
      %v1108 = vsel %vm329, %v1101, %v1102
      %v1109 = vsel %vm1104, %v1096, %v1108
      %1114 = vst [vmem:[#allocation2 + $0x284] sm:$0xff] %v1105
      %1115 = vst [vmem:[#allocation2 + $0x28c] sm:$0xff] %v1107
      %1116 = vst [vmem:[#allocation2 + $0x294] sm:$0xff] %v1109
      %1117 = vst.msk [vmem:[#allocation2 + $0x29c] sm:$0xf] %vm307, %v1098
      %v1118 = vld [vmem:[#allocation3 + $0x4] sm:$0xff]
      %v1119 = vld [vmem:[#allocation3 + $0xc] sm:$0xff]
      %v1120 = vld [vmem:[#allocation3 + $0x14] sm:$0xff]
      %v1121 = vld [vmem:[#allocation3 + $0x1c] sm:$0xf]
      %1126 = vrot.lane.b32.xlu0 %v1118, 36
      %v1127 = vpop.permute.xlu0 %1126
      %1128 = vrot.lane.b32.xlu0 %v1119, 36
      %v1129 = vpop.permute.xlu0 %1128
      %1130 = vrot.lane.b32.xlu0 %v1120, 36
      %v1131 = vpop.permute.xlu0 %1130
      %1132 = vrot.lane.b32.xlu0 %v1121, 36
      %v1133 = vpop.permute.xlu0 %1132
      %v1134 = vrot.slane %v1127, 4
      %v1135 = vrot.slane %v1129, 4
      %v1136 = vrot.slane %v1131, 4
      %v1137 = vrot.slane %v1133, 4
      %v1138 = vsel %vm329, %v1134, %v1135
      %vm1139 = vcmask 293888
      %v1140 = vsel %vm1139, %v1127, %v1138
      %v1141 = vsel %vm329, %v1135, %v1136
      %v1142 = vsel %vm1139, %v1129, %v1141
      %v1143 = vsel %vm329, %v1136, %v1137
      %v1144 = vsel %vm1139, %v1131, %v1143
      %1149 = vst [vmem:[#allocation2 + $0x2a0] sm:$0xff] %v1140
      %1150 = vst [vmem:[#allocation2 + $0x2a8] sm:$0xff] %v1142
      %1151 = vst [vmem:[#allocation2 + $0x2b0] sm:$0xff] %v1144
      %1152 = vst.msk [vmem:[#allocation2 + $0x2b8] sm:$0xf] %vm307, %v1133
      %v1153 = vld [vmem:[#allocation3 + $0x4] sm:$0xff]
      %v1154 = vld [vmem:[#allocation3 + $0xc] sm:$0xff]
      %v1155 = vld [vmem:[#allocation3 + $0x14] sm:$0xff]
      %v1156 = vld [vmem:[#allocation3 + $0x1c] sm:$0xf]
      %1161 = vrot.lane.b32.xlu0 %v1153, 35
      %v1162 = vpop.permute.xlu0 %1161
      %1163 = vrot.lane.b32.xlu0 %v1154, 35
      %v1164 = vpop.permute.xlu0 %1163
      %1165 = vrot.lane.b32.xlu0 %v1155, 35
      %v1166 = vpop.permute.xlu0 %1165
      %1167 = vrot.lane.b32.xlu0 %v1156, 35
      %v1168 = vpop.permute.xlu0 %1167
      %v1169 = vrot.slane %v1162, 4
      %v1170 = vrot.slane %v1164, 4
      %v1171 = vrot.slane %v1166, 4
      %v1172 = vrot.slane %v1168, 4
      %v1173 = vsel %vm329, %v1169, %v1170
      %vm1174 = vcmask 285696
      %v1175 = vsel %vm1174, %v1162, %v1173
      %v1176 = vsel %vm329, %v1170, %v1171
      %v1177 = vsel %vm1174, %v1164, %v1176
      %v1178 = vsel %vm329, %v1171, %v1172
      %v1179 = vsel %vm1174, %v1166, %v1178
      %1184 = vst [vmem:[#allocation2 + $0x2bc] sm:$0xff] %v1175
      %1185 = vst [vmem:[#allocation2 + $0x2c4] sm:$0xff] %v1177
      %1186 = vst [vmem:[#allocation2 + $0x2cc] sm:$0xff] %v1179
      %1187 = vst.msk [vmem:[#allocation2 + $0x2d4] sm:$0xf] %vm307, %v1168
      %v1188 = vld [vmem:[#allocation3 + $0x4] sm:$0xff]
      %v1189 = vld [vmem:[#allocation3 + $0xc] sm:$0xff]
      %v1190 = vld [vmem:[#allocation3 + $0x14] sm:$0xff]
      %v1191 = vld [vmem:[#allocation3 + $0x1c] sm:$0xf]
      %1196 = vrot.lane.b32.xlu0 %v1188, 34
      %v1197 = vpop.permute.xlu0 %1196
      %1198 = vrot.lane.b32.xlu0 %v1189, 34
      %v1199 = vpop.permute.xlu0 %1198
      %1200 = vrot.lane.b32.xlu0 %v1190, 34
      %v1201 = vpop.permute.xlu0 %1200
      %1202 = vrot.lane.b32.xlu0 %v1191, 34
      %v1203 = vpop.permute.xlu0 %1202
      %v1204 = vrot.slane %v1197, 4
      %v1205 = vrot.slane %v1199, 4
      %v1206 = vrot.slane %v1201, 4
      %v1207 = vrot.slane %v1203, 4
      %v1208 = vsel %vm329, %v1204, %v1205
      %vm1209 = vcmask 277504
      %v1210 = vsel %vm1209, %v1197, %v1208
      %v1211 = vsel %vm329, %v1205, %v1206
      %v1212 = vsel %vm1209, %v1199, %v1211
      %v1213 = vsel %vm329, %v1206, %v1207
      %v1214 = vsel %vm1209, %v1201, %v1213
      %1219 = vst [vmem:[#allocation2 + $0x2d8] sm:$0xff] %v1210
      %1220 = vst [vmem:[#allocation2 + $0x2e0] sm:$0xff] %v1212
      %1221 = vst [vmem:[#allocation2 + $0x2e8] sm:$0xff] %v1214
      %1222 = vst.msk [vmem:[#allocation2 + $0x2f0] sm:$0xf] %vm307, %v1203
      %v1223 = vld [vmem:[%s1] sm:$0xff]
      %v1224 = vld [vmem:[#allocation2] sm:$0xff]
      %v1225 = vld [vmem:[#allocation2 + $0x8] sm:$0xff]
      %v1226 = vld [vmem:[#allocation2 + $0x10] sm:$0xff]
      %v1227 = vld [vmem:[#allocation2 + $0x18] sm:$0xf]
      %v1228 = vld [vmem:[#allocation2 + $0x1c] sm:$0xff]
      %v1229 = vld [vmem:[#allocation2 + $0x24] sm:$0xff]
      %v1230 = vld [vmem:[#allocation2 + $0x2c] sm:$0xff]
      %v1231 = vld [vmem:[#allocation2 + $0x34] sm:$0xf]
      %v1232 = vld [vmem:[#allocation2 + $0x38] sm:$0xff]
      %v1233 = vld [vmem:[#allocation2 + $0x40] sm:$0xff]
      %v1234 = vld [vmem:[#allocation2 + $0x48] sm:$0xff]
      %v1235 = vld [vmem:[#allocation2 + $0x50] sm:$0xf]
      %v1236 = vld [vmem:[#allocation2 + $0x54] sm:$0xff]
      %v1237 = vld [vmem:[#allocation2 + $0x5c] sm:$0xff]
      %v1238 = vld [vmem:[#allocation2 + $0x64] sm:$0xff]
      %v1239 = vld [vmem:[#allocation2 + $0x6c] sm:$0xf]
      %v1240 = vld [vmem:[#allocation2 + $0x70] sm:$0xff]
      %v1241 = vld [vmem:[#allocation2 + $0x78] sm:$0xff]
      %v1242 = vld [vmem:[#allocation2 + $0x80] sm:$0xff]
      %v1243 = vld [vmem:[#allocation2 + $0x88] sm:$0xf]
      %v1244 = vld [vmem:[#allocation2 + $0x8c] sm:$0xff]
      %v1245 = vld [vmem:[#allocation2 + $0x94] sm:$0xff]
      %v1246 = vld [vmem:[#allocation2 + $0x9c] sm:$0xff]
      %v1247 = vld [vmem:[#allocation2 + $0xa4] sm:$0xf]
      %v1248 = vld [vmem:[#allocation2 + $0xa8] sm:$0xff]
      %v1249 = vld [vmem:[#allocation2 + $0xb0] sm:$0xff]
      %v1250 = vld [vmem:[#allocation2 + $0xb8] sm:$0xff]
      %v1251 = vld [vmem:[#allocation2 + $0xc0] sm:$0xf]
      %v1252 = vld [vmem:[#allocation2 + $0xc4] sm:$0xff]
      %v1253 = vld [vmem:[#allocation2 + $0xcc] sm:$0xff]
      %v1254 = vld [vmem:[#allocation2 + $0xd4] sm:$0xff]
      %v1255 = vld [vmem:[#allocation2 + $0xdc] sm:$0xf]
      %v1256 = vld [vmem:[#allocation2 + $0xe0] sm:$0xff]
      %v1257 = vld [vmem:[#allocation2 + $0xe8] sm:$0xff]
      %v1258 = vld [vmem:[#allocation2 + $0xf0] sm:$0xff]
      %v1259 = vld [vmem:[#allocation2 + $0xf8] sm:$0xf]
      %v1260 = vld [vmem:[#allocation2 + $0xfc] sm:$0xff]
      %v1261 = vld [vmem:[#allocation2 + $0x104] sm:$0xff]
      %v1262 = vld [vmem:[#allocation2 + $0x10c] sm:$0xff]
      %v1263 = vld [vmem:[#allocation2 + $0x114] sm:$0xf]
      %v1264 = vld [vmem:[#allocation2 + $0x118] sm:$0xff]
      %v1265 = vld [vmem:[#allocation2 + $0x120] sm:$0xff]
      %v1266 = vld [vmem:[#allocation2 + $0x128] sm:$0xff]
      %v1267 = vld [vmem:[#allocation2 + $0x130] sm:$0xf]
      %v1268 = vld [vmem:[#allocation2 + $0x134] sm:$0xff]
      %v1269 = vld [vmem:[#allocation2 + $0x13c] sm:$0xff]
      %v1270 = vld [vmem:[#allocation2 + $0x144] sm:$0xff]
      %v1271 = vld [vmem:[#allocation2 + $0x14c] sm:$0xf]
      %v1272 = vld [vmem:[#allocation2 + $0x150] sm:$0xff]
      %v1273 = vld [vmem:[#allocation2 + $0x158] sm:$0xff]
      %v1274 = vld [vmem:[#allocation2 + $0x160] sm:$0xff]
      %v1275 = vld [vmem:[#allocation2 + $0x168] sm:$0xf]
      %v1276 = vld [vmem:[#allocation2 + $0x16c] sm:$0xff]
      %v1277 = vld [vmem:[#allocation2 + $0x174] sm:$0xff]
      %v1278 = vld [vmem:[#allocation2 + $0x17c] sm:$0xff]
      %v1279 = vld [vmem:[#allocation2 + $0x184] sm:$0xf]
      %v1280 = vld [vmem:[#allocation2 + $0x188] sm:$0xff]
      %v1281 = vld [vmem:[#allocation2 + $0x190] sm:$0xff]
      %v1282 = vld [vmem:[#allocation2 + $0x198] sm:$0xff]
      %v1283 = vld [vmem:[#allocation2 + $0x1a0] sm:$0xf]
      %v1284 = vld [vmem:[#allocation2 + $0x1a4] sm:$0xff]
      %v1285 = vld [vmem:[#allocation2 + $0x1ac] sm:$0xff]
      %v1286 = vld [vmem:[#allocation2 + $0x1b4] sm:$0xff]
      %v1287 = vld [vmem:[#allocation2 + $0x1bc] sm:$0xf]
      %v1288 = vld [vmem:[#allocation2 + $0x1c0] sm:$0xff]
      %v1289 = vld [vmem:[#allocation2 + $0x1c8] sm:$0xff]
      %v1290 = vld [vmem:[#allocation2 + $0x1d0] sm:$0xff]
      %v1291 = vld [vmem:[#allocation2 + $0x1d8] sm:$0xf]
      %v1292 = vld [vmem:[#allocation2 + $0x1dc] sm:$0xff]
      %v1293 = vld [vmem:[#allocation2 + $0x1e4] sm:$0xff]
      %v1294 = vld [vmem:[#allocation2 + $0x1ec] sm:$0xff]
      %v1295 = vld [vmem:[#allocation2 + $0x1f4] sm:$0xf]
      %v1296 = vld [vmem:[#allocation2 + $0x1f8] sm:$0xff]
      %v1297 = vld [vmem:[#allocation2 + $0x200] sm:$0xff]
      %v1298 = vld [vmem:[#allocation2 + $0x208] sm:$0xff]
      %v1299 = vld [vmem:[#allocation2 + $0x210] sm:$0xf]
      %v1300 = vld [vmem:[#allocation2 + $0x214] sm:$0xff]
      %v1301 = vld [vmem:[#allocation2 + $0x21c] sm:$0xff]
      %v1302 = vld [vmem:[#allocation2 + $0x224] sm:$0xff]
      %v1303 = vld [vmem:[#allocation2 + $0x22c] sm:$0xf]
      %v1304 = vld [vmem:[#allocation2 + $0x230] sm:$0xff]
      %v1305 = vld [vmem:[#allocation2 + $0x238] sm:$0xff]
      %v1306 = vld [vmem:[#allocation2 + $0x240] sm:$0xff]
      %v1307 = vld [vmem:[#allocation2 + $0x248] sm:$0xf]
      %v1308 = vld [vmem:[#allocation2 + $0x24c] sm:$0xff]
      %v1309 = vld [vmem:[#allocation2 + $0x254] sm:$0xff]
      %v1310 = vld [vmem:[#allocation2 + $0x25c] sm:$0xff]
      %v1311 = vld [vmem:[#allocation2 + $0x264] sm:$0xf]
      %v1312 = vld [vmem:[#allocation2 + $0x268] sm:$0xff]
      %v1313 = vld [vmem:[#allocation2 + $0x270] sm:$0xff]
      %v1314 = vld [vmem:[#allocation2 + $0x278] sm:$0xff]
      %v1315 = vld [vmem:[#allocation2 + $0x280] sm:$0xf]
      %v1316 = vld [vmem:[#allocation2 + $0x284] sm:$0xff]
      %v1317 = vld [vmem:[#allocation2 + $0x28c] sm:$0xff]
      %v1318 = vld [vmem:[#allocation2 + $0x294] sm:$0xff]
      %v1319 = vld [vmem:[#allocation2 + $0x29c] sm:$0xf]
      %v1320 = vld [vmem:[#allocation2 + $0x2a0] sm:$0xff]
      %v1321 = vld [vmem:[#allocation2 + $0x2a8] sm:$0xff]
      %v1322 = vld [vmem:[#allocation2 + $0x2b0] sm:$0xff]
      %v1323 = vld [vmem:[#allocation2 + $0x2b8] sm:$0xf]
      %v1324 = vld [vmem:[#allocation2 + $0x2bc] sm:$0xff]
      %v1325 = vld [vmem:[#allocation2 + $0x2c4] sm:$0xff]
      %v1326 = vld [vmem:[#allocation2 + $0x2cc] sm:$0xff]
      %v1327 = vld [vmem:[#allocation2 + $0x2d4] sm:$0xf]
      %v1328 = vld [vmem:[#allocation2 + $0x2d8] sm:$0xff]
      %v1329 = vld [vmem:[#allocation2 + $0x2e0] sm:$0xff]
      %v1330 = vld [vmem:[#allocation2 + $0x2e8] sm:$0xff]
      %v1331 = vld [vmem:[#allocation2 + $0x2f0] sm:$0xf]
      %v1332 = vld [vmem:[%s2] sm:$0xff]
      %1334 = vset.pattern.permute.xlu0 0
      %1335 = vperm.xlu0 %1334, %v1332
      %v1336 = vpop.permute.xlu0 %1335
      %v1339 = vunpack.c.l.b16 %v1223
      %v1340 = vunpack.c.h.b16 %v1223
      %v1341 = vpack.c.b16 %v1339, %v1339
      %v1342 = vpack.c.b16 %v1340, %v1340
      %v1452 = vunpack.c.l.b16 %v1224
      %v1453 = vunpack.c.h.b16 %v1224
      %v1454 = vunpack.c.l.b16 %v1225
      %v1455 = vunpack.c.h.b16 %v1225
      %v1456 = vunpack.c.l.b16 %v1226
      %v1457 = vunpack.c.h.b16 %v1226
      %v1458 = vunpack.c.l.b16 %v1227
      %v1459 = vunpack.c.l.b16 %v1228
      %v1460 = vunpack.c.h.b16 %v1228
      %v1461 = vunpack.c.l.b16 %v1229
      %v1462 = vunpack.c.h.b16 %v1229
      %v1463 = vunpack.c.l.b16 %v1230
      %v1464 = vunpack.c.h.b16 %v1230
      %v1465 = vunpack.c.l.b16 %v1231
      %v1466 = vunpack.c.l.b16 %v1232
      %v1467 = vunpack.c.h.b16 %v1232
      %v1468 = vunpack.c.l.b16 %v1233
      %v1469 = vunpack.c.h.b16 %v1233
      %v1470 = vunpack.c.l.b16 %v1234
      %v1471 = vunpack.c.h.b16 %v1234
      %v1472 = vunpack.c.l.b16 %v1235
      %v1473 = vunpack.c.l.b16 %v1236
      %v1474 = vunpack.c.h.b16 %v1236
      %v1475 = vunpack.c.l.b16 %v1237
      %v1476 = vunpack.c.h.b16 %v1237
      %v1477 = vunpack.c.l.b16 %v1238
      %v1478 = vunpack.c.h.b16 %v1238
      %v1479 = vunpack.c.l.b16 %v1239
      %v1480 = vunpack.c.l.b16 %v1240
      %v1481 = vunpack.c.h.b16 %v1240
      %v1482 = vunpack.c.l.b16 %v1241
      %v1483 = vunpack.c.h.b16 %v1241
      %v1484 = vunpack.c.l.b16 %v1242
      %v1485 = vunpack.c.h.b16 %v1242
      %v1486 = vunpack.c.l.b16 %v1243
      %v1487 = vunpack.c.l.b16 %v1244
      %v1488 = vunpack.c.h.b16 %v1244
      %v1489 = vunpack.c.l.b16 %v1245
      %v1490 = vunpack.c.h.b16 %v1245
      %v1491 = vunpack.c.l.b16 %v1246
      %v1492 = vunpack.c.h.b16 %v1246
      %v1493 = vunpack.c.l.b16 %v1247
      %v1494 = vunpack.c.l.b16 %v1248
      %v1495 = vunpack.c.h.b16 %v1248
      %v1496 = vunpack.c.l.b16 %v1249
      %v1497 = vunpack.c.h.b16 %v1249
      %v1498 = vunpack.c.l.b16 %v1250
      %v1499 = vunpack.c.h.b16 %v1250
      %v1500 = vunpack.c.l.b16 %v1251
      %v1501 = vunpack.c.l.b16 %v1252
      %v1502 = vunpack.c.h.b16 %v1252
      %v1503 = vunpack.c.l.b16 %v1253
      %v1504 = vunpack.c.h.b16 %v1253
      %v1505 = vunpack.c.l.b16 %v1254
      %v1506 = vunpack.c.h.b16 %v1254
      %v1507 = vunpack.c.l.b16 %v1255
      %v1508 = vunpack.c.l.b16 %v1256
      %v1509 = vunpack.c.h.b16 %v1256
      %v1510 = vunpack.c.l.b16 %v1257
      %v1511 = vunpack.c.h.b16 %v1257
      %v1512 = vunpack.c.l.b16 %v1258
      %v1513 = vunpack.c.h.b16 %v1258
      %v1514 = vunpack.c.l.b16 %v1259
      %v1515 = vunpack.c.l.b16 %v1260
      %v1516 = vunpack.c.h.b16 %v1260
      %v1517 = vunpack.c.l.b16 %v1261
      %v1518 = vunpack.c.h.b16 %v1261
      %v1519 = vunpack.c.l.b16 %v1262
      %v1520 = vunpack.c.h.b16 %v1262
      %v1521 = vunpack.c.l.b16 %v1263
      %v1522 = vunpack.c.l.b16 %v1264
      %v1523 = vunpack.c.h.b16 %v1264
      %v1524 = vunpack.c.l.b16 %v1265
      %v1525 = vunpack.c.h.b16 %v1265
      %v1526 = vunpack.c.l.b16 %v1266
      %v1527 = vunpack.c.h.b16 %v1266
      %v1528 = vunpack.c.l.b16 %v1267
      %v1529 = vunpack.c.l.b16 %v1268
      %v1530 = vunpack.c.h.b16 %v1268
      %v1531 = vunpack.c.l.b16 %v1269
      %v1532 = vunpack.c.h.b16 %v1269
      %v1533 = vunpack.c.l.b16 %v1270
      %v1534 = vunpack.c.h.b16 %v1270
      %v1535 = vunpack.c.l.b16 %v1271
      %v1536 = vunpack.c.l.b16 %v1272
      %v1537 = vunpack.c.h.b16 %v1272
      %v1538 = vunpack.c.l.b16 %v1273
      %v1539 = vunpack.c.h.b16 %v1273
      %v1540 = vunpack.c.l.b16 %v1274
      %v1541 = vunpack.c.h.b16 %v1274
      %v1542 = vunpack.c.l.b16 %v1275
      %v1543 = vunpack.c.l.b16 %v1276
      %v1544 = vunpack.c.h.b16 %v1276
      %v1545 = vunpack.c.l.b16 %v1277
      %v1546 = vunpack.c.h.b16 %v1277
      %v1547 = vunpack.c.l.b16 %v1278
      %v1548 = vunpack.c.h.b16 %v1278
      %v1549 = vunpack.c.l.b16 %v1279
      %v1550 = vunpack.c.l.b16 %v1280
      %v1551 = vunpack.c.h.b16 %v1280
      %v1552 = vunpack.c.l.b16 %v1281
      %v1553 = vunpack.c.h.b16 %v1281
      %v1554 = vunpack.c.l.b16 %v1282
      %v1555 = vunpack.c.h.b16 %v1282
      %v1556 = vunpack.c.l.b16 %v1283
      %v1557 = vunpack.c.l.b16 %v1284
      %v1558 = vunpack.c.h.b16 %v1284
      %v1559 = vunpack.c.l.b16 %v1285
      %v1560 = vunpack.c.h.b16 %v1285
      %v1561 = vunpack.c.l.b16 %v1286
      %v1562 = vunpack.c.h.b16 %v1286
      %v1563 = vunpack.c.l.b16 %v1287
      %v1564 = vunpack.c.l.b16 %v1288
      %v1565 = vunpack.c.h.b16 %v1288
      %v1566 = vunpack.c.l.b16 %v1289
      %v1567 = vunpack.c.h.b16 %v1289
      %v1568 = vunpack.c.l.b16 %v1290
      %v1569 = vunpack.c.h.b16 %v1290
      %v1570 = vunpack.c.l.b16 %v1291
      %v1571 = vunpack.c.l.b16 %v1292
      %v1572 = vunpack.c.h.b16 %v1292
      %v1573 = vunpack.c.l.b16 %v1293
      %v1574 = vunpack.c.h.b16 %v1293
      %v1575 = vunpack.c.l.b16 %v1294
      %v1576 = vunpack.c.h.b16 %v1294
      %v1577 = vunpack.c.l.b16 %v1295
      %v1578 = vunpack.c.l.b16 %v1296
      %v1579 = vunpack.c.h.b16 %v1296
      %v1580 = vunpack.c.l.b16 %v1297
      %v1581 = vunpack.c.h.b16 %v1297
      %v1582 = vunpack.c.l.b16 %v1298
      %v1583 = vunpack.c.h.b16 %v1298
      %v1584 = vunpack.c.l.b16 %v1299
      %v1585 = vunpack.c.l.b16 %v1300
      %v1586 = vunpack.c.h.b16 %v1300
      %v1587 = vunpack.c.l.b16 %v1301
      %v1588 = vunpack.c.h.b16 %v1301
      %v1589 = vunpack.c.l.b16 %v1302
      %v1590 = vunpack.c.h.b16 %v1302
      %v1591 = vunpack.c.l.b16 %v1303
      %v1592 = vunpack.c.l.b16 %v1304
      %v1593 = vunpack.c.h.b16 %v1304
      %v1594 = vunpack.c.l.b16 %v1305
      %v1595 = vunpack.c.h.b16 %v1305
      %v1596 = vunpack.c.l.b16 %v1306
      %v1597 = vunpack.c.h.b16 %v1306
      %v1598 = vunpack.c.l.b16 %v1307
      %v1599 = vunpack.c.l.b16 %v1308
      %v1600 = vunpack.c.h.b16 %v1308
      %v1601 = vunpack.c.l.b16 %v1309
      %v1602 = vunpack.c.h.b16 %v1309
      %v1603 = vunpack.c.l.b16 %v1310
      %v1604 = vunpack.c.h.b16 %v1310
      %v1605 = vunpack.c.l.b16 %v1311
      %v1606 = vunpack.c.l.b16 %v1312
      %v1607 = vunpack.c.h.b16 %v1312
      %v1608 = vunpack.c.l.b16 %v1313
      %v1609 = vunpack.c.h.b16 %v1313
      %v1610 = vunpack.c.l.b16 %v1314
      %v1611 = vunpack.c.h.b16 %v1314
      %v1612 = vunpack.c.l.b16 %v1315
      %v1613 = vunpack.c.l.b16 %v1316
      %v1614 = vunpack.c.h.b16 %v1316
      %v1615 = vunpack.c.l.b16 %v1317
      %v1616 = vunpack.c.h.b16 %v1317
      %v1617 = vunpack.c.l.b16 %v1318
      %v1618 = vunpack.c.h.b16 %v1318
      %v1619 = vunpack.c.l.b16 %v1319
      %v1620 = vunpack.c.l.b16 %v1320
      %v1621 = vunpack.c.h.b16 %v1320
      %v1622 = vunpack.c.l.b16 %v1321
      %v1623 = vunpack.c.h.b16 %v1321
      %v1624 = vunpack.c.l.b16 %v1322
      %v1625 = vunpack.c.h.b16 %v1322
      %v1626 = vunpack.c.l.b16 %v1323
      %v1627 = vunpack.c.l.b16 %v1324
      %v1628 = vunpack.c.h.b16 %v1324
      %v1629 = vunpack.c.l.b16 %v1325
      %v1630 = vunpack.c.h.b16 %v1325
      %v1631 = vunpack.c.l.b16 %v1326
      %v1632 = vunpack.c.h.b16 %v1326
      %v1633 = vunpack.c.l.b16 %v1327
      %v1634 = vunpack.c.l.b16 %v1328
      %v1635 = vunpack.c.h.b16 %v1328
      %v1636 = vunpack.c.l.b16 %v1329
      %v1637 = vunpack.c.h.b16 %v1329
      %v1638 = vunpack.c.l.b16 %v1330
      %v1639 = vunpack.c.h.b16 %v1330
      %v1640 = vunpack.c.l.b16 %v1331
      %v1641 = vpack.c.b16 %v1459, %v1452
      %v1642 = vpack.c.b16 %v1460, %v1453
      %v1643 = vpack.c.b16 %v1461, %v1454
      %v1644 = vpack.c.b16 %v1462, %v1455
      %v1645 = vpack.c.b16 %v1463, %v1456
      %v1646 = vpack.c.b16 %v1464, %v1457
      %v1647 = vpack.c.b16 %v1465, %v1458
      %v1648 = vpack.c.b16 %v1473, %v1466
      %v1649 = vpack.c.b16 %v1474, %v1467
      %v1650 = vpack.c.b16 %v1475, %v1468
      %v1651 = vpack.c.b16 %v1476, %v1469
      %v1652 = vpack.c.b16 %v1477, %v1470
      %v1653 = vpack.c.b16 %v1478, %v1471
      %v1654 = vpack.c.b16 %v1479, %v1472
      %v1655 = vpack.c.b16 %v1487, %v1480
      %v1656 = vpack.c.b16 %v1488, %v1481
      %v1657 = vpack.c.b16 %v1489, %v1482
      %v1658 = vpack.c.b16 %v1490, %v1483
      %v1659 = vpack.c.b16 %v1491, %v1484
      %v1660 = vpack.c.b16 %v1492, %v1485
      %v1661 = vpack.c.b16 %v1493, %v1486
      %v1662 = vpack.c.b16 %v1501, %v1494
      %v1663 = vpack.c.b16 %v1502, %v1495
      %v1664 = vpack.c.b16 %v1503, %v1496
      %v1665 = vpack.c.b16 %v1504, %v1497
      %v1666 = vpack.c.b16 %v1505, %v1498
      %v1667 = vpack.c.b16 %v1506, %v1499
      %v1668 = vpack.c.b16 %v1507, %v1500
      %v1669 = vpack.c.b16 %v1515, %v1508
      %v1670 = vpack.c.b16 %v1516, %v1509
      %v1671 = vpack.c.b16 %v1517, %v1510
      %v1672 = vpack.c.b16 %v1518, %v1511
      %v1673 = vpack.c.b16 %v1519, %v1512
      %v1674 = vpack.c.b16 %v1520, %v1513
      %v1675 = vpack.c.b16 %v1521, %v1514
      %v1676 = vpack.c.b16 %v1529, %v1522
      %v1677 = vpack.c.b16 %v1530, %v1523
      %v1678 = vpack.c.b16 %v1531, %v1524
      %v1679 = vpack.c.b16 %v1532, %v1525
      %v1680 = vpack.c.b16 %v1533, %v1526
      %v1681 = vpack.c.b16 %v1534, %v1527
      %v1682 = vpack.c.b16 %v1535, %v1528
      %v1683 = vpack.c.b16 %v1543, %v1536
      %v1684 = vpack.c.b16 %v1544, %v1537
      %v1685 = vpack.c.b16 %v1545, %v1538
      %v1686 = vpack.c.b16 %v1546, %v1539
      %v1687 = vpack.c.b16 %v1547, %v1540
      %v1688 = vpack.c.b16 %v1548, %v1541
      %v1689 = vpack.c.b16 %v1549, %v1542
      %v1690 = vpack.c.b16 %v1557, %v1550
      %v1691 = vpack.c.b16 %v1558, %v1551
      %v1692 = vpack.c.b16 %v1559, %v1552
      %v1693 = vpack.c.b16 %v1560, %v1553
      %v1694 = vpack.c.b16 %v1561, %v1554
      %v1695 = vpack.c.b16 %v1562, %v1555
      %v1696 = vpack.c.b16 %v1563, %v1556
      %v1697 = vpack.c.b16 %v1571, %v1564
      %v1698 = vpack.c.b16 %v1572, %v1565
      %v1699 = vpack.c.b16 %v1573, %v1566
      %v1700 = vpack.c.b16 %v1574, %v1567
      %v1701 = vpack.c.b16 %v1575, %v1568
      %v1702 = vpack.c.b16 %v1576, %v1569
      %v1703 = vpack.c.b16 %v1577, %v1570
      %v1704 = vpack.c.b16 %v1585, %v1578
      %v1705 = vpack.c.b16 %v1586, %v1579
      %v1706 = vpack.c.b16 %v1587, %v1580
      %v1707 = vpack.c.b16 %v1588, %v1581
      %v1708 = vpack.c.b16 %v1589, %v1582
      %v1709 = vpack.c.b16 %v1590, %v1583
      %v1710 = vpack.c.b16 %v1591, %v1584
      %v1711 = vpack.c.b16 %v1599, %v1592
      %v1712 = vpack.c.b16 %v1600, %v1593
      %v1713 = vpack.c.b16 %v1601, %v1594
      %v1714 = vpack.c.b16 %v1602, %v1595
      %v1715 = vpack.c.b16 %v1603, %v1596
      %v1716 = vpack.c.b16 %v1604, %v1597
      %v1717 = vpack.c.b16 %v1605, %v1598
      %v1718 = vpack.c.b16 %v1613, %v1606
      %v1719 = vpack.c.b16 %v1614, %v1607
      %v1720 = vpack.c.b16 %v1615, %v1608
      %v1721 = vpack.c.b16 %v1616, %v1609
      %v1722 = vpack.c.b16 %v1617, %v1610
      %v1723 = vpack.c.b16 %v1618, %v1611
      %v1724 = vpack.c.b16 %v1619, %v1612
      %v1725 = vpack.c.b16 %v1627, %v1620
      %v1726 = vpack.c.b16 %v1628, %v1621
      %v1727 = vpack.c.b16 %v1629, %v1622
      %v1728 = vpack.c.b16 %v1630, %v1623
      %v1729 = vpack.c.b16 %v1631, %v1624
      %v1730 = vpack.c.b16 %v1632, %v1625
      %v1731 = vpack.c.b16 %v1633, %v1626
      %v1732 = vpack.c.b16 %v1634, %v1634
      %v1733 = vpack.c.b16 %v1635, %v1635
      %v1734 = vpack.c.b16 %v1636, %v1636
      %v1735 = vpack.c.b16 %v1637, %v1637
      %v1736 = vpack.c.b16 %v1638, %v1638
      %v1737 = vpack.c.b16 %v1639, %v1639
      %v1738 = vpack.c.b16 %v1640, %v1640
      %vm1830 = vcmask 719872
      %v1832 = vsel %vm1830, %v1342, 0
      %v1835 = vsel %vm296, %v1732, 0
      %v1838 = vsel %vm296, %v1733, 0
      %v1841 = vsel %vm296, %v1734, 0
      %v1844 = vsel %vm296, %v1735, 0
      %v1847 = vsel %vm296, %v1736, 0
      %v1850 = vsel %vm296, %v1737, 0
      %v1853 = vsel %vm296, %v1738, 0
      %1855 = vmatprep.subr.bf16.mxu0 %v1642
      %1856 = vmatpush1.bf16.msra.mxu0 %v1641
      %1857 = vmatprep.subr.bf16.mxu0 %v1649
      %1858 = vmatpush1.bf16.msra.mxu0 %v1648
      %1859 = vmatprep.subr.bf16.mxu0 %v1656
      %1860 = vmatpush1.bf16.msra.mxu0 %v1655
      %1861 = vmatprep.subr.bf16.mxu0 %v1663
      %1862 = vmatpush1.bf16.msra.mxu0 %v1662
      %1863 = vmatprep.subr.bf16.mxu0 %v1670
      %1864 = vmatpush1.bf16.msra.mxu0 %v1669
      %1865 = vmatprep.subr.bf16.mxu0 %v1677
      %1866 = vmatpush1.bf16.msra.mxu0 %v1676
      %1867 = vmatprep.subr.bf16.mxu0 %v1684
      %1868 = vmatpush1.bf16.msra.mxu0 %v1683
      %1869 = vmatprep.subr.bf16.mxu0 %v1691
      %1870 = vmatpush1.bf16.msra.mxu0 %v1690
      %1871 = vmatprep.subr.bf16.mxu0 %v1698
      %1872 = vmatpush1.bf16.msra.mxu0 %v1697
      %1873 = vmatprep.subr.bf16.mxu0 %v1705
      %1874 = vmatpush1.bf16.msra.mxu0 %v1704
      %1875 = vmatprep.subr.bf16.mxu0 %v1712
      %1876 = vmatpush1.bf16.msra.mxu0 %v1711
      %1877 = vmatprep.subr.bf16.mxu0 %v1719
      %1878 = vmatpush1.bf16.msra.mxu0 %v1718
      %1879 = vmatprep.subr.bf16.mxu0 %v1726
      %1880 = vmatpush1.bf16.msra.mxu0 %v1725
      %1881 = vmatprep.subr.bf16.mxu0 %v1838
      %1882 = vmatpush1.bf16.msra.mxu0 %v1835
      %1883 = vmatprep.subr.bf16.mxu0 0
      %1884 = vmatpush1.bf16.msra.mxu0 0
      %1885 = vmatprep.subr.bf16.mxu0 0
      %1886 = vmatpush1.bf16.msra.mxu0 0
      %1887 = vmatprep.mubr.bf16.mxu0 %v1832
      %1888 = vmatmul.mubr.bf16.gmra.mrb[0].mxu0 %v1341
      %v1889 = vpop.f32.mrb[0].mxu0
      %v1890 = vadd.f32 %v1336, %v1889
      %v1891 = vpop.f32.mrb[0].mxu0
      %v1892 = vadd.f32 %v1336, %v1891
      %v1893 = vpop.f32.mrb[0].mxu0
      %v1894 = vpop.f32.mrb[0].mxu0
      %1895 = vdwg.mxu0
      %1896 = vmatprep.subr.bf16.mxu0 %v1644
      %1897 = vmatpush1.bf16.msra.mxu0 %v1643
      %1898 = vmatprep.subr.bf16.mxu0 %v1651
      %1899 = vmatpush1.bf16.msra.mxu0 %v1650
      %1900 = vmatprep.subr.bf16.mxu0 %v1658
      %1901 = vmatpush1.bf16.msra.mxu0 %v1657
      %1902 = vmatprep.subr.bf16.mxu0 %v1665
      %1903 = vmatpush1.bf16.msra.mxu0 %v1664
      %1904 = vmatprep.subr.bf16.mxu0 %v1672
      %1905 = vmatpush1.bf16.msra.mxu0 %v1671
      %1906 = vmatprep.subr.bf16.mxu0 %v1679
      %1907 = vmatpush1.bf16.msra.mxu0 %v1678
      %1908 = vmatprep.subr.bf16.mxu0 %v1686
      %1909 = vmatpush1.bf16.msra.mxu0 %v1685
      %1910 = vmatprep.subr.bf16.mxu0 %v1693
      %1911 = vmatpush1.bf16.msra.mxu0 %v1692
      %1912 = vmatprep.subr.bf16.mxu0 %v1700
      %1913 = vmatpush1.bf16.msra.mxu0 %v1699
      %1914 = vmatprep.subr.bf16.mxu0 %v1707
      %1915 = vmatpush1.bf16.msra.mxu0 %v1706
      %1916 = vmatprep.subr.bf16.mxu0 %v1714
      %1917 = vmatpush1.bf16.msra.mxu0 %v1713
      %1918 = vmatprep.subr.bf16.mxu0 %v1721
      %1919 = vmatpush1.bf16.msra.mxu0 %v1720
      %1920 = vmatprep.subr.bf16.mxu0 %v1728
      %1921 = vmatpush1.bf16.msra.mxu0 %v1727
      %1922 = vmatprep.subr.bf16.mxu0 %v1844
      %1923 = vmatpush1.bf16.msra.mxu0 %v1841
      %1924 = vmatprep.subr.bf16.mxu0 0
      %1925 = vmatpush1.bf16.msra.mxu0 0
      %1926 = vmatprep.subr.bf16.mxu0 0
      %1927 = vmatpush1.bf16.msra.mxu0 0
      %1928 = vmatprep.mubr.bf16.mxu0 %v1832
      %1929 = vmatmul.mubr.bf16.gmra.mrb[0].mxu0 %v1341
      %v1930 = vpop.f32.mrb[0].mxu0
      %v1931 = vadd.f32 %v1336, %v1930
      %v1932 = vpop.f32.mrb[0].mxu0
      %v1933 = vadd.f32 %v1336, %v1932
      %v1934 = vpop.f32.mrb[0].mxu0
      %v1935 = vpop.f32.mrb[0].mxu0
      %1936 = vdwg.mxu0
      %1937 = vmatprep.subr.bf16.mxu0 %v1646
      %1938 = vmatpush1.bf16.msra.mxu0 %v1645
      %1939 = vmatprep.subr.bf16.mxu0 %v1653
      %1940 = vmatpush1.bf16.msra.mxu0 %v1652
      %1941 = vmatprep.subr.bf16.mxu0 %v1660
      %1942 = vmatpush1.bf16.msra.mxu0 %v1659
      %1943 = vmatprep.subr.bf16.mxu0 %v1667
      %1944 = vmatpush1.bf16.msra.mxu0 %v1666
      %1945 = vmatprep.subr.bf16.mxu0 %v1674
      %1946 = vmatpush1.bf16.msra.mxu0 %v1673
      %1947 = vmatprep.subr.bf16.mxu0 %v1681
      %1948 = vmatpush1.bf16.msra.mxu0 %v1680
      %1949 = vmatprep.subr.bf16.mxu0 %v1688
      %1950 = vmatpush1.bf16.msra.mxu0 %v1687
      %1951 = vmatprep.subr.bf16.mxu0 %v1695
      %1952 = vmatpush1.bf16.msra.mxu0 %v1694
      %1953 = vmatprep.subr.bf16.mxu0 %v1702
      %1954 = vmatpush1.bf16.msra.mxu0 %v1701
      %1955 = vmatprep.subr.bf16.mxu0 %v1709
      %1956 = vmatpush1.bf16.msra.mxu0 %v1708
      %1957 = vmatprep.subr.bf16.mxu0 %v1716
      %1958 = vmatpush1.bf16.msra.mxu0 %v1715
      %1959 = vmatprep.subr.bf16.mxu0 %v1723
      %1960 = vmatpush1.bf16.msra.mxu0 %v1722
      %1961 = vmatprep.subr.bf16.mxu0 %v1730
      %1962 = vmatpush1.bf16.msra.mxu0 %v1729
      %1963 = vmatprep.subr.bf16.mxu0 %v1850
      %1964 = vmatpush1.bf16.msra.mxu0 %v1847
      %1965 = vmatprep.subr.bf16.mxu0 0
      %1966 = vmatpush1.bf16.msra.mxu0 0
      %1967 = vmatprep.subr.bf16.mxu0 0
      %1968 = vmatpush1.bf16.msra.mxu0 0
      %1969 = vmatprep.mubr.bf16.mxu0 %v1832
      %1970 = vmatmul.mubr.bf16.gmra.mrb[0].mxu0 %v1341
      %v1971 = vpop.f32.mrb[0].mxu0
      %v1972 = vadd.f32 %v1336, %v1971
      %v1973 = vpop.f32.mrb[0].mxu0
      %v1974 = vadd.f32 %v1336, %v1973
      %v1975 = vpop.f32.mrb[0].mxu0
      %v1976 = vpop.f32.mrb[0].mxu0
      %1977 = vdwg.mxu0
      %1978 = vmatprep.subr.bf16.mxu0 0
      %1979 = vmatpush1.bf16.msra.mxu0 %v1647
      %1980 = vmatprep.subr.bf16.mxu0 0
      %1981 = vmatpush1.bf16.msra.mxu0 %v1654
      %1982 = vmatprep.subr.bf16.mxu0 0
      %1983 = vmatpush1.bf16.msra.mxu0 %v1661
      %1984 = vmatprep.subr.bf16.mxu0 0
      %1985 = vmatpush1.bf16.msra.mxu0 %v1668
      %1986 = vmatprep.subr.bf16.mxu0 0
      %1987 = vmatpush1.bf16.msra.mxu0 %v1675
      %1988 = vmatprep.subr.bf16.mxu0 0
      %1989 = vmatpush1.bf16.msra.mxu0 %v1682
      %1990 = vmatprep.subr.bf16.mxu0 0
      %1991 = vmatpush1.bf16.msra.mxu0 %v1689
      %1992 = vmatprep.subr.bf16.mxu0 0
      %1993 = vmatpush1.bf16.msra.mxu0 %v1696
      %1994 = vmatprep.subr.bf16.mxu0 0
      %1995 = vmatpush1.bf16.msra.mxu0 %v1703
      %1996 = vmatprep.subr.bf16.mxu0 0
      %1997 = vmatpush1.bf16.msra.mxu0 %v1710
      %1998 = vmatprep.subr.bf16.mxu0 0
      %1999 = vmatpush1.bf16.msra.mxu0 %v1717
      %2000 = vmatprep.subr.bf16.mxu0 0
      %2001 = vmatpush1.bf16.msra.mxu0 %v1724
      %2002 = vmatprep.subr.bf16.mxu0 0
      %2003 = vmatpush1.bf16.msra.mxu0 %v1731
      %2004 = vmatprep.subr.bf16.mxu0 0
      %2005 = vmatpush1.bf16.msra.mxu0 %v1853
      %2006 = vmatprep.subr.bf16.mxu0 0
      %2007 = vmatpush1.bf16.msra.mxu0 0
      %2008 = vmatprep.subr.bf16.mxu0 0
      %2009 = vmatpush1.bf16.msra.mxu0 0
      %2010 = vmatprep.mubr.bf16.mxu0 %v1832
      %2011 = vmatmul.mubr.bf16.gmra.mrb[0].mxu0 %v1341
      %v2012 = vpop.f32.mrb[0].mxu0
      %v2013 = vadd.f32 %v1336, %v2012
      %v2014 = vpop.f32.mrb[0].mxu0
      %v2015 = vpop.f32.mrb[0].mxu0
      %v2016 = vpop.f32.mrb[0].mxu0
      %2017 = vdwg.mxu0
      %v2018 = vmax.f32 %v1890, 0.0
      %v2019 = vmax.f32 %v1892, 0.0
      %v2020 = vmax.f32 %v1931, 0.0
      %v2021 = vmax.f32 %v1933, 0.0
      %v2022 = vmax.f32 %v1972, 0.0
      %v2023 = vmax.f32 %v1974, 0.0
      %v2024 = vmax.f32 %v2013, 0.0
      %v2025 = vld [vmem:[%s5] sm:$0x7f]
      %v2027 = vlaneseq
      %v2028 = vshrl.u32 %v2027, 7
      %v2029 = vsub.s32 0, %v2028
      %v2030 = vrot.slane %v2025, %v2029
      %v2031 = vlaneseq
      %v2032 = vshrl.u32 %v2031, 7
      %v2033 = vsub.s32 1, %v2032
      %v2034 = vrot.slane %v2025, %v2033
      %v2035 = vlaneseq
      %v2036 = vshrl.u32 %v2035, 7
      %v2037 = vsub.s32 2, %v2036
      %v2038 = vrot.slane %v2025, %v2037
      %v2039 = vlaneseq
      %v2040 = vshrl.u32 %v2039, 7
      %v2041 = vsub.s32 3, %v2040
      %v2042 = vrot.slane %v2025, %v2041
      %v2043 = vlaneseq
      %v2044 = vshrl.u32 %v2043, 7
      %v2045 = vsub.s32 4, %v2044
      %v2046 = vrot.slane %v2025, %v2045
      %v2047 = vlaneseq
      %v2048 = vshrl.u32 %v2047, 7
      %v2049 = vsub.s32 5, %v2048
      %v2050 = vrot.slane %v2025, %v2049
      %v2051 = vlaneseq
      %v2052 = vshrl.u32 %v2051, 7
      %v2053 = vsub.s32 6, %v2052
      %v2054 = vrot.slane %v2025, %v2053
      %v2062 = vmul.f32 %v2018, %v2030
      %v2063 = vmul.f32 %v2019, %v2034
      %v2064 = vmul.f32 %v2020, %v2038
      %v2065 = vmul.f32 %v2021, %v2042
      %v2066 = vmul.f32 %v2022, %v2046
      %v2067 = vmul.f32 %v2023, %v2050
      %v2068 = vmul.f32 %v2024, %v2054
      %v2069 = vpack.c.bf16 %v2062, %v2062
      %v2070 = vpack.c.bf16 %v2063, %v2063
      %v2071 = vpack.c.bf16 %v2064, %v2064
      %v2072 = vpack.c.bf16 %v2065, %v2065
      %v2073 = vpack.c.bf16 %v2066, %v2066
      %v2074 = vpack.c.bf16 %v2067, %v2067
      %v2075 = vpack.c.bf16 %v2068, %v2068
      %v2083 = vunpack.c.l.b16 %v2069
      %v2084 = vunpack.c.l.b16 %v2070
      %v2085 = vunpack.c.l.b16 %v2071
      %v2086 = vunpack.c.l.b16 %v2072
      %v2087 = vunpack.c.l.b16 %v2073
      %v2088 = vunpack.c.l.b16 %v2074
      %v2089 = vunpack.c.l.b16 %v2075
      %v2090 = vpack.c.b16 %v2084, %v2083
      %v2091 = vpack.c.b16 %v2086, %v2085
      %v2092 = vpack.c.b16 %v2088, %v2087
      %v2093 = vpack.c.b16 %v2089, %v2089
      %2094 = vrot.lane.b32.xlu0 %v2090, 111
      %v2095 = vpop.permute.xlu0 %2094
      %2096 = vrot.lane.b32.xlu0 %v2091, 111
      %v2097 = vpop.permute.xlu0 %2096
      %2098 = vrot.lane.b32.xlu0 %v2092, 111
      %v2099 = vpop.permute.xlu0 %2098
      %2100 = vrot.lane.b32.xlu0 %v2093, 111
      %v2101 = vpop.permute.xlu0 %2100
      %v2102 = vrot.slane %v2095, 4
      %v2103 = vrot.slane %v2097, 4
      %v2104 = vrot.slane %v2099, 4
      %vm2105 = vcmask 908288
      %v2106 = vsel %vm2105, %v2102, %v2095
      %v2107 = vsel %vm329, %v2102, %v2103
      %v2108 = vsel %vm2105, %v2107, %v2097
      %v2109 = vsel %vm329, %v2103, %v2104
      %v2110 = vsel %vm2105, %v2109, %v2099
      %v2111 = vsel %vm2105, %v2104, %v2101
      %vm2116 = vcmask 1044344
      %vm2117 = vcmask 1047556
      %vm2118 = vmor %vm2117, %vm2116
      %2119 = vst.msk [vmem:[#allocation3] sm:$0xff] %vm2118, %v2106
      %2120 = vst [vmem:[#allocation3 + $0x8] sm:$0xff] %v2108
      %2121 = vst [vmem:[#allocation3 + $0x10] sm:$0xff] %v2110
      %vm2122 = vcmask 986112
      %2123 = vst.msk [vmem:[#allocation3 + $0x18] sm:$0xf] %vm2122, %v2111
      %v2124 = vld [vmem:[#allocation3] sm:$0xff]
      %v2125 = vld [vmem:[#allocation3 + $0x8] sm:$0xff]
      %v2126 = vld [vmem:[#allocation3 + $0x10] sm:$0xff]
      %v2127 = vld [vmem:[#allocation3 + $0x18] sm:$0xf]
      %2128 = vst [vmem:[#allocation2] sm:$0xff] %v2124
      %2129 = vst [vmem:[#allocation2 + $0x8] sm:$0xff] %v2125
      %2130 = vst [vmem:[#allocation2 + $0x10] sm:$0xff] %v2126
      %2131 = vst.msk [vmem:[#allocation2 + $0x18] sm:$0xf] %vm307, %v2127
      %v2132 = vld [vmem:[#allocation3] sm:$0xff]
      %v2133 = vld [vmem:[#allocation3 + $0x8] sm:$0xff]
      %v2134 = vld [vmem:[#allocation3 + $0x10] sm:$0xff]
      %v2135 = vld [vmem:[#allocation3 + $0x18] sm:$0xf]
      %2140 = vrot.lane.b32.xlu0 %v2132, 127
      %v2141 = vpop.permute.xlu0 %2140
      %2142 = vrot.lane.b32.xlu0 %v2133, 127
      %v2143 = vpop.permute.xlu0 %2142
      %2144 = vrot.lane.b32.xlu0 %v2134, 127
      %v2145 = vpop.permute.xlu0 %2144
      %2146 = vrot.lane.b32.xlu0 %v2135, 127
      %v2147 = vpop.permute.xlu0 %2146
      %v2148 = vrot.slane %v2141, 4
      %v2149 = vrot.slane %v2143, 4
      %v2150 = vrot.slane %v2145, 4
      %v2151 = vrot.slane %v2147, 4
      %v2152 = vsel %vm329, %v2148, %v2149
      %v2153 = vsel %vm331, %v2141, %v2152
      %v2154 = vsel %vm329, %v2149, %v2150
      %v2155 = vsel %vm331, %v2143, %v2154
      %v2156 = vsel %vm329, %v2150, %v2151
      %v2157 = vsel %vm331, %v2145, %v2156
      %2162 = vst [vmem:[#allocation2 + $0x1c] sm:$0xff] %v2153
      %2163 = vst [vmem:[#allocation2 + $0x24] sm:$0xff] %v2155
      %2164 = vst [vmem:[#allocation2 + $0x2c] sm:$0xff] %v2157
      %2165 = vst.msk [vmem:[#allocation2 + $0x34] sm:$0xf] %vm307, %v2147
      %v2166 = vld [vmem:[#allocation3] sm:$0xff]
      %v2167 = vld [vmem:[#allocation3 + $0x8] sm:$0xff]
      %v2168 = vld [vmem:[#allocation3 + $0x10] sm:$0xff]
      %v2169 = vld [vmem:[#allocation3 + $0x18] sm:$0xf]
      %2174 = vrot.lane.b32.xlu0 %v2166, 126
      %v2175 = vpop.permute.xlu0 %2174
      %2176 = vrot.lane.b32.xlu0 %v2167, 126
      %v2177 = vpop.permute.xlu0 %2176
      %2178 = vrot.lane.b32.xlu0 %v2168, 126
      %v2179 = vpop.permute.xlu0 %2178
      %2180 = vrot.lane.b32.xlu0 %v2169, 126
      %v2181 = vpop.permute.xlu0 %2180
      %v2182 = vrot.slane %v2175, 4
      %v2183 = vrot.slane %v2177, 4
      %v2184 = vrot.slane %v2179, 4
      %v2185 = vrot.slane %v2181, 4
      %v2186 = vsel %vm329, %v2182, %v2183
      %v2187 = vsel %vm366, %v2175, %v2186
      %v2188 = vsel %vm329, %v2183, %v2184
      %v2189 = vsel %vm366, %v2177, %v2188
      %v2190 = vsel %vm329, %v2184, %v2185
      %v2191 = vsel %vm366, %v2179, %v2190
      %2196 = vst [vmem:[#allocation2 + $0x38] sm:$0xff] %v2187
      %2197 = vst [vmem:[#allocation2 + $0x40] sm:$0xff] %v2189
      %2198 = vst [vmem:[#allocation2 + $0x48] sm:$0xff] %v2191
      %2199 = vst.msk [vmem:[#allocation2 + $0x50] sm:$0xf] %vm307, %v2181
      %v2200 = vld [vmem:[#allocation3] sm:$0xff]
      %v2201 = vld [vmem:[#allocation3 + $0x8] sm:$0xff]
      %v2202 = vld [vmem:[#allocation3 + $0x10] sm:$0xff]
      %v2203 = vld [vmem:[#allocation3 + $0x18] sm:$0xf]
      %2208 = vrot.lane.b32.xlu0 %v2200, 118
      %v2209 = vpop.permute.xlu0 %2208
      %2210 = vrot.lane.b32.xlu0 %v2201, 118
      %v2211 = vpop.permute.xlu0 %2210
      %2212 = vrot.lane.b32.xlu0 %v2202, 118
      %v2213 = vpop.permute.xlu0 %2212
      %2214 = vrot.lane.b32.xlu0 %v2203, 118
      %v2215 = vpop.permute.xlu0 %2214
      %v2216 = vrot.slane %v2209, 4
      %v2217 = vrot.slane %v2211, 4
      %v2218 = vrot.slane %v2213, 4
      %v2219 = vrot.slane %v2215, 4
      %v2220 = vsel %vm329, %v2216, %v2217
      %v2221 = vsel %vm401, %v2209, %v2220
      %v2222 = vsel %vm329, %v2217, %v2218
      %v2223 = vsel %vm401, %v2211, %v2222
      %v2224 = vsel %vm329, %v2218, %v2219
      %v2225 = vsel %vm401, %v2213, %v2224
      %2230 = vst [vmem:[#allocation2 + $0x54] sm:$0xff] %v2221
      %2231 = vst [vmem:[#allocation2 + $0x5c] sm:$0xff] %v2223
      %2232 = vst [vmem:[#allocation2 + $0x64] sm:$0xff] %v2225
      %2233 = vst.msk [vmem:[#allocation2 + $0x6c] sm:$0xf] %vm307, %v2215
      %v2234 = vld [vmem:[#allocation3] sm:$0xff]
      %v2235 = vld [vmem:[#allocation3 + $0x8] sm:$0xff]
      %v2236 = vld [vmem:[#allocation3 + $0x10] sm:$0xff]
      %v2237 = vld [vmem:[#allocation3 + $0x18] sm:$0xf]
      %2242 = vrot.lane.b32.xlu0 %v2234, 117
      %v2243 = vpop.permute.xlu0 %2242
      %2244 = vrot.lane.b32.xlu0 %v2235, 117
      %v2245 = vpop.permute.xlu0 %2244
      %2246 = vrot.lane.b32.xlu0 %v2236, 117
      %v2247 = vpop.permute.xlu0 %2246
      %2248 = vrot.lane.b32.xlu0 %v2237, 117
      %v2249 = vpop.permute.xlu0 %2248
      %v2250 = vrot.slane %v2243, 4
      %v2251 = vrot.slane %v2245, 4
      %v2252 = vrot.slane %v2247, 4
      %v2253 = vrot.slane %v2249, 4
      %v2254 = vsel %vm329, %v2250, %v2251
      %v2255 = vsel %vm436, %v2243, %v2254
      %v2256 = vsel %vm329, %v2251, %v2252
      %v2257 = vsel %vm436, %v2245, %v2256
      %v2258 = vsel %vm329, %v2252, %v2253
      %v2259 = vsel %vm436, %v2247, %v2258
      %2264 = vst [vmem:[#allocation2 + $0x70] sm:$0xff] %v2255
      %2265 = vst [vmem:[#allocation2 + $0x78] sm:$0xff] %v2257
      %2266 = vst [vmem:[#allocation2 + $0x80] sm:$0xff] %v2259
      %2267 = vst.msk [vmem:[#allocation2 + $0x88] sm:$0xf] %vm307, %v2249
      %v2268 = vld [vmem:[#allocation3] sm:$0xff]
      %v2269 = vld [vmem:[#allocation3 + $0x8] sm:$0xff]
      %v2270 = vld [vmem:[#allocation3 + $0x10] sm:$0xff]
      %v2271 = vld [vmem:[#allocation3 + $0x18] sm:$0xf]
      %2276 = vrot.lane.b32.xlu0 %v2268, 116
      %v2277 = vpop.permute.xlu0 %2276
      %2278 = vrot.lane.b32.xlu0 %v2269, 116
      %v2279 = vpop.permute.xlu0 %2278
      %2280 = vrot.lane.b32.xlu0 %v2270, 116
      %v2281 = vpop.permute.xlu0 %2280
      %2282 = vrot.lane.b32.xlu0 %v2271, 116
      %v2283 = vpop.permute.xlu0 %2282
      %v2284 = vrot.slane %v2277, 4
      %v2285 = vrot.slane %v2279, 4
      %v2286 = vrot.slane %v2281, 4
      %v2287 = vrot.slane %v2283, 4
      %v2288 = vsel %vm329, %v2284, %v2285
      %v2289 = vsel %vm471, %v2277, %v2288
      %v2290 = vsel %vm329, %v2285, %v2286
      %v2291 = vsel %vm471, %v2279, %v2290
      %v2292 = vsel %vm329, %v2286, %v2287
      %v2293 = vsel %vm471, %v2281, %v2292
      %2298 = vst [vmem:[#allocation2 + $0x8c] sm:$0xff] %v2289
      %2299 = vst [vmem:[#allocation2 + $0x94] sm:$0xff] %v2291
      %2300 = vst [vmem:[#allocation2 + $0x9c] sm:$0xff] %v2293
      %2301 = vst.msk [vmem:[#allocation2 + $0xa4] sm:$0xf] %vm307, %v2283
      %v2302 = vld [vmem:[#allocation3] sm:$0xff]
      %v2303 = vld [vmem:[#allocation3 + $0x8] sm:$0xff]
      %v2304 = vld [vmem:[#allocation3 + $0x10] sm:$0xff]
      %v2305 = vld [vmem:[#allocation3 + $0x18] sm:$0xf]
      %2310 = vrot.lane.b32.xlu0 %v2302, 108
      %v2311 = vpop.permute.xlu0 %2310
      %2312 = vrot.lane.b32.xlu0 %v2303, 108
      %v2313 = vpop.permute.xlu0 %2312
      %2314 = vrot.lane.b32.xlu0 %v2304, 108
      %v2315 = vpop.permute.xlu0 %2314
      %2316 = vrot.lane.b32.xlu0 %v2305, 108
      %v2317 = vpop.permute.xlu0 %2316
      %v2318 = vrot.slane %v2311, 4
      %v2319 = vrot.slane %v2313, 4
      %v2320 = vrot.slane %v2315, 4
      %v2321 = vrot.slane %v2317, 4
      %v2322 = vsel %vm329, %v2318, %v2319
      %v2323 = vsel %vm506, %v2311, %v2322
      %v2324 = vsel %vm329, %v2319, %v2320
      %v2325 = vsel %vm506, %v2313, %v2324
      %v2326 = vsel %vm329, %v2320, %v2321
      %v2327 = vsel %vm506, %v2315, %v2326
      %2332 = vst [vmem:[#allocation2 + $0xa8] sm:$0xff] %v2323
      %2333 = vst [vmem:[#allocation2 + $0xb0] sm:$0xff] %v2325
      %2334 = vst [vmem:[#allocation2 + $0xb8] sm:$0xff] %v2327
      %2335 = vst.msk [vmem:[#allocation2 + $0xc0] sm:$0xf] %vm307, %v2317
      %v2336 = vld [vmem:[#allocation3] sm:$0xff]
      %v2337 = vld [vmem:[#allocation3 + $0x8] sm:$0xff]
      %v2338 = vld [vmem:[#allocation3 + $0x10] sm:$0xff]
      %v2339 = vld [vmem:[#allocation3 + $0x18] sm:$0xf]
      %2344 = vrot.lane.b32.xlu0 %v2336, 107
      %v2345 = vpop.permute.xlu0 %2344
      %2346 = vrot.lane.b32.xlu0 %v2337, 107
      %v2347 = vpop.permute.xlu0 %2346
      %2348 = vrot.lane.b32.xlu0 %v2338, 107
      %v2349 = vpop.permute.xlu0 %2348
      %2350 = vrot.lane.b32.xlu0 %v2339, 107
      %v2351 = vpop.permute.xlu0 %2350
      %v2352 = vrot.slane %v2345, 4
      %v2353 = vrot.slane %v2347, 4
      %v2354 = vrot.slane %v2349, 4
      %v2355 = vrot.slane %v2351, 4
      %v2356 = vsel %vm329, %v2352, %v2353
      %v2357 = vsel %vm541, %v2345, %v2356
      %v2358 = vsel %vm329, %v2353, %v2354
      %v2359 = vsel %vm541, %v2347, %v2358
      %v2360 = vsel %vm329, %v2354, %v2355
      %v2361 = vsel %vm541, %v2349, %v2360
      %2366 = vst [vmem:[#allocation2 + $0xc4] sm:$0xff] %v2357
      %2367 = vst [vmem:[#allocation2 + $0xcc] sm:$0xff] %v2359
      %2368 = vst [vmem:[#allocation2 + $0xd4] sm:$0xff] %v2361
      %2369 = vst.msk [vmem:[#allocation2 + $0xdc] sm:$0xf] %vm307, %v2351
      %v2370 = vld [vmem:[#allocation3] sm:$0xff]
      %v2371 = vld [vmem:[#allocation3 + $0x8] sm:$0xff]
      %v2372 = vld [vmem:[#allocation3 + $0x10] sm:$0xff]
      %v2373 = vld [vmem:[#allocation3 + $0x18] sm:$0xf]
      %2378 = vrot.lane.b32.xlu0 %v2370, 106
      %v2379 = vpop.permute.xlu0 %2378
      %2380 = vrot.lane.b32.xlu0 %v2371, 106
      %v2381 = vpop.permute.xlu0 %2380
      %2382 = vrot.lane.b32.xlu0 %v2372, 106
      %v2383 = vpop.permute.xlu0 %2382
      %2384 = vrot.lane.b32.xlu0 %v2373, 106
      %v2385 = vpop.permute.xlu0 %2384
      %v2386 = vrot.slane %v2379, 4
      %v2387 = vrot.slane %v2381, 4
      %v2388 = vrot.slane %v2383, 4
      %v2389 = vrot.slane %v2385, 4
      %v2390 = vsel %vm329, %v2386, %v2387
      %v2391 = vsel %vm576, %v2379, %v2390
      %v2392 = vsel %vm329, %v2387, %v2388
      %v2393 = vsel %vm576, %v2381, %v2392
      %v2394 = vsel %vm329, %v2388, %v2389
      %v2395 = vsel %vm576, %v2383, %v2394
      %2400 = vst [vmem:[#allocation2 + $0xe0] sm:$0xff] %v2391
      %2401 = vst [vmem:[#allocation2 + $0xe8] sm:$0xff] %v2393
      %2402 = vst [vmem:[#allocation2 + $0xf0] sm:$0xff] %v2395
      %2403 = vst.msk [vmem:[#allocation2 + $0xf8] sm:$0xf] %vm307, %v2385
      %v2404 = vld [vmem:[#allocation3] sm:$0xff]
      %v2405 = vld [vmem:[#allocation3 + $0x8] sm:$0xff]
      %v2406 = vld [vmem:[#allocation3 + $0x10] sm:$0xff]
      %v2407 = vld [vmem:[#allocation3 + $0x18] sm:$0xf]
      %2412 = vrot.lane.b32.xlu0 %v2404, 28
      %v2413 = vpop.permute.xlu0 %2412
      %2414 = vrot.lane.b32.xlu0 %v2405, 28
      %v2415 = vpop.permute.xlu0 %2414
      %2416 = vrot.lane.b32.xlu0 %v2406, 28
      %v2417 = vpop.permute.xlu0 %2416
      %2418 = vrot.lane.b32.xlu0 %v2407, 28
      %v2419 = vpop.permute.xlu0 %2418
      %v2420 = vrot.slane %v2413, 4
      %v2421 = vrot.slane %v2415, 4
      %v2422 = vrot.slane %v2417, 4
      %v2423 = vrot.slane %v2419, 4
      %v2424 = vsel %vm329, %v2420, %v2421
      %v2425 = vsel %vm611, %v2413, %v2424
      %v2426 = vsel %vm329, %v2421, %v2422
      %v2427 = vsel %vm611, %v2415, %v2426
      %v2428 = vsel %vm329, %v2422, %v2423
      %v2429 = vsel %vm611, %v2417, %v2428
      %2434 = vst [vmem:[#allocation2 + $0xfc] sm:$0xff] %v2425
      %2435 = vst [vmem:[#allocation2 + $0x104] sm:$0xff] %v2427
      %2436 = vst [vmem:[#allocation2 + $0x10c] sm:$0xff] %v2429
      %2437 = vst.msk [vmem:[#allocation2 + $0x114] sm:$0xf] %vm307, %v2419
      %v2438 = vld [vmem:[#allocation3] sm:$0xff]
      %v2439 = vld [vmem:[#allocation3 + $0x8] sm:$0xff]
      %v2440 = vld [vmem:[#allocation3 + $0x10] sm:$0xff]
      %v2441 = vld [vmem:[#allocation3 + $0x18] sm:$0xf]
      %2446 = vrot.lane.b32.xlu0 %v2438, 27
      %v2447 = vpop.permute.xlu0 %2446
      %2448 = vrot.lane.b32.xlu0 %v2439, 27
      %v2449 = vpop.permute.xlu0 %2448
      %2450 = vrot.lane.b32.xlu0 %v2440, 27
      %v2451 = vpop.permute.xlu0 %2450
      %2452 = vrot.lane.b32.xlu0 %v2441, 27
      %v2453 = vpop.permute.xlu0 %2452
      %v2454 = vrot.slane %v2447, 4
      %v2455 = vrot.slane %v2449, 4
      %v2456 = vrot.slane %v2451, 4
      %v2457 = vrot.slane %v2453, 4
      %v2458 = vsel %vm329, %v2454, %v2455
      %v2459 = vsel %vm646, %v2447, %v2458
      %v2460 = vsel %vm329, %v2455, %v2456
      %v2461 = vsel %vm646, %v2449, %v2460
      %v2462 = vsel %vm329, %v2456, %v2457
      %v2463 = vsel %vm646, %v2451, %v2462
      %2468 = vst [vmem:[#allocation2 + $0x118] sm:$0xff] %v2459
      %2469 = vst [vmem:[#allocation2 + $0x120] sm:$0xff] %v2461
      %2470 = vst [vmem:[#allocation2 + $0x128] sm:$0xff] %v2463
      %2471 = vst.msk [vmem:[#allocation2 + $0x130] sm:$0xf] %vm307, %v2453
      %v2472 = vld [vmem:[#allocation3] sm:$0xff]
      %v2473 = vld [vmem:[#allocation3 + $0x8] sm:$0xff]
      %v2474 = vld [vmem:[#allocation3 + $0x10] sm:$0xff]
      %v2475 = vld [vmem:[#allocation3 + $0x18] sm:$0xf]
      %2480 = vrot.lane.b32.xlu0 %v2472, 26
      %v2481 = vpop.permute.xlu0 %2480
      %2482 = vrot.lane.b32.xlu0 %v2473, 26
      %v2483 = vpop.permute.xlu0 %2482
      %2484 = vrot.lane.b32.xlu0 %v2474, 26
      %v2485 = vpop.permute.xlu0 %2484
      %2486 = vrot.lane.b32.xlu0 %v2475, 26
      %v2487 = vpop.permute.xlu0 %2486
      %v2488 = vrot.slane %v2481, 4
      %v2489 = vrot.slane %v2483, 4
      %v2490 = vrot.slane %v2485, 4
      %v2491 = vrot.slane %v2487, 4
      %v2492 = vsel %vm329, %v2488, %v2489
      %v2493 = vsel %vm681, %v2481, %v2492
      %v2494 = vsel %vm329, %v2489, %v2490
      %v2495 = vsel %vm681, %v2483, %v2494
      %v2496 = vsel %vm329, %v2490, %v2491
      %v2497 = vsel %vm681, %v2485, %v2496
      %2502 = vst [vmem:[#allocation2 + $0x134] sm:$0xff] %v2493
      %2503 = vst [vmem:[#allocation2 + $0x13c] sm:$0xff] %v2495
      %2504 = vst [vmem:[#allocation2 + $0x144] sm:$0xff] %v2497
      %2505 = vst.msk [vmem:[#allocation2 + $0x14c] sm:$0xf] %vm307, %v2487
      %v2506 = vld [vmem:[#allocation3] sm:$0xff]
      %v2507 = vld [vmem:[#allocation3 + $0x8] sm:$0xff]
      %v2508 = vld [vmem:[#allocation3 + $0x10] sm:$0xff]
      %v2509 = vld [vmem:[#allocation3 + $0x18] sm:$0xf]
      %2514 = vrot.lane.b32.xlu0 %v2506, 18
      %v2515 = vpop.permute.xlu0 %2514
      %2516 = vrot.lane.b32.xlu0 %v2507, 18
      %v2517 = vpop.permute.xlu0 %2516
      %2518 = vrot.lane.b32.xlu0 %v2508, 18
      %v2519 = vpop.permute.xlu0 %2518
      %2520 = vrot.lane.b32.xlu0 %v2509, 18
      %v2521 = vpop.permute.xlu0 %2520
      %v2522 = vrot.slane %v2515, 4
      %v2523 = vrot.slane %v2517, 4
      %v2524 = vrot.slane %v2519, 4
      %v2525 = vrot.slane %v2521, 4
      %v2526 = vsel %vm329, %v2522, %v2523
      %v2527 = vsel %vm716, %v2515, %v2526
      %v2528 = vsel %vm329, %v2523, %v2524
      %v2529 = vsel %vm716, %v2517, %v2528
      %v2530 = vsel %vm329, %v2524, %v2525
      %v2531 = vsel %vm716, %v2519, %v2530
      %2536 = vst [vmem:[#allocation2 + $0x150] sm:$0xff] %v2527
      %2537 = vst [vmem:[#allocation2 + $0x158] sm:$0xff] %v2529
      %2538 = vst [vmem:[#allocation2 + $0x160] sm:$0xff] %v2531
      %2539 = vst.msk [vmem:[#allocation2 + $0x168] sm:$0xf] %vm307, %v2521
      %v2540 = vld [vmem:[#allocation3] sm:$0xff]
      %v2541 = vld [vmem:[#allocation3 + $0x8] sm:$0xff]
      %v2542 = vld [vmem:[#allocation3 + $0x10] sm:$0xff]
      %v2543 = vld [vmem:[#allocation3 + $0x18] sm:$0xf]
      %2548 = vrot.lane.b32.xlu0 %v2540, 17
      %v2549 = vpop.permute.xlu0 %2548
      %2550 = vrot.lane.b32.xlu0 %v2541, 17
      %v2551 = vpop.permute.xlu0 %2550
      %2552 = vrot.lane.b32.xlu0 %v2542, 17
      %v2553 = vpop.permute.xlu0 %2552
      %2554 = vrot.lane.b32.xlu0 %v2543, 17
      %v2555 = vpop.permute.xlu0 %2554
      %v2556 = vrot.slane %v2549, 4
      %v2557 = vrot.slane %v2551, 4
      %v2558 = vrot.slane %v2553, 4
      %v2559 = vrot.slane %v2555, 4
      %v2560 = vsel %vm329, %v2556, %v2557
      %v2561 = vsel %vm751, %v2549, %v2560
      %v2562 = vsel %vm329, %v2557, %v2558
      %v2563 = vsel %vm751, %v2551, %v2562
      %v2564 = vsel %vm329, %v2558, %v2559
      %v2565 = vsel %vm751, %v2553, %v2564
      %2570 = vst [vmem:[#allocation2 + $0x16c] sm:$0xff] %v2561
      %2571 = vst [vmem:[#allocation2 + $0x174] sm:$0xff] %v2563
      %2572 = vst [vmem:[#allocation2 + $0x17c] sm:$0xff] %v2565
      %2573 = vst.msk [vmem:[#allocation2 + $0x184] sm:$0xf] %vm307, %v2555
      %v2574 = vld [vmem:[#allocation3] sm:$0xff]
      %v2575 = vld [vmem:[#allocation3 + $0x8] sm:$0xff]
      %v2576 = vld [vmem:[#allocation3 + $0x10] sm:$0xff]
      %v2577 = vld [vmem:[#allocation3 + $0x18] sm:$0xf]
      %2582 = vrot.lane.b32.xlu0 %v2574, 16
      %v2583 = vpop.permute.xlu0 %2582
      %2584 = vrot.lane.b32.xlu0 %v2575, 16
      %v2585 = vpop.permute.xlu0 %2584
      %2586 = vrot.lane.b32.xlu0 %v2576, 16
      %v2587 = vpop.permute.xlu0 %2586
      %2588 = vrot.lane.b32.xlu0 %v2577, 16
      %v2589 = vpop.permute.xlu0 %2588
      %v2590 = vrot.slane %v2583, 4
      %v2591 = vrot.slane %v2585, 4
      %v2592 = vrot.slane %v2587, 4
      %v2593 = vrot.slane %v2589, 4
      %v2594 = vsel %vm329, %v2590, %v2591
      %v2595 = vsel %vm786, %v2583, %v2594
      %v2596 = vsel %vm329, %v2591, %v2592
      %v2597 = vsel %vm786, %v2585, %v2596
      %v2598 = vsel %vm329, %v2592, %v2593
      %v2599 = vsel %vm786, %v2587, %v2598
      %2604 = vst [vmem:[#allocation2 + $0x188] sm:$0xff] %v2595
      %2605 = vst [vmem:[#allocation2 + $0x190] sm:$0xff] %v2597
      %2606 = vst [vmem:[#allocation2 + $0x198] sm:$0xff] %v2599
      %2607 = vst.msk [vmem:[#allocation2 + $0x1a0] sm:$0xf] %vm307, %v2589
      %v2608 = vld [vmem:[#allocation3] sm:$0xff]
      %v2609 = vld [vmem:[#allocation3 + $0x8] sm:$0xff]
      %v2610 = vld [vmem:[#allocation3 + $0x10] sm:$0xff]
      %v2611 = vld [vmem:[#allocation3 + $0x18] sm:$0xff]
      %2616 = vrot.lane.b32.xlu0 %v2608, 8
      %v2617 = vpop.permute.xlu0 %2616
      %2618 = vrot.lane.b32.xlu0 %v2609, 8
      %v2619 = vpop.permute.xlu0 %2618
      %2620 = vrot.lane.b32.xlu0 %v2610, 8
      %v2621 = vpop.permute.xlu0 %2620
      %2622 = vrot.lane.b32.xlu0 %v2611, 8
      %v2623 = vpop.permute.xlu0 %2622
      %v2624 = vrot.slane %v2617, 4
      %v2625 = vrot.slane %v2619, 4
      %v2626 = vrot.slane %v2621, 4
      %v2627 = vrot.slane %v2623, 4
      %v2628 = vsel %vm329, %v2624, %v2625
      %v2629 = vsel %vm821, %v2617, %v2628
      %v2630 = vsel %vm329, %v2625, %v2626
      %v2631 = vsel %vm821, %v2619, %v2630
      %v2632 = vsel %vm329, %v2626, %v2627
      %v2633 = vsel %vm821, %v2621, %v2632
      %v2634 = vsel %vm821, %v2623, %v2627
      %2639 = vst [vmem:[#allocation2 + $0x1a4] sm:$0xff] %v2629
      %2640 = vst [vmem:[#allocation2 + $0x1ac] sm:$0xff] %v2631
      %2641 = vst [vmem:[#allocation2 + $0x1b4] sm:$0xff] %v2633
      %2642 = vst.msk [vmem:[#allocation2 + $0x1bc] sm:$0xf] %vm307, %v2634
      %v2643 = vld [vmem:[#allocation3] sm:$0xff]
      %v2644 = vld [vmem:[#allocation3 + $0x8] sm:$0xff]
      %v2645 = vld [vmem:[#allocation3 + $0x10] sm:$0xff]
      %v2646 = vld [vmem:[#allocation3 + $0x18] sm:$0xff]
      %2651 = vrot.lane.b32.xlu0 %v2643, 7
      %v2652 = vpop.permute.xlu0 %2651
      %2653 = vrot.lane.b32.xlu0 %v2644, 7
      %v2654 = vpop.permute.xlu0 %2653
      %2655 = vrot.lane.b32.xlu0 %v2645, 7
      %v2656 = vpop.permute.xlu0 %2655
      %2657 = vrot.lane.b32.xlu0 %v2646, 7
      %v2658 = vpop.permute.xlu0 %2657
      %v2659 = vrot.slane %v2652, 4
      %v2660 = vrot.slane %v2654, 4
      %v2661 = vrot.slane %v2656, 4
      %v2662 = vrot.slane %v2658, 4
      %v2663 = vsel %vm329, %v2659, %v2660
      %v2664 = vsel %vm857, %v2652, %v2663
      %v2665 = vsel %vm329, %v2660, %v2661
      %v2666 = vsel %vm857, %v2654, %v2665
      %v2667 = vsel %vm329, %v2661, %v2662
      %v2668 = vsel %vm857, %v2656, %v2667
      %v2669 = vsel %vm857, %v2658, %v2662
      %2674 = vst [vmem:[#allocation2 + $0x1c0] sm:$0xff] %v2664
      %2675 = vst [vmem:[#allocation2 + $0x1c8] sm:$0xff] %v2666
      %2676 = vst [vmem:[#allocation2 + $0x1d0] sm:$0xff] %v2668
      %2677 = vst.msk [vmem:[#allocation2 + $0x1d8] sm:$0xf] %vm307, %v2669
      %v2678 = vld [vmem:[#allocation3] sm:$0xff]
      %v2679 = vld [vmem:[#allocation3 + $0x8] sm:$0xff]
      %v2680 = vld [vmem:[#allocation3 + $0x10] sm:$0xff]
      %v2681 = vld [vmem:[#allocation3 + $0x18] sm:$0xff]
      %2686 = vrot.lane.b32.xlu0 %v2678, 6
      %v2687 = vpop.permute.xlu0 %2686
      %2688 = vrot.lane.b32.xlu0 %v2679, 6
      %v2689 = vpop.permute.xlu0 %2688
      %2690 = vrot.lane.b32.xlu0 %v2680, 6
      %v2691 = vpop.permute.xlu0 %2690
      %2692 = vrot.lane.b32.xlu0 %v2681, 6
      %v2693 = vpop.permute.xlu0 %2692
      %v2694 = vrot.slane %v2687, 4
      %v2695 = vrot.slane %v2689, 4
      %v2696 = vrot.slane %v2691, 4
      %v2697 = vrot.slane %v2693, 4
      %v2698 = vsel %vm329, %v2694, %v2695
      %v2699 = vsel %vm893, %v2687, %v2698
      %v2700 = vsel %vm329, %v2695, %v2696
      %v2701 = vsel %vm893, %v2689, %v2700
      %v2702 = vsel %vm329, %v2696, %v2697
      %v2703 = vsel %vm893, %v2691, %v2702
      %v2704 = vsel %vm893, %v2693, %v2697
      %2709 = vst [vmem:[#allocation2 + $0x1dc] sm:$0xff] %v2699
      %2710 = vst [vmem:[#allocation2 + $0x1e4] sm:$0xff] %v2701
      %2711 = vst [vmem:[#allocation2 + $0x1ec] sm:$0xff] %v2703
      %2712 = vst.msk [vmem:[#allocation2 + $0x1f4] sm:$0xf] %vm307, %v2704
      %v2713 = vld [vmem:[#allocation3 + $0x4] sm:$0xff]
      %v2714 = vld [vmem:[#allocation3 + $0xc] sm:$0xff]
      %v2715 = vld [vmem:[#allocation3 + $0x14] sm:$0xff]
      %v2716 = vld [vmem:[#allocation3 + $0x1c] sm:$0xf]
      %2721 = vrot.lane.b32.xlu0 %v2713, 56
      %v2722 = vpop.permute.xlu0 %2721
      %2723 = vrot.lane.b32.xlu0 %v2714, 56
      %v2724 = vpop.permute.xlu0 %2723
      %2725 = vrot.lane.b32.xlu0 %v2715, 56
      %v2726 = vpop.permute.xlu0 %2725
      %2727 = vrot.lane.b32.xlu0 %v2716, 56
      %v2728 = vpop.permute.xlu0 %2727
      %v2729 = vrot.slane %v2722, 4
      %v2730 = vrot.slane %v2724, 4
      %v2731 = vrot.slane %v2726, 4
      %v2732 = vrot.slane %v2728, 4
      %v2733 = vsel %vm329, %v2729, %v2730
      %v2734 = vsel %vm929, %v2722, %v2733
      %v2735 = vsel %vm329, %v2730, %v2731
      %v2736 = vsel %vm929, %v2724, %v2735
      %v2737 = vsel %vm329, %v2731, %v2732
      %v2738 = vsel %vm929, %v2726, %v2737
      %2743 = vst [vmem:[#allocation2 + $0x1f8] sm:$0xff] %v2734
      %2744 = vst [vmem:[#allocation2 + $0x200] sm:$0xff] %v2736
      %2745 = vst [vmem:[#allocation2 + $0x208] sm:$0xff] %v2738
      %2746 = vst.msk [vmem:[#allocation2 + $0x210] sm:$0xf] %vm307, %v2728
      %v2747 = vld [vmem:[#allocation3 + $0x4] sm:$0xff]
      %v2748 = vld [vmem:[#allocation3 + $0xc] sm:$0xff]
      %v2749 = vld [vmem:[#allocation3 + $0x14] sm:$0xff]
      %v2750 = vld [vmem:[#allocation3 + $0x1c] sm:$0xf]
      %2755 = vrot.lane.b32.xlu0 %v2747, 55
      %v2756 = vpop.permute.xlu0 %2755
      %2757 = vrot.lane.b32.xlu0 %v2748, 55
      %v2758 = vpop.permute.xlu0 %2757
      %2759 = vrot.lane.b32.xlu0 %v2749, 55
      %v2760 = vpop.permute.xlu0 %2759
      %2761 = vrot.lane.b32.xlu0 %v2750, 55
      %v2762 = vpop.permute.xlu0 %2761
      %v2763 = vrot.slane %v2756, 4
      %v2764 = vrot.slane %v2758, 4
      %v2765 = vrot.slane %v2760, 4
      %v2766 = vrot.slane %v2762, 4
      %v2767 = vsel %vm329, %v2763, %v2764
      %v2768 = vsel %vm964, %v2756, %v2767
      %v2769 = vsel %vm329, %v2764, %v2765
      %v2770 = vsel %vm964, %v2758, %v2769
      %v2771 = vsel %vm329, %v2765, %v2766
      %v2772 = vsel %vm964, %v2760, %v2771
      %2777 = vst [vmem:[#allocation2 + $0x214] sm:$0xff] %v2768
      %2778 = vst [vmem:[#allocation2 + $0x21c] sm:$0xff] %v2770
      %2779 = vst [vmem:[#allocation2 + $0x224] sm:$0xff] %v2772
      %2780 = vst.msk [vmem:[#allocation2 + $0x22c] sm:$0xf] %vm307, %v2762
      %v2781 = vld [vmem:[#allocation3 + $0x4] sm:$0xff]
      %v2782 = vld [vmem:[#allocation3 + $0xc] sm:$0xff]
      %v2783 = vld [vmem:[#allocation3 + $0x14] sm:$0xff]
      %v2784 = vld [vmem:[#allocation3 + $0x1c] sm:$0xf]
      %2789 = vrot.lane.b32.xlu0 %v2781, 54
      %v2790 = vpop.permute.xlu0 %2789
      %2791 = vrot.lane.b32.xlu0 %v2782, 54
      %v2792 = vpop.permute.xlu0 %2791
      %2793 = vrot.lane.b32.xlu0 %v2783, 54
      %v2794 = vpop.permute.xlu0 %2793
      %2795 = vrot.lane.b32.xlu0 %v2784, 54
      %v2796 = vpop.permute.xlu0 %2795
      %v2797 = vrot.slane %v2790, 4
      %v2798 = vrot.slane %v2792, 4
      %v2799 = vrot.slane %v2794, 4
      %v2800 = vrot.slane %v2796, 4
      %v2801 = vsel %vm329, %v2797, %v2798
      %v2802 = vsel %vm999, %v2790, %v2801
      %v2803 = vsel %vm329, %v2798, %v2799
      %v2804 = vsel %vm999, %v2792, %v2803
      %v2805 = vsel %vm329, %v2799, %v2800
      %v2806 = vsel %vm999, %v2794, %v2805
      %2811 = vst [vmem:[#allocation2 + $0x230] sm:$0xff] %v2802
      %2812 = vst [vmem:[#allocation2 + $0x238] sm:$0xff] %v2804
      %2813 = vst [vmem:[#allocation2 + $0x240] sm:$0xff] %v2806
      %2814 = vst.msk [vmem:[#allocation2 + $0x248] sm:$0xf] %vm307, %v2796
      %v2815 = vld [vmem:[#allocation3 + $0x4] sm:$0xff]
      %v2816 = vld [vmem:[#allocation3 + $0xc] sm:$0xff]
      %v2817 = vld [vmem:[#allocation3 + $0x14] sm:$0xff]
      %v2818 = vld [vmem:[#allocation3 + $0x1c] sm:$0xf]
      %2823 = vrot.lane.b32.xlu0 %v2815, 46
      %v2824 = vpop.permute.xlu0 %2823
      %2825 = vrot.lane.b32.xlu0 %v2816, 46
      %v2826 = vpop.permute.xlu0 %2825
      %2827 = vrot.lane.b32.xlu0 %v2817, 46
      %v2828 = vpop.permute.xlu0 %2827
      %2829 = vrot.lane.b32.xlu0 %v2818, 46
      %v2830 = vpop.permute.xlu0 %2829
      %v2831 = vrot.slane %v2824, 4
      %v2832 = vrot.slane %v2826, 4
      %v2833 = vrot.slane %v2828, 4
      %v2834 = vrot.slane %v2830, 4
      %v2835 = vsel %vm329, %v2831, %v2832
      %v2836 = vsel %vm1034, %v2824, %v2835
      %v2837 = vsel %vm329, %v2832, %v2833
      %v2838 = vsel %vm1034, %v2826, %v2837
      %v2839 = vsel %vm329, %v2833, %v2834
      %v2840 = vsel %vm1034, %v2828, %v2839
      %2845 = vst [vmem:[#allocation2 + $0x24c] sm:$0xff] %v2836
      %2846 = vst [vmem:[#allocation2 + $0x254] sm:$0xff] %v2838
      %2847 = vst [vmem:[#allocation2 + $0x25c] sm:$0xff] %v2840
      %2848 = vst.msk [vmem:[#allocation2 + $0x264] sm:$0xf] %vm307, %v2830
      %v2849 = vld [vmem:[#allocation3 + $0x4] sm:$0xff]
      %v2850 = vld [vmem:[#allocation3 + $0xc] sm:$0xff]
      %v2851 = vld [vmem:[#allocation3 + $0x14] sm:$0xff]
      %v2852 = vld [vmem:[#allocation3 + $0x1c] sm:$0xf]
      %2857 = vrot.lane.b32.xlu0 %v2849, 45
      %v2858 = vpop.permute.xlu0 %2857
      %2859 = vrot.lane.b32.xlu0 %v2850, 45
      %v2860 = vpop.permute.xlu0 %2859
      %2861 = vrot.lane.b32.xlu0 %v2851, 45
      %v2862 = vpop.permute.xlu0 %2861
      %2863 = vrot.lane.b32.xlu0 %v2852, 45
      %v2864 = vpop.permute.xlu0 %2863
      %v2865 = vrot.slane %v2858, 4
      %v2866 = vrot.slane %v2860, 4
      %v2867 = vrot.slane %v2862, 4
      %v2868 = vrot.slane %v2864, 4
      %v2869 = vsel %vm329, %v2865, %v2866
      %v2870 = vsel %vm1069, %v2858, %v2869
      %v2871 = vsel %vm329, %v2866, %v2867
      %v2872 = vsel %vm1069, %v2860, %v2871
      %v2873 = vsel %vm329, %v2867, %v2868
      %v2874 = vsel %vm1069, %v2862, %v2873
      %2879 = vst [vmem:[#allocation2 + $0x268] sm:$0xff] %v2870
      %2880 = vst [vmem:[#allocation2 + $0x270] sm:$0xff] %v2872
      %2881 = vst [vmem:[#allocation2 + $0x278] sm:$0xff] %v2874
      %2882 = vst.msk [vmem:[#allocation2 + $0x280] sm:$0xf] %vm307, %v2864
      %v2883 = vld [vmem:[#allocation3 + $0x4] sm:$0xff]
      %v2884 = vld [vmem:[#allocation3 + $0xc] sm:$0xff]
      %v2885 = vld [vmem:[#allocation3 + $0x14] sm:$0xff]
      %v2886 = vld [vmem:[#allocation3 + $0x1c] sm:$0xf]
      %2891 = vrot.lane.b32.xlu0 %v2883, 44
      %v2892 = vpop.permute.xlu0 %2891
      %2893 = vrot.lane.b32.xlu0 %v2884, 44
      %v2894 = vpop.permute.xlu0 %2893
      %2895 = vrot.lane.b32.xlu0 %v2885, 44
      %v2896 = vpop.permute.xlu0 %2895
      %2897 = vrot.lane.b32.xlu0 %v2886, 44
      %v2898 = vpop.permute.xlu0 %2897
      %v2899 = vrot.slane %v2892, 4
      %v2900 = vrot.slane %v2894, 4
      %v2901 = vrot.slane %v2896, 4
      %v2902 = vrot.slane %v2898, 4
      %v2903 = vsel %vm329, %v2899, %v2900
      %v2904 = vsel %vm1104, %v2892, %v2903
      %v2905 = vsel %vm329, %v2900, %v2901
      %v2906 = vsel %vm1104, %v2894, %v2905
      %v2907 = vsel %vm329, %v2901, %v2902
      %v2908 = vsel %vm1104, %v2896, %v2907
      %2913 = vst [vmem:[#allocation2 + $0x284] sm:$0xff] %v2904
      %2914 = vst [vmem:[#allocation2 + $0x28c] sm:$0xff] %v2906
      %2915 = vst [vmem:[#allocation2 + $0x294] sm:$0xff] %v2908
      %2916 = vst.msk [vmem:[#allocation2 + $0x29c] sm:$0xf] %vm307, %v2898
      %v2917 = vld [vmem:[#allocation3 + $0x4] sm:$0xff]
      %v2918 = vld [vmem:[#allocation3 + $0xc] sm:$0xff]
      %v2919 = vld [vmem:[#allocation3 + $0x14] sm:$0xff]
      %v2920 = vld [vmem:[#allocation3 + $0x1c] sm:$0xf]
      %2925 = vrot.lane.b32.xlu0 %v2917, 36
      %v2926 = vpop.permute.xlu0 %2925
      %2927 = vrot.lane.b32.xlu0 %v2918, 36
      %v2928 = vpop.permute.xlu0 %2927
      %2929 = vrot.lane.b32.xlu0 %v2919, 36
      %v2930 = vpop.permute.xlu0 %2929
      %2931 = vrot.lane.b32.xlu0 %v2920, 36
      %v2932 = vpop.permute.xlu0 %2931
      %v2933 = vrot.slane %v2926, 4
      %v2934 = vrot.slane %v2928, 4
      %v2935 = vrot.slane %v2930, 4
      %v2936 = vrot.slane %v2932, 4
      %v2937 = vsel %vm329, %v2933, %v2934
      %v2938 = vsel %vm1139, %v2926, %v2937
      %v2939 = vsel %vm329, %v2934, %v2935
      %v2940 = vsel %vm1139, %v2928, %v2939
      %v2941 = vsel %vm329, %v2935, %v2936
      %v2942 = vsel %vm1139, %v2930, %v2941
      %2947 = vst [vmem:[#allocation2 + $0x2a0] sm:$0xff] %v2938
      %2948 = vst [vmem:[#allocation2 + $0x2a8] sm:$0xff] %v2940
      %2949 = vst [vmem:[#allocation2 + $0x2b0] sm:$0xff] %v2942
      %2950 = vst.msk [vmem:[#allocation2 + $0x2b8] sm:$0xf] %vm307, %v2932
      %v2951 = vld [vmem:[#allocation3 + $0x4] sm:$0xff]
      %v2952 = vld [vmem:[#allocation3 + $0xc] sm:$0xff]
      %v2953 = vld [vmem:[#allocation3 + $0x14] sm:$0xff]
      %v2954 = vld [vmem:[#allocation3 + $0x1c] sm:$0xf]
      %2959 = vrot.lane.b32.xlu0 %v2951, 35
      %v2960 = vpop.permute.xlu0 %2959
      %2961 = vrot.lane.b32.xlu0 %v2952, 35
      %v2962 = vpop.permute.xlu0 %2961
      %2963 = vrot.lane.b32.xlu0 %v2953, 35
      %v2964 = vpop.permute.xlu0 %2963
      %2965 = vrot.lane.b32.xlu0 %v2954, 35
      %v2966 = vpop.permute.xlu0 %2965
      %v2967 = vrot.slane %v2960, 4
      %v2968 = vrot.slane %v2962, 4
      %v2969 = vrot.slane %v2964, 4
      %v2970 = vrot.slane %v2966, 4
      %v2971 = vsel %vm329, %v2967, %v2968
      %v2972 = vsel %vm1174, %v2960, %v2971
      %v2973 = vsel %vm329, %v2968, %v2969
      %v2974 = vsel %vm1174, %v2962, %v2973
      %v2975 = vsel %vm329, %v2969, %v2970
      %v2976 = vsel %vm1174, %v2964, %v2975
      %2981 = vst [vmem:[#allocation2 + $0x2bc] sm:$0xff] %v2972
      %2982 = vst [vmem:[#allocation2 + $0x2c4] sm:$0xff] %v2974
      %2983 = vst [vmem:[#allocation2 + $0x2cc] sm:$0xff] %v2976
      %2984 = vst.msk [vmem:[#allocation2 + $0x2d4] sm:$0xf] %vm307, %v2966
      %v2985 = vld [vmem:[#allocation3 + $0x4] sm:$0xff]
      %v2986 = vld [vmem:[#allocation3 + $0xc] sm:$0xff]
      %v2987 = vld [vmem:[#allocation3 + $0x14] sm:$0xff]
      %v2988 = vld [vmem:[#allocation3 + $0x1c] sm:$0xf]
      %2993 = vrot.lane.b32.xlu0 %v2985, 34
      %v2994 = vpop.permute.xlu0 %2993
      %2995 = vrot.lane.b32.xlu0 %v2986, 34
      %v2996 = vpop.permute.xlu0 %2995
      %2997 = vrot.lane.b32.xlu0 %v2987, 34
      %v2998 = vpop.permute.xlu0 %2997
      %2999 = vrot.lane.b32.xlu0 %v2988, 34
      %v3000 = vpop.permute.xlu0 %2999
      %v3001 = vrot.slane %v2994, 4
      %v3002 = vrot.slane %v2996, 4
      %v3003 = vrot.slane %v2998, 4
      %v3004 = vrot.slane %v3000, 4
      %v3005 = vsel %vm329, %v3001, %v3002
      %v3006 = vsel %vm1209, %v2994, %v3005
      %v3007 = vsel %vm329, %v3002, %v3003
      %v3008 = vsel %vm1209, %v2996, %v3007
      %v3009 = vsel %vm329, %v3003, %v3004
      %v3010 = vsel %vm1209, %v2998, %v3009
      %3015 = vst [vmem:[#allocation2 + $0x2d8] sm:$0xff] %v3006
      %3016 = vst [vmem:[#allocation2 + $0x2e0] sm:$0xff] %v3008
      %3017 = vst [vmem:[#allocation2 + $0x2e8] sm:$0xff] %v3010
      %3018 = vst.msk [vmem:[#allocation2 + $0x2f0] sm:$0xf] %vm307, %v3000
      %v3019 = vld [vmem:[%s3] sm:$0xff]
      %v3020 = vld [vmem:[#allocation2] sm:$0xff]
      %v3021 = vld [vmem:[#allocation2 + $0x8] sm:$0xff]
      %v3022 = vld [vmem:[#allocation2 + $0x10] sm:$0xff]
      %v3023 = vld [vmem:[#allocation2 + $0x18] sm:$0xf]
      %v3024 = vld [vmem:[#allocation2 + $0x1c] sm:$0xff]
      %v3025 = vld [vmem:[#allocation2 + $0x24] sm:$0xff]
      %v3026 = vld [vmem:[#allocation2 + $0x2c] sm:$0xff]
      %v3027 = vld [vmem:[#allocation2 + $0x34] sm:$0xf]
      %v3028 = vld [vmem:[#allocation2 + $0x38] sm:$0xff]
      %v3029 = vld [vmem:[#allocation2 + $0x40] sm:$0xff]
      %v3030 = vld [vmem:[#allocation2 + $0x48] sm:$0xff]
      %v3031 = vld [vmem:[#allocation2 + $0x50] sm:$0xf]
      %v3032 = vld [vmem:[#allocation2 + $0x54] sm:$0xff]
      %v3033 = vld [vmem:[#allocation2 + $0x5c] sm:$0xff]
      %v3034 = vld [vmem:[#allocation2 + $0x64] sm:$0xff]
      %v3035 = vld [vmem:[#allocation2 + $0x6c] sm:$0xf]
      %v3036 = vld [vmem:[#allocation2 + $0x70] sm:$0xff]
      %v3037 = vld [vmem:[#allocation2 + $0x78] sm:$0xff]
      %v3038 = vld [vmem:[#allocation2 + $0x80] sm:$0xff]
      %v3039 = vld [vmem:[#allocation2 + $0x88] sm:$0xf]
      %v3040 = vld [vmem:[#allocation2 + $0x8c] sm:$0xff]
      %v3041 = vld [vmem:[#allocation2 + $0x94] sm:$0xff]
      %v3042 = vld [vmem:[#allocation2 + $0x9c] sm:$0xff]
      %v3043 = vld [vmem:[#allocation2 + $0xa4] sm:$0xf]
      %v3044 = vld [vmem:[#allocation2 + $0xa8] sm:$0xff]
      %v3045 = vld [vmem:[#allocation2 + $0xb0] sm:$0xff]
      %v3046 = vld [vmem:[#allocation2 + $0xb8] sm:$0xff]
      %v3047 = vld [vmem:[#allocation2 + $0xc0] sm:$0xf]
      %v3048 = vld [vmem:[#allocation2 + $0xc4] sm:$0xff]
      %v3049 = vld [vmem:[#allocation2 + $0xcc] sm:$0xff]
      %v3050 = vld [vmem:[#allocation2 + $0xd4] sm:$0xff]
      %v3051 = vld [vmem:[#allocation2 + $0xdc] sm:$0xf]
      %v3052 = vld [vmem:[#allocation2 + $0xe0] sm:$0xff]
      %v3053 = vld [vmem:[#allocation2 + $0xe8] sm:$0xff]
      %v3054 = vld [vmem:[#allocation2 + $0xf0] sm:$0xff]
      %v3055 = vld [vmem:[#allocation2 + $0xf8] sm:$0xf]
      %v3056 = vld [vmem:[#allocation2 + $0xfc] sm:$0xff]
      %v3057 = vld [vmem:[#allocation2 + $0x104] sm:$0xff]
      %v3058 = vld [vmem:[#allocation2 + $0x10c] sm:$0xff]
      %v3059 = vld [vmem:[#allocation2 + $0x114] sm:$0xf]
      %v3060 = vld [vmem:[#allocation2 + $0x118] sm:$0xff]
      %v3061 = vld [vmem:[#allocation2 + $0x120] sm:$0xff]
      %v3062 = vld [vmem:[#allocation2 + $0x128] sm:$0xff]
      %v3063 = vld [vmem:[#allocation2 + $0x130] sm:$0xf]
      %v3064 = vld [vmem:[#allocation2 + $0x134] sm:$0xff]
      %v3065 = vld [vmem:[#allocation2 + $0x13c] sm:$0xff]
      %v3066 = vld [vmem:[#allocation2 + $0x144] sm:$0xff]
      %v3067 = vld [vmem:[#allocation2 + $0x14c] sm:$0xf]
      %v3068 = vld [vmem:[#allocation2 + $0x150] sm:$0xff]
      %v3069 = vld [vmem:[#allocation2 + $0x158] sm:$0xff]
      %v3070 = vld [vmem:[#allocation2 + $0x160] sm:$0xff]
      %v3071 = vld [vmem:[#allocation2 + $0x168] sm:$0xf]
      %v3072 = vld [vmem:[#allocation2 + $0x16c] sm:$0xff]
      %v3073 = vld [vmem:[#allocation2 + $0x174] sm:$0xff]
      %v3074 = vld [vmem:[#allocation2 + $0x17c] sm:$0xff]
      %v3075 = vld [vmem:[#allocation2 + $0x184] sm:$0xf]
      %v3076 = vld [vmem:[#allocation2 + $0x188] sm:$0xff]
      %v3077 = vld [vmem:[#allocation2 + $0x190] sm:$0xff]
      %v3078 = vld [vmem:[#allocation2 + $0x198] sm:$0xff]
      %v3079 = vld [vmem:[#allocation2 + $0x1a0] sm:$0xf]
      %v3080 = vld [vmem:[#allocation2 + $0x1a4] sm:$0xff]
      %v3081 = vld [vmem:[#allocation2 + $0x1ac] sm:$0xff]
      %v3082 = vld [vmem:[#allocation2 + $0x1b4] sm:$0xff]
      %v3083 = vld [vmem:[#allocation2 + $0x1bc] sm:$0xf]
      %v3084 = vld [vmem:[#allocation2 + $0x1c0] sm:$0xff]
      %v3085 = vld [vmem:[#allocation2 + $0x1c8] sm:$0xff]
      %v3086 = vld [vmem:[#allocation2 + $0x1d0] sm:$0xff]
      %v3087 = vld [vmem:[#allocation2 + $0x1d8] sm:$0xf]
      %v3088 = vld [vmem:[#allocation2 + $0x1dc] sm:$0xff]
      %v3089 = vld [vmem:[#allocation2 + $0x1e4] sm:$0xff]
      %v3090 = vld [vmem:[#allocation2 + $0x1ec] sm:$0xff]
      %v3091 = vld [vmem:[#allocation2 + $0x1f4] sm:$0xf]
      %v3092 = vld [vmem:[#allocation2 + $0x1f8] sm:$0xff]
      %v3093 = vld [vmem:[#allocation2 + $0x200] sm:$0xff]
      %v3094 = vld [vmem:[#allocation2 + $0x208] sm:$0xff]
      %v3095 = vld [vmem:[#allocation2 + $0x210] sm:$0xf]
      %v3096 = vld [vmem:[#allocation2 + $0x214] sm:$0xff]
      %v3097 = vld [vmem:[#allocation2 + $0x21c] sm:$0xff]
      %v3098 = vld [vmem:[#allocation2 + $0x224] sm:$0xff]
      %v3099 = vld [vmem:[#allocation2 + $0x22c] sm:$0xf]
      %v3100 = vld [vmem:[#allocation2 + $0x230] sm:$0xff]
      %v3101 = vld [vmem:[#allocation2 + $0x238] sm:$0xff]
      %v3102 = vld [vmem:[#allocation2 + $0x240] sm:$0xff]
      %v3103 = vld [vmem:[#allocation2 + $0x248] sm:$0xf]
      %v3104 = vld [vmem:[#allocation2 + $0x24c] sm:$0xff]
      %v3105 = vld [vmem:[#allocation2 + $0x254] sm:$0xff]
      %v3106 = vld [vmem:[#allocation2 + $0x25c] sm:$0xff]
      %v3107 = vld [vmem:[#allocation2 + $0x264] sm:$0xf]
      %v3108 = vld [vmem:[#allocation2 + $0x268] sm:$0xff]
      %v3109 = vld [vmem:[#allocation2 + $0x270] sm:$0xff]
      %v3110 = vld [vmem:[#allocation2 + $0x278] sm:$0xff]
      %v3111 = vld [vmem:[#allocation2 + $0x280] sm:$0xf]
      %v3112 = vld [vmem:[#allocation2 + $0x284] sm:$0xff]
      %v3113 = vld [vmem:[#allocation2 + $0x28c] sm:$0xff]
      %v3114 = vld [vmem:[#allocation2 + $0x294] sm:$0xff]
      %v3115 = vld [vmem:[#allocation2 + $0x29c] sm:$0xf]
      %v3116 = vld [vmem:[#allocation2 + $0x2a0] sm:$0xff]
      %v3117 = vld [vmem:[#allocation2 + $0x2a8] sm:$0xff]
      %v3118 = vld [vmem:[#allocation2 + $0x2b0] sm:$0xff]
      %v3119 = vld [vmem:[#allocation2 + $0x2b8] sm:$0xf]
      %v3120 = vld [vmem:[#allocation2 + $0x2bc] sm:$0xff]
      %v3121 = vld [vmem:[#allocation2 + $0x2c4] sm:$0xff]
      %v3122 = vld [vmem:[#allocation2 + $0x2cc] sm:$0xff]
      %v3123 = vld [vmem:[#allocation2 + $0x2d4] sm:$0xf]
      %v3124 = vld [vmem:[#allocation2 + $0x2d8] sm:$0xff]
      %v3125 = vld [vmem:[#allocation2 + $0x2e0] sm:$0xff]
      %v3126 = vld [vmem:[#allocation2 + $0x2e8] sm:$0xff]
      %v3127 = vld [vmem:[#allocation2 + $0x2f0] sm:$0xf]
      %v3128 = vld [vmem:[%s4] sm:$0xff]
      %3130 = vset.pattern.permute.xlu0 0
      %3131 = vperm.xlu0 %3130, %v3128
      %v3132 = vpop.permute.xlu0 %3131
      %v3135 = vunpack.c.l.b16 %v3019
      %v3136 = vunpack.c.h.b16 %v3019
      %v3137 = vpack.c.b16 %v3135, %v3135
      %v3138 = vpack.c.b16 %v3136, %v3136
      %v3248 = vunpack.c.l.b16 %v3020
      %v3249 = vunpack.c.h.b16 %v3020
      %v3250 = vunpack.c.l.b16 %v3021
      %v3251 = vunpack.c.h.b16 %v3021
      %v3252 = vunpack.c.l.b16 %v3022
      %v3253 = vunpack.c.h.b16 %v3022
      %v3254 = vunpack.c.l.b16 %v3023
      %v3255 = vunpack.c.l.b16 %v3024
      %v3256 = vunpack.c.h.b16 %v3024
      %v3257 = vunpack.c.l.b16 %v3025
      %v3258 = vunpack.c.h.b16 %v3025
      %v3259 = vunpack.c.l.b16 %v3026
      %v3260 = vunpack.c.h.b16 %v3026
      %v3261 = vunpack.c.l.b16 %v3027
      %v3262 = vunpack.c.l.b16 %v3028
      %v3263 = vunpack.c.h.b16 %v3028
      %v3264 = vunpack.c.l.b16 %v3029
      %v3265 = vunpack.c.h.b16 %v3029
      %v3266 = vunpack.c.l.b16 %v3030
      %v3267 = vunpack.c.h.b16 %v3030
      %v3268 = vunpack.c.l.b16 %v3031
      %v3269 = vunpack.c.l.b16 %v3032
      %v3270 = vunpack.c.h.b16 %v3032
      %v3271 = vunpack.c.l.b16 %v3033
      %v3272 = vunpack.c.h.b16 %v3033
      %v3273 = vunpack.c.l.b16 %v3034
      %v3274 = vunpack.c.h.b16 %v3034
      %v3275 = vunpack.c.l.b16 %v3035
      %v3276 = vunpack.c.l.b16 %v3036
      %v3277 = vunpack.c.h.b16 %v3036
      %v3278 = vunpack.c.l.b16 %v3037
      %v3279 = vunpack.c.h.b16 %v3037
      %v3280 = vunpack.c.l.b16 %v3038
      %v3281 = vunpack.c.h.b16 %v3038
      %v3282 = vunpack.c.l.b16 %v3039
      %v3283 = vunpack.c.l.b16 %v3040
      %v3284 = vunpack.c.h.b16 %v3040
      %v3285 = vunpack.c.l.b16 %v3041
      %v3286 = vunpack.c.h.b16 %v3041
      %v3287 = vunpack.c.l.b16 %v3042
      %v3288 = vunpack.c.h.b16 %v3042
      %v3289 = vunpack.c.l.b16 %v3043
      %v3290 = vunpack.c.l.b16 %v3044
      %v3291 = vunpack.c.h.b16 %v3044
      %v3292 = vunpack.c.l.b16 %v3045
      %v3293 = vunpack.c.h.b16 %v3045
      %v3294 = vunpack.c.l.b16 %v3046
      %v3295 = vunpack.c.h.b16 %v3046
      %v3296 = vunpack.c.l.b16 %v3047
      %v3297 = vunpack.c.l.b16 %v3048
      %v3298 = vunpack.c.h.b16 %v3048
      %v3299 = vunpack.c.l.b16 %v3049
      %v3300 = vunpack.c.h.b16 %v3049
      %v3301 = vunpack.c.l.b16 %v3050
      %v3302 = vunpack.c.h.b16 %v3050
      %v3303 = vunpack.c.l.b16 %v3051
      %v3304 = vunpack.c.l.b16 %v3052
      %v3305 = vunpack.c.h.b16 %v3052
      %v3306 = vunpack.c.l.b16 %v3053
      %v3307 = vunpack.c.h.b16 %v3053
      %v3308 = vunpack.c.l.b16 %v3054
      %v3309 = vunpack.c.h.b16 %v3054
      %v3310 = vunpack.c.l.b16 %v3055
      %v3311 = vunpack.c.l.b16 %v3056
      %v3312 = vunpack.c.h.b16 %v3056
      %v3313 = vunpack.c.l.b16 %v3057
      %v3314 = vunpack.c.h.b16 %v3057
      %v3315 = vunpack.c.l.b16 %v3058
      %v3316 = vunpack.c.h.b16 %v3058
      %v3317 = vunpack.c.l.b16 %v3059
      %v3318 = vunpack.c.l.b16 %v3060
      %v3319 = vunpack.c.h.b16 %v3060
      %v3320 = vunpack.c.l.b16 %v3061
      %v3321 = vunpack.c.h.b16 %v3061
      %v3322 = vunpack.c.l.b16 %v3062
      %v3323 = vunpack.c.h.b16 %v3062
      %v3324 = vunpack.c.l.b16 %v3063
      %v3325 = vunpack.c.l.b16 %v3064
      %v3326 = vunpack.c.h.b16 %v3064
      %v3327 = vunpack.c.l.b16 %v3065
      %v3328 = vunpack.c.h.b16 %v3065
      %v3329 = vunpack.c.l.b16 %v3066
      %v3330 = vunpack.c.h.b16 %v3066
      %v3331 = vunpack.c.l.b16 %v3067
      %v3332 = vunpack.c.l.b16 %v3068
      %v3333 = vunpack.c.h.b16 %v3068
      %v3334 = vunpack.c.l.b16 %v3069
      %v3335 = vunpack.c.h.b16 %v3069
      %v3336 = vunpack.c.l.b16 %v3070
      %v3337 = vunpack.c.h.b16 %v3070
      %v3338 = vunpack.c.l.b16 %v3071
      %v3339 = vunpack.c.l.b16 %v3072
      %v3340 = vunpack.c.h.b16 %v3072
      %v3341 = vunpack.c.l.b16 %v3073
      %v3342 = vunpack.c.h.b16 %v3073
      %v3343 = vunpack.c.l.b16 %v3074
      %v3344 = vunpack.c.h.b16 %v3074
      %v3345 = vunpack.c.l.b16 %v3075
      %v3346 = vunpack.c.l.b16 %v3076
      %v3347 = vunpack.c.h.b16 %v3076
      %v3348 = vunpack.c.l.b16 %v3077
      %v3349 = vunpack.c.h.b16 %v3077
      %v3350 = vunpack.c.l.b16 %v3078
      %v3351 = vunpack.c.h.b16 %v3078
      %v3352 = vunpack.c.l.b16 %v3079
      %v3353 = vunpack.c.l.b16 %v3080
      %v3354 = vunpack.c.h.b16 %v3080
      %v3355 = vunpack.c.l.b16 %v3081
      %v3356 = vunpack.c.h.b16 %v3081
      %v3357 = vunpack.c.l.b16 %v3082
      %v3358 = vunpack.c.h.b16 %v3082
      %v3359 = vunpack.c.l.b16 %v3083
      %v3360 = vunpack.c.l.b16 %v3084
      %v3361 = vunpack.c.h.b16 %v3084
      %v3362 = vunpack.c.l.b16 %v3085
      %v3363 = vunpack.c.h.b16 %v3085
      %v3364 = vunpack.c.l.b16 %v3086
      %v3365 = vunpack.c.h.b16 %v3086
      %v3366 = vunpack.c.l.b16 %v3087
      %v3367 = vunpack.c.l.b16 %v3088
      %v3368 = vunpack.c.h.b16 %v3088
      %v3369 = vunpack.c.l.b16 %v3089
      %v3370 = vunpack.c.h.b16 %v3089
      %v3371 = vunpack.c.l.b16 %v3090
      %v3372 = vunpack.c.h.b16 %v3090
      %v3373 = vunpack.c.l.b16 %v3091
      %v3374 = vunpack.c.l.b16 %v3092
      %v3375 = vunpack.c.h.b16 %v3092
      %v3376 = vunpack.c.l.b16 %v3093
      %v3377 = vunpack.c.h.b16 %v3093
      %v3378 = vunpack.c.l.b16 %v3094
      %v3379 = vunpack.c.h.b16 %v3094
      %v3380 = vunpack.c.l.b16 %v3095
      %v3381 = vunpack.c.l.b16 %v3096
      %v3382 = vunpack.c.h.b16 %v3096
      %v3383 = vunpack.c.l.b16 %v3097
      %v3384 = vunpack.c.h.b16 %v3097
      %v3385 = vunpack.c.l.b16 %v3098
      %v3386 = vunpack.c.h.b16 %v3098
      %v3387 = vunpack.c.l.b16 %v3099
      %v3388 = vunpack.c.l.b16 %v3100
      %v3389 = vunpack.c.h.b16 %v3100
      %v3390 = vunpack.c.l.b16 %v3101
      %v3391 = vunpack.c.h.b16 %v3101
      %v3392 = vunpack.c.l.b16 %v3102
      %v3393 = vunpack.c.h.b16 %v3102
      %v3394 = vunpack.c.l.b16 %v3103
      %v3395 = vunpack.c.l.b16 %v3104
      %v3396 = vunpack.c.h.b16 %v3104
      %v3397 = vunpack.c.l.b16 %v3105
      %v3398 = vunpack.c.h.b16 %v3105
      %v3399 = vunpack.c.l.b16 %v3106
      %v3400 = vunpack.c.h.b16 %v3106
      %v3401 = vunpack.c.l.b16 %v3107
      %v3402 = vunpack.c.l.b16 %v3108
      %v3403 = vunpack.c.h.b16 %v3108
      %v3404 = vunpack.c.l.b16 %v3109
      %v3405 = vunpack.c.h.b16 %v3109
      %v3406 = vunpack.c.l.b16 %v3110
      %v3407 = vunpack.c.h.b16 %v3110
      %v3408 = vunpack.c.l.b16 %v3111
      %v3409 = vunpack.c.l.b16 %v3112
      %v3410 = vunpack.c.h.b16 %v3112
      %v3411 = vunpack.c.l.b16 %v3113
      %v3412 = vunpack.c.h.b16 %v3113
      %v3413 = vunpack.c.l.b16 %v3114
      %v3414 = vunpack.c.h.b16 %v3114
      %v3415 = vunpack.c.l.b16 %v3115
      %v3416 = vunpack.c.l.b16 %v3116
      %v3417 = vunpack.c.h.b16 %v3116
      %v3418 = vunpack.c.l.b16 %v3117
      %v3419 = vunpack.c.h.b16 %v3117
      %v3420 = vunpack.c.l.b16 %v3118
      %v3421 = vunpack.c.h.b16 %v3118
      %v3422 = vunpack.c.l.b16 %v3119
      %v3423 = vunpack.c.l.b16 %v3120
      %v3424 = vunpack.c.h.b16 %v3120
      %v3425 = vunpack.c.l.b16 %v3121
      %v3426 = vunpack.c.h.b16 %v3121
      %v3427 = vunpack.c.l.b16 %v3122
      %v3428 = vunpack.c.h.b16 %v3122
      %v3429 = vunpack.c.l.b16 %v3123
      %v3430 = vunpack.c.l.b16 %v3124
      %v3431 = vunpack.c.h.b16 %v3124
      %v3432 = vunpack.c.l.b16 %v3125
      %v3433 = vunpack.c.h.b16 %v3125
      %v3434 = vunpack.c.l.b16 %v3126
      %v3435 = vunpack.c.h.b16 %v3126
      %v3436 = vunpack.c.l.b16 %v3127
      %v3437 = vpack.c.b16 %v3255, %v3248
      %v3438 = vpack.c.b16 %v3256, %v3249
      %v3439 = vpack.c.b16 %v3257, %v3250
      %v3440 = vpack.c.b16 %v3258, %v3251
      %v3441 = vpack.c.b16 %v3259, %v3252
      %v3442 = vpack.c.b16 %v3260, %v3253
      %v3443 = vpack.c.b16 %v3261, %v3254
      %v3444 = vpack.c.b16 %v3269, %v3262
      %v3445 = vpack.c.b16 %v3270, %v3263
      %v3446 = vpack.c.b16 %v3271, %v3264
      %v3447 = vpack.c.b16 %v3272, %v3265
      %v3448 = vpack.c.b16 %v3273, %v3266
      %v3449 = vpack.c.b16 %v3274, %v3267
      %v3450 = vpack.c.b16 %v3275, %v3268
      %v3451 = vpack.c.b16 %v3283, %v3276
      %v3452 = vpack.c.b16 %v3284, %v3277
      %v3453 = vpack.c.b16 %v3285, %v3278
      %v3454 = vpack.c.b16 %v3286, %v3279
      %v3455 = vpack.c.b16 %v3287, %v3280
      %v3456 = vpack.c.b16 %v3288, %v3281
      %v3457 = vpack.c.b16 %v3289, %v3282
      %v3458 = vpack.c.b16 %v3297, %v3290
      %v3459 = vpack.c.b16 %v3298, %v3291
      %v3460 = vpack.c.b16 %v3299, %v3292
      %v3461 = vpack.c.b16 %v3300, %v3293
      %v3462 = vpack.c.b16 %v3301, %v3294
      %v3463 = vpack.c.b16 %v3302, %v3295
      %v3464 = vpack.c.b16 %v3303, %v3296
      %v3465 = vpack.c.b16 %v3311, %v3304
      %v3466 = vpack.c.b16 %v3312, %v3305
      %v3467 = vpack.c.b16 %v3313, %v3306
      %v3468 = vpack.c.b16 %v3314, %v3307
      %v3469 = vpack.c.b16 %v3315, %v3308
      %v3470 = vpack.c.b16 %v3316, %v3309
      %v3471 = vpack.c.b16 %v3317, %v3310
      %v3472 = vpack.c.b16 %v3325, %v3318
      %v3473 = vpack.c.b16 %v3326, %v3319
      %v3474 = vpack.c.b16 %v3327, %v3320
      %v3475 = vpack.c.b16 %v3328, %v3321
      %v3476 = vpack.c.b16 %v3329, %v3322
      %v3477 = vpack.c.b16 %v3330, %v3323
      %v3478 = vpack.c.b16 %v3331, %v3324
      %v3479 = vpack.c.b16 %v3339, %v3332
      %v3480 = vpack.c.b16 %v3340, %v3333
      %v3481 = vpack.c.b16 %v3341, %v3334
      %v3482 = vpack.c.b16 %v3342, %v3335
      %v3483 = vpack.c.b16 %v3343, %v3336
      %v3484 = vpack.c.b16 %v3344, %v3337
      %v3485 = vpack.c.b16 %v3345, %v3338
      %v3486 = vpack.c.b16 %v3353, %v3346
      %v3487 = vpack.c.b16 %v3354, %v3347
      %v3488 = vpack.c.b16 %v3355, %v3348
      %v3489 = vpack.c.b16 %v3356, %v3349
      %v3490 = vpack.c.b16 %v3357, %v3350
      %v3491 = vpack.c.b16 %v3358, %v3351
      %v3492 = vpack.c.b16 %v3359, %v3352
      %v3493 = vpack.c.b16 %v3367, %v3360
      %v3494 = vpack.c.b16 %v3368, %v3361
      %v3495 = vpack.c.b16 %v3369, %v3362
      %v3496 = vpack.c.b16 %v3370, %v3363
      %v3497 = vpack.c.b16 %v3371, %v3364
      %v3498 = vpack.c.b16 %v3372, %v3365
      %v3499 = vpack.c.b16 %v3373, %v3366
      %v3500 = vpack.c.b16 %v3381, %v3374
      %v3501 = vpack.c.b16 %v3382, %v3375
      %v3502 = vpack.c.b16 %v3383, %v3376
      %v3503 = vpack.c.b16 %v3384, %v3377
      %v3504 = vpack.c.b16 %v3385, %v3378
      %v3505 = vpack.c.b16 %v3386, %v3379
      %v3506 = vpack.c.b16 %v3387, %v3380
      %v3507 = vpack.c.b16 %v3395, %v3388
      %v3508 = vpack.c.b16 %v3396, %v3389
      %v3509 = vpack.c.b16 %v3397, %v3390
      %v3510 = vpack.c.b16 %v3398, %v3391
      %v3511 = vpack.c.b16 %v3399, %v3392
      %v3512 = vpack.c.b16 %v3400, %v3393
      %v3513 = vpack.c.b16 %v3401, %v3394
      %v3514 = vpack.c.b16 %v3409, %v3402
      %v3515 = vpack.c.b16 %v3410, %v3403
      %v3516 = vpack.c.b16 %v3411, %v3404
      %v3517 = vpack.c.b16 %v3412, %v3405
      %v3518 = vpack.c.b16 %v3413, %v3406
      %v3519 = vpack.c.b16 %v3414, %v3407
      %v3520 = vpack.c.b16 %v3415, %v3408
      %v3521 = vpack.c.b16 %v3423, %v3416
      %v3522 = vpack.c.b16 %v3424, %v3417
      %v3523 = vpack.c.b16 %v3425, %v3418
      %v3524 = vpack.c.b16 %v3426, %v3419
      %v3525 = vpack.c.b16 %v3427, %v3420
      %v3526 = vpack.c.b16 %v3428, %v3421
      %v3527 = vpack.c.b16 %v3429, %v3422
      %v3528 = vpack.c.b16 %v3430, %v3430
      %v3529 = vpack.c.b16 %v3431, %v3431
      %v3530 = vpack.c.b16 %v3432, %v3432
      %v3531 = vpack.c.b16 %v3433, %v3433
      %v3532 = vpack.c.b16 %v3434, %v3434
      %v3533 = vpack.c.b16 %v3435, %v3435
      %v3534 = vpack.c.b16 %v3436, %v3436
      %v3627 = vsel %vm1830, %v3138, 0
      %v3630 = vsel %vm296, %v3528, 0
      %v3633 = vsel %vm296, %v3529, 0
      %v3636 = vsel %vm296, %v3530, 0
      %v3639 = vsel %vm296, %v3531, 0
      %v3642 = vsel %vm296, %v3532, 0
      %v3645 = vsel %vm296, %v3533, 0
      %v3648 = vsel %vm296, %v3534, 0
      %3650 = vmatprep.subr.bf16.mxu0 %v3438
      %3651 = vmatpush1.bf16.msra.mxu0 %v3437
      %3652 = vmatprep.subr.bf16.mxu0 %v3445
      %3653 = vmatpush1.bf16.msra.mxu0 %v3444
      %3654 = vmatprep.subr.bf16.mxu0 %v3452
      %3655 = vmatpush1.bf16.msra.mxu0 %v3451
      %3656 = vmatprep.subr.bf16.mxu0 %v3459
      %3657 = vmatpush1.bf16.msra.mxu0 %v3458
      %3658 = vmatprep.subr.bf16.mxu0 %v3466
      %3659 = vmatpush1.bf16.msra.mxu0 %v3465
      %3660 = vmatprep.subr.bf16.mxu0 %v3473
      %3661 = vmatpush1.bf16.msra.mxu0 %v3472
      %3662 = vmatprep.subr.bf16.mxu0 %v3480
      %3663 = vmatpush1.bf16.msra.mxu0 %v3479
      %3664 = vmatprep.subr.bf16.mxu0 %v3487
      %3665 = vmatpush1.bf16.msra.mxu0 %v3486
      %3666 = vmatprep.subr.bf16.mxu0 %v3494
      %3667 = vmatpush1.bf16.msra.mxu0 %v3493
      %3668 = vmatprep.subr.bf16.mxu0 %v3501
      %3669 = vmatpush1.bf16.msra.mxu0 %v3500
      %3670 = vmatprep.subr.bf16.mxu0 %v3508
      %3671 = vmatpush1.bf16.msra.mxu0 %v3507
      %3672 = vmatprep.subr.bf16.mxu0 %v3515
      %3673 = vmatpush1.bf16.msra.mxu0 %v3514
      %3674 = vmatprep.subr.bf16.mxu0 %v3522
      %3675 = vmatpush1.bf16.msra.mxu0 %v3521
      %3676 = vmatprep.subr.bf16.mxu0 %v3633
      %3677 = vmatpush1.bf16.msra.mxu0 %v3630
      %3678 = vmatprep.subr.bf16.mxu0 0
      %3679 = vmatpush1.bf16.msra.mxu0 0
      %3680 = vmatprep.subr.bf16.mxu0 0
      %3681 = vmatpush1.bf16.msra.mxu0 0
      %3682 = vmatprep.mubr.bf16.mxu0 %v3627
      %3683 = vmatmul.mubr.bf16.gmra.mrb[0].mxu0 %v3137
      %v3684 = vpop.f32.mrb[0].mxu0
      %v3685 = vadd.f32 %v3132, %v3684
      %v3686 = vpop.f32.mrb[0].mxu0
      %v3687 = vadd.f32 %v3132, %v3686
      %v3688 = vpop.f32.mrb[0].mxu0
      %v3689 = vpop.f32.mrb[0].mxu0
      %3690 = vdwg.mxu0
      %3691 = vmatprep.subr.bf16.mxu0 %v3440
      %3692 = vmatpush1.bf16.msra.mxu0 %v3439
      %3693 = vmatprep.subr.bf16.mxu0 %v3447
      %3694 = vmatpush1.bf16.msra.mxu0 %v3446
      %3695 = vmatprep.subr.bf16.mxu0 %v3454
      %3696 = vmatpush1.bf16.msra.mxu0 %v3453
      %3697 = vmatprep.subr.bf16.mxu0 %v3461
      %3698 = vmatpush1.bf16.msra.mxu0 %v3460
      %3699 = vmatprep.subr.bf16.mxu0 %v3468
      %3700 = vmatpush1.bf16.msra.mxu0 %v3467
      %3701 = vmatprep.subr.bf16.mxu0 %v3475
      %3702 = vmatpush1.bf16.msra.mxu0 %v3474
      %3703 = vmatprep.subr.bf16.mxu0 %v3482
      %3704 = vmatpush1.bf16.msra.mxu0 %v3481
      %3705 = vmatprep.subr.bf16.mxu0 %v3489
      %3706 = vmatpush1.bf16.msra.mxu0 %v3488
      %3707 = vmatprep.subr.bf16.mxu0 %v3496
      %3708 = vmatpush1.bf16.msra.mxu0 %v3495
      %3709 = vmatprep.subr.bf16.mxu0 %v3503
      %3710 = vmatpush1.bf16.msra.mxu0 %v3502
      %3711 = vmatprep.subr.bf16.mxu0 %v3510
      %3712 = vmatpush1.bf16.msra.mxu0 %v3509
      %3713 = vmatprep.subr.bf16.mxu0 %v3517
      %3714 = vmatpush1.bf16.msra.mxu0 %v3516
      %3715 = vmatprep.subr.bf16.mxu0 %v3524
      %3716 = vmatpush1.bf16.msra.mxu0 %v3523
      %3717 = vmatprep.subr.bf16.mxu0 %v3639
      %3718 = vmatpush1.bf16.msra.mxu0 %v3636
      %3719 = vmatprep.subr.bf16.mxu0 0
      %3720 = vmatpush1.bf16.msra.mxu0 0
      %3721 = vmatprep.subr.bf16.mxu0 0
      %3722 = vmatpush1.bf16.msra.mxu0 0
      %3723 = vmatprep.mubr.bf16.mxu0 %v3627
      %3724 = vmatmul.mubr.bf16.gmra.mrb[0].mxu0 %v3137
      %v3725 = vpop.f32.mrb[0].mxu0
      %v3726 = vadd.f32 %v3132, %v3725
      %v3727 = vpop.f32.mrb[0].mxu0
      %v3728 = vadd.f32 %v3132, %v3727
      %v3729 = vpop.f32.mrb[0].mxu0
      %v3730 = vpop.f32.mrb[0].mxu0
      %3731 = vdwg.mxu0
      %3732 = vmatprep.subr.bf16.mxu0 %v3442
      %3733 = vmatpush1.bf16.msra.mxu0 %v3441
      %3734 = vmatprep.subr.bf16.mxu0 %v3449
      %3735 = vmatpush1.bf16.msra.mxu0 %v3448
      %3736 = vmatprep.subr.bf16.mxu0 %v3456
      %3737 = vmatpush1.bf16.msra.mxu0 %v3455
      %3738 = vmatprep.subr.bf16.mxu0 %v3463
      %3739 = vmatpush1.bf16.msra.mxu0 %v3462
      %3740 = vmatprep.subr.bf16.mxu0 %v3470
      %3741 = vmatpush1.bf16.msra.mxu0 %v3469
      %3742 = vmatprep.subr.bf16.mxu0 %v3477
      %3743 = vmatpush1.bf16.msra.mxu0 %v3476
      %3744 = vmatprep.subr.bf16.mxu0 %v3484
      %3745 = vmatpush1.bf16.msra.mxu0 %v3483
      %3746 = vmatprep.subr.bf16.mxu0 %v3491
      %3747 = vmatpush1.bf16.msra.mxu0 %v3490
      %3748 = vmatprep.subr.bf16.mxu0 %v3498
      %3749 = vmatpush1.bf16.msra.mxu0 %v3497
      %3750 = vmatprep.subr.bf16.mxu0 %v3505
      %3751 = vmatpush1.bf16.msra.mxu0 %v3504
      %3752 = vmatprep.subr.bf16.mxu0 %v3512
      %3753 = vmatpush1.bf16.msra.mxu0 %v3511
      %3754 = vmatprep.subr.bf16.mxu0 %v3519
      %3755 = vmatpush1.bf16.msra.mxu0 %v3518
      %3756 = vmatprep.subr.bf16.mxu0 %v3526
      %3757 = vmatpush1.bf16.msra.mxu0 %v3525
      %3758 = vmatprep.subr.bf16.mxu0 %v3645
      %3759 = vmatpush1.bf16.msra.mxu0 %v3642
      %3760 = vmatprep.subr.bf16.mxu0 0
      %3761 = vmatpush1.bf16.msra.mxu0 0
      %3762 = vmatprep.subr.bf16.mxu0 0
      %3763 = vmatpush1.bf16.msra.mxu0 0
      %3764 = vmatprep.mubr.bf16.mxu0 %v3627
      %3765 = vmatmul.mubr.bf16.gmra.mrb[0].mxu0 %v3137
      %v3766 = vpop.f32.mrb[0].mxu0
      %v3767 = vadd.f32 %v3132, %v3766
      %v3768 = vpop.f32.mrb[0].mxu0
      %v3769 = vadd.f32 %v3132, %v3768
      %v3770 = vpop.f32.mrb[0].mxu0
      %v3771 = vpop.f32.mrb[0].mxu0
      %3772 = vdwg.mxu0
      %3773 = vmatprep.subr.bf16.mxu0 0
      %3774 = vmatpush1.bf16.msra.mxu0 %v3443
      %3775 = vmatprep.subr.bf16.mxu0 0
      %3776 = vmatpush1.bf16.msra.mxu0 %v3450
      %3777 = vmatprep.subr.bf16.mxu0 0
      %3778 = vmatpush1.bf16.msra.mxu0 %v3457
      %3779 = vmatprep.subr.bf16.mxu0 0
      %3780 = vmatpush1.bf16.msra.mxu0 %v3464
      %3781 = vmatprep.subr.bf16.mxu0 0
      %3782 = vmatpush1.bf16.msra.mxu0 %v3471
      %3783 = vmatprep.subr.bf16.mxu0 0
      %3784 = vmatpush1.bf16.msra.mxu0 %v3478
      %3785 = vmatprep.subr.bf16.mxu0 0
      %3786 = vmatpush1.bf16.msra.mxu0 %v3485
      %3787 = vmatprep.subr.bf16.mxu0 0
      %3788 = vmatpush1.bf16.msra.mxu0 %v3492
      %3789 = vmatprep.subr.bf16.mxu0 0
      %3790 = vmatpush1.bf16.msra.mxu0 %v3499
      %3791 = vmatprep.subr.bf16.mxu0 0
      %3792 = vmatpush1.bf16.msra.mxu0 %v3506
      %3793 = vmatprep.subr.bf16.mxu0 0
      %3794 = vmatpush1.bf16.msra.mxu0 %v3513
      %3795 = vmatprep.subr.bf16.mxu0 0
      %3796 = vmatpush1.bf16.msra.mxu0 %v3520
      %3797 = vmatprep.subr.bf16.mxu0 0
      %3798 = vmatpush1.bf16.msra.mxu0 %v3527
      %3799 = vmatprep.subr.bf16.mxu0 0
      %3800 = vmatpush1.bf16.msra.mxu0 %v3648
      %3801 = vmatprep.subr.bf16.mxu0 0
      %3802 = vmatpush1.bf16.msra.mxu0 0
      %3803 = vmatprep.subr.bf16.mxu0 0
      %3804 = vmatpush1.bf16.msra.mxu0 0
      %3805 = vmatprep.mubr.bf16.mxu0 %v3627
      %3806 = vmatmul.mubr.bf16.gmra.mrb[0].mxu0 %v3137
      %v3807 = vpop.f32.mrb[0].mxu0
      %v3808 = vadd.f32 %v3132, %v3807
      %v3809 = vpop.f32.mrb[0].mxu0
      %v3810 = vpop.f32.mrb[0].mxu0
      %v3811 = vpop.f32.mrb[0].mxu0
      %3812 = vdwg.mxu0
      %v3813 = vld [vmem:[%s246] sm:$0xff]
      %v3814 = vld [vmem:[%s246 + $0x8] sm:$0xff]
      %v3815 = vld [vmem:[%s246 + $0x10] sm:$0xff]
      %v3816 = vld [vmem:[%s246 + $0x18] sm:$0xff]
      %v3817 = vld [vmem:[%s246 + $0x20] sm:$0xff]
      %v3818 = vld [vmem:[%s246 + $0x28] sm:$0xff]
      %v3819 = vld [vmem:[%s246 + $0x30] sm:$0xff]
      %3827 = vrot.lane.b32.xlu0 %v3813, 17
      %v3828 = vpop.permute.xlu0 %3827
      %3829 = vrot.lane.b32.xlu0 %v3814, 17
      %v3830 = vpop.permute.xlu0 %3829
      %3831 = vrot.lane.b32.xlu0 %v3815, 17
      %v3832 = vpop.permute.xlu0 %3831
      %3833 = vrot.lane.b32.xlu0 %v3816, 17
      %v3834 = vpop.permute.xlu0 %3833
      %3835 = vrot.lane.b32.xlu0 %v3817, 17
      %v3836 = vpop.permute.xlu0 %3835
      %3837 = vrot.lane.b32.xlu0 %v3818, 17
      %v3838 = vpop.permute.xlu0 %3837
      %3839 = vrot.lane.b32.xlu0 %v3819, 17
      %v3840 = vpop.permute.xlu0 %3839
      %vm3841 = vcmask 138240
      %v3842 = vsel %vm3841, %v3828, %v3830
      %v3843 = vsel %vm3841, %v3830, %v3832
      %v3844 = vsel %vm3841, %v3832, %v3834
      %v3845 = vsel %vm3841, %v3834, %v3836
      %v3846 = vsel %vm3841, %v3836, %v3838
      %v3847 = vsel %vm3841, %v3838, %v3840
      %v3855 = vadd.f32 %v3685, %v3842
      %v3856 = vadd.f32 %v3687, %v3843
      %v3857 = vadd.f32 %v3726, %v3844
      %v3858 = vadd.f32 %v3728, %v3845
      %v3859 = vadd.f32 %v3767, %v3846
      %v3860 = vadd.f32 %v3769, %v3847
      %v3861 = vadd.f32 %v3808, %v3840
      %v3862 = vmax.f32 %v3855, 0.0
      %v3863 = vmax.f32 %v3856, 0.0
      %v3864 = vmax.f32 %v3857, 0.0
      %v3865 = vmax.f32 %v3858, 0.0
      %v3866 = vmax.f32 %v3859, 0.0
      %v3867 = vmax.f32 %v3860, 0.0
      %v3868 = vmax.f32 %v3861, 0.0
      %3876 = vrot.lane.b32.xlu0 %v3862, 111
      %v3877 = vpop.permute.xlu0 %3876
      %3878 = vrot.lane.b32.xlu0 %v3863, 111
      %v3879 = vpop.permute.xlu0 %3878
      %3880 = vrot.lane.b32.xlu0 %v3864, 111
      %v3881 = vpop.permute.xlu0 %3880
      %3882 = vrot.lane.b32.xlu0 %v3865, 111
      %v3883 = vpop.permute.xlu0 %3882
      %3884 = vrot.lane.b32.xlu0 %v3866, 111
      %v3885 = vpop.permute.xlu0 %3884
      %3886 = vrot.lane.b32.xlu0 %v3867, 111
      %v3887 = vpop.permute.xlu0 %3886
      %3888 = vrot.lane.b32.xlu0 %v3868, 111
      %v3889 = vpop.permute.xlu0 %3888
      %vm3890 = vcmask 908288
      %v3891 = vsel %vm3890, %v3877, %v3879
      %v3892 = vsel %vm3890, %v3879, %v3881
      %v3893 = vsel %vm3890, %v3881, %v3883
      %v3894 = vsel %vm3890, %v3883, %v3885
      %v3895 = vsel %vm3890, %v3885, %v3887
      %v3896 = vsel %vm3890, %v3887, %v3889
      %vm3904 = vcmask 1048440
      %3905 = vst.msk [vmem:[%s251] sm:$0xff] %vm3904, %v3877
      %3906 = vst [vmem:[%s251 + $0x8] sm:$0xff] %v3891
      %3907 = vst [vmem:[%s251 + $0x10] sm:$0xff] %v3892
      %3908 = vst [vmem:[%s251 + $0x18] sm:$0xff] %v3893
      %3909 = vst [vmem:[%s251 + $0x20] sm:$0xff] %v3894
      %3910 = vst [vmem:[%s251 + $0x28] sm:$0xff] %v3895
      %vm3911 = vcmask 990208
      %3912 = vst.msk [vmem:[%s251 + $0x30] sm:$0xff] %vm3911, %v3896
      %p3913 = scmp.lt.s32.totalorder %s17, 1
      %s3914 = scalar_select %p3913, %s17, 1
      %s3915 = smul.addr %s3914, 8
      %s3916 = smul.addr %s3915, 8
      %s3917 = scalar_lea.vmem %s6, %s3916
      // Predicated region
      $region45: #{basic_block_forward.1} parent=43 // pred_check
        %p3918 = pneg %p166
      $region46: #{basic_block_forward.1} parent=43 // pred_check_branch
        %3920 = sbr.rel (%p3918) target = $region48
      $region47: #{basic_block_forward.1} parent=43 // pred_region
        _
      $region48: #{basic_block_forward.1} parent=43 // pred_fallthru
        _
    $region44: #{basic_block_forward.1} parent=5 // pred_fallthru
      _
    %p3921 = scmp.le.s32.totalorder 2, %s12
    // Predicated region
    $region49: #{basic_block_forward.1} parent=5 // pred_check
      %p3922 = pneg %p3921
    $region50: #{basic_block_forward.1} parent=5 // pred_check_branch
      %3924 = sbr.rel (%p3922) target = $region52
    $region51: #{basic_block_forward.1} parent=5 // pred_region
      %s3925 = ssub.s32 %s12, 2
      // Predicated region
      $region53: #{basic_block_forward.1} parent=51 // pred_check
        %p3926 = pneg %p172
      $region54: #{basic_block_forward.1} parent=51 // pred_check_branch
        %3928 = sbr.rel (%p3926) target = $region56
      $region55: #{basic_block_forward.1} parent=51 // pred_region
        %p3929 = scmp.lt.s32.totalorder %s18, 1
        %s3930 = scalar_select %p3929, %s18, 1
        %s3931 = smul.addr %s3930, 8
        %s3932 = smul.addr %s3931, 8
        %s3933 = scalar_lea.vmem %s6, %s3932
      $region56: #{basic_block_forward.1} parent=51 // pred_fallthru
        _
    $region52: #{basic_block_forward.1} parent=5 // pred_fallthru
      _
  $region6: #{basic_block_forward.1} parent=0 // loop_footer
    %s16 = sadd.s32 1, %s12
  $region7: #{basic_block_forward.1} parent=0 // loop_footer_branch
    %11 = sbr.rel target = $region3
  $region8: #{basic_block_forward.1} parent=0 // loop_exit
    _

</llo_original>
